<compile_context>
chip_gen: v5e
topology: v5e:2x2
jax: 0.10.0
libtpu: 0.0.40
codegen_flags: <defaults>
</compile_context>

<pallas_src>
import functools
import math

import jax
import jax.numpy as jnp
from jax.experimental import pallas as pl
from jax.experimental.pallas import tpu as pltpu

_EPS = 1e-5
_LANE = 128     # TPU lane width: channel dims are zero-padded up to a multiple of this


def _rup(v, m):
    return (v + m - 1) // m * m


def _pad_axis(a, axis, target):
    pad = target - a.shape[axis]
    if pad == 0:
        return a
    cfg = [(0, 0)] * a.ndim
    cfg[axis] = (0, pad)
    return jnp.pad(a, cfg)


def _cparams(sem, blocks):
    """dimension_semantics + a block-size-derived VMEM budget (capped for v7x)."""
    live = sum(int(math.prod(shape)) * itemsize for shape, itemsize in blocks)
    limit = int(min(48 << 20, max(32 << 20, 3 * live)))   # ~double-buffer + margin
    return pltpu.CompilerParams(dimension_semantics=sem, vmem_limit_bytes=limit)


# ----------------------------- in-kernel helpers -----------------------------

def _conv3x3_acc(load_win, w_ref, stride, wq):
    """3x3 conv as 9 accumulated MXU matmuls over flattened stride-phase windows.

    load_win(p, d) -> (chunk, K) bf16 window of phase p starting at flat row d.
    Output row (i*wq + j) is the conv result at spatial (i, j); rows with j >= Wo
    are junk ("wide rows") and are masked/dropped by the caller.
    """
    acc = None
    for t in range(9):
        kh, kw = t // 3, t % 3
        p = (kh % stride) * stride + (kw % stride)      # which stride phase
        d = (kh // stride) * wq + (kw // stride)        # flat offset inside it
        part = jnp.dot(load_win(p, d), w_ref[t],
                       preferred_element_type=jnp.float32)
        acc = part if acc is None else acc + part
    return acc


def _write_stats(s_ref, y, vmask):
    """Per-image (sum, sum-of-squares) partials over valid rows -> (1, 2, Cp) block."""
    # TODO(synk): single-pass E[x^2]-E[x]^2 can cancel for large/shifted activations.
    ym = y * vmask
    s_ref[0, 0:1, :] = jnp.sum(ym, axis=0, keepdims=True)
    s_ref[0, 1:2, :] = jnp.sum(ym * y, axis=0, keepdims=True)


def _bn_scale_shift(stats_ref, g_ref, b_ref, count):
    """Training-mode BatchNorm folded into a per-channel scale/shift (f32, EUP rsqrt)."""
    inv = 1.0 / count
    mean = stats_ref[0:1, :] * inv
    var = jnp.maximum(stats_ref[1:2, :] * inv - mean * mean, 0.0)
    scale = g_ref[...] * jax.lax.rsqrt(var + _EPS)
    shift = b_ref[...] - mean * scale
    return scale, shift


def _store_ring(y_ref, acc, off, chunk):
    """Store the conv result into the ring-padded wide layout; zero the halo strips so
    downstream masked reads never see stale HBM contents."""
    sp1, cw = y_ref.shape[1], y_ref.shape[2]
    dt = y_ref.dtype
    y_ref[0, 0:off, :] = jnp.zeros((off, cw), dt)
    y_ref[0, off + chunk:sp1, :] = jnp.zeros((sp1 - off - chunk, cw), dt)
    y_ref[0, off:off + chunk, :] = acc.astype(dt)


# --------------------------------- kernels -----------------------------------

def _conv1_kernel(xq_ref, w_ref, vmask_ref, y_ref, s_ref, *, stride, wq, chunk, off):
    acc = _conv3x3_acc(lambda p, d: xq_ref[p, 0, d:d + chunk, :], w_ref, stride, wq)
    _store_ring(y_ref, acc, off, chunk)
    _write_stats(s_ref, acc, vmask_ref[...])


def _conv1_proj_kernel(xq_ref, w_ref, vmask_ref, wd_ref,
                       y_ref, s_ref, yd_ref, sd_ref, *, stride, wq, chunk, off):
    vm = vmask_ref[...]
    acc = _conv3x3_acc(lambda p, d: xq_ref[p, 0, d:d + chunk, :], w_ref, stride, wq)
    _store_ring(y_ref, acc, off, chunk)
    _write_stats(s_ref, acc, vm)
    # 1x1 stride-s projection from the already-resident phase block (no extra DMA).
    p1 = (1 % stride) * stride + (1 % stride)
    d1 = (1 // stride) * wq + (1 // stride)
    yd = jnp.dot(xq_ref[p1, 0, d1:d1 + chunk, :], wd_ref[...],
                 preferred_element_type=jnp.float32)
    yd_ref[0, :, :] = yd.astype(yd_ref.dtype)
    _write_stats(sd_ref, yd, vm)


def _conv2_kernel(yp_ref, w_ref, bmask_ref, vmask_ref, s1_ref, g1_ref, b1_ref,
                  y2_ref, s2_ref, h_scr, *, wq, chunk, off, count):
    # bn1 + ReLU fused here (global batch stats reduced in the wrapper).
    scale, shift = _bn_scale_shift(s1_ref, g1_ref, b1_ref, count)
    y = yp_ref[0].astype(jnp.float32)                            # (sp1, Cp)
    h = jnp.maximum(y * scale + shift, 0.0) * bmask_ref[...]     # zero halo + junk cols
    h_scr[...] = h.astype(h_scr.dtype)
    base = off - (wq + 1)                                        # ring offset of tap (0,0)
    acc = _conv3x3_acc(lambda p, d: h_scr[base + d:base + d + chunk, :], w_ref, 1, wq)
    y2_ref[0, :, :] = acc.astype(y2_ref.dtype)
    _write_stats(s2_ref, acc, vmask_ref[...])


def _tail_proj_kernel(y2_ref, yd_ref, s2_ref, g2_ref, b2_ref, sd_ref, gd_ref, bd_ref,
                      o_ref, *, count):
    sc2, sh2 = _bn_scale_shift(s2_ref, g2_ref, b2_ref, count)
    scd, shd = _bn_scale_shift(sd_ref, gd_ref, bd_ref, count)
    y2 = y2_ref[0].astype(jnp.float32)
    yd = yd_ref[0].astype(jnp.float32)
    o_ref[0, :, :] = jnp.maximum(y2 * sc2 + sh2 + yd * scd + shd, 0.0)


def _tail_id_kernel(y2_ref, xq_ref, s2_ref, g2_ref, b2_ref, o_ref, *, count, d1, chunk):
    sc2, sh2 = _bn_scale_shift(s2_ref, g2_ref, b2_ref, count)
    y2 = y2_ref[0].astype(jnp.float32)
    res = xq_ref[0, 0, d1:d1 + chunk, :].astype(jnp.float32)     # identity straight from ph
    o_ref[0, :, :] = jnp.maximum(y2 * sc2 + sh2 + res, 0.0)


# ------------------------------ pallas wrappers -------------------------------

def _run_conv1(ph, w1t, vmask, wdm, *, stride, wq, chunk, off, sp1, cinp, coutp):
    s2, n, sq, _ = ph.shape
    in_specs = [pl.BlockSpec((s2, 1, sq, cinp), lambda i: (0, i, 0, 0)),
                pl.BlockSpec((9, cinp, coutp), lambda i: (0, 0, 0)),
                pl.BlockSpec((chunk, 1), lambda i: (0, 0))]
    out_shapes = [jax.ShapeDtypeStruct((n, sp1, coutp), jnp.bfloat16),
                  jax.ShapeDtypeStruct((n, 2, coutp), jnp.float32)]
    out_specs = [pl.BlockSpec((1, sp1, coutp), lambda i: (i, 0, 0)),
                 pl.BlockSpec((1, 2, coutp), lambda i: (i, 0, 0))]
    blocks = [((s2, 1, sq, cinp), 2), ((9, cinp, coutp), 2), ((chunk, 1), 4),
              ((1, sp1, coutp), 2), ((1, 2, coutp), 4)]
    args = [ph, w1t, vmask]
    if wdm is None:
        kern = functools.partial(_conv1_kernel, stride=stride, wq=wq,
                                 chunk=chunk, off=off)
    else:
        kern = functools.partial(_conv1_proj_kernel, stride=stride, wq=wq,
                                 chunk=chunk, off=off)
        in_specs.append(pl.BlockSpec((cinp, coutp), lambda i: (0, 0)))
        args.append(wdm)
        out_shapes += [jax.ShapeDtypeStruct((n, chunk, coutp), jnp.bfloat16),
                       jax.ShapeDtypeStruct((n, 2, coutp), jnp.float32)]
        out_specs += [pl.BlockSpec((1, chunk, coutp), lambda i: (i, 0, 0)),
                      pl.BlockSpec((1, 2, coutp), lambda i: (i, 0, 0))]
        blocks += [((cinp, coutp), 2), ((1, chunk, coutp), 2), ((1, 2, coutp), 4)]
    return pl.pallas_call(
        kern,
        out_shape=tuple(out_shapes),
        grid=(n,),
        in_specs=in_specs,
        out_specs=tuple(out_specs),
        compiler_params=_cparams(("parallel",), blocks),
    )(*args)


def _run_conv2(y1w, w2t, bmask, vmask, s1, g1, b1, *, wq, chunk, off, count, coutp):
    n, sp1, _ = y1w.shape
    kern = functools.partial(_conv2_kernel, wq=wq, chunk=chunk, off=off, count=count)
    blocks = [((1, sp1, coutp), 2), ((9, coutp, coutp), 2), ((sp1, 1), 4),
              ((chunk, 1), 4), ((2, coutp), 4), ((1, coutp), 4), ((1, coutp), 4),
              ((1, chunk, coutp), 2), ((1, 2, coutp), 4), ((sp1, coutp), 2)]
    return pl.pallas_call(
        kern,
        out_shape=(jax.ShapeDtypeStruct((n, chunk, coutp), jnp.bfloat16),
                   jax.ShapeDtypeStruct((n, 2, coutp), jnp.float32)),
        grid=(n,),
        in_specs=[pl.BlockSpec((1, sp1, coutp), lambda i: (i, 0, 0)),
                  pl.BlockSpec((9, coutp, coutp), lambda i: (0, 0, 0)),
                  pl.BlockSpec((sp1, 1), lambda i: (0, 0)),
                  pl.BlockSpec((chunk, 1), lambda i: (0, 0)),
                  pl.BlockSpec((2, coutp), lambda i: (0, 0)),
                  pl.BlockSpec((1, coutp), lambda i: (0, 0)),
                  pl.BlockSpec((1, coutp), lambda i: (0, 0))],
        out_specs=(pl.BlockSpec((1, chunk, coutp), lambda i: (i, 0, 0)),
                   pl.BlockSpec((1, 2, coutp), lambda i: (i, 0, 0))),
        scratch_shapes=[pltpu.VMEM((sp1, coutp), jnp.bfloat16)],
        compiler_params=_cparams(("parallel",), blocks),
    )(y1w, w2t, bmask, vmask, s1, g1, b1)


def _run_tail_proj(y2w, ydw, s2, g2, b2, sd, gd, bd, *, count, coutp):
    n, chunk, _ = y2w.shape
    kern = functools.partial(_tail_proj_kernel, count=count)
    act = pl.BlockSpec((1, chunk, coutp), lambda i: (i, 0, 0))
    v1 = pl.BlockSpec((1, coutp), lambda i: (0, 0))
    v2 = pl.BlockSpec((2, coutp), lambda i: (0, 0))
    blocks = [((1, chunk, coutp), 2)] * 2 + [((2, coutp), 4)] * 2 \
        + [((1, coutp), 4)] * 4 + [((1, chunk, coutp), 4)]
    return pl.pallas_call(
        kern,
        out_shape=jax.ShapeDtypeStruct((n, chunk, coutp), jnp.float32),
        grid=(n,),
        in_specs=[act, act, v2, v1, v1, v2, v1, v1],
        out_specs=act,
        compiler_params=_cparams(("parallel",), blocks),
    )(y2w, ydw, s2, g2, b2, sd, gd, bd)


def _run_tail_id(y2w, ph, s2, g2, b2, *, count, coutp, cinp, d1):
    n, chunk, _ = y2w.shape
    s2n, _, sq, _ = ph.shape     # s2n == 1 (identity path implies stride 1)
    kern = functools.partial(_tail_id_kernel, count=count, d1=d1, chunk=chunk)
    act = pl.BlockSpec((1, chunk, coutp), lambda i: (i, 0, 0))
    v1 = pl.BlockSpec((1, coutp), lambda i: (0, 0))
    v2 = pl.BlockSpec((2, coutp), lambda i: (0, 0))
    blocks = [((1, chunk, coutp), 2), ((1, 1, sq, cinp), 2), ((2, coutp), 4),
              ((1, coutp), 4), ((1, coutp), 4), ((1, chunk, coutp), 4)]
    return pl.pallas_call(
        kern,
        out_shape=jax.ShapeDtypeStruct((n, chunk, coutp), jnp.float32),
        grid=(n,),
        in_specs=[act,
                  pl.BlockSpec((1, 1, sq, cinp), lambda i: (0, i, 0, 0)),
                  v2, v1, v1],
        out_specs=act,
        compiler_params=_cparams(("parallel",), blocks),
    )(y2w, ph, s2, g2, b2)


# --------------------------------- forward ------------------------------------

def resblk_forward(x_nchw, params, stride):
    """Forward pass of ResBlk. x_nchw: (N, Cin, H, W) f32 -> (N, Cout, Ho, Wo)."""
    x = jnp.transpose(x_nchw, (0, 2, 3, 1)).astype(jnp.float32)   # NCHW -> NHWC
    n, h, w, cin = x.shape
    cout = params["w1"].shape[-1]
    s = int(stride)
    proj = (cout != cin)
    if (not proj) and s != 1:
        raise ValueError("ch_in == ch_out with stride != 1 is unsupported (as in PyTorch)")
    cinp = _rup(max(cin, _LANE), _LANE)      # lane-dense contraction width
    coutp = _rup(max(cout, _LANE), _LANE)    # lane-dense output width
    ho = (h - 1) // s + 1
    wo = (w - 1) // s + 1
    count = float(n * ho * wo)

    # ---- conv1 input: zero ring, channel pad, stride-phase decompose, flatten, bf16 ----
    xp = _pad_axis(jnp.pad(x, ((0, 0), (1, 1), (1, 1), (0, 0))), 3, cinp)
    hp, wp = _rup(h + 2, s), _rup(w + 2, s)
    xp = _pad_axis(_pad_axis(xp, 1, hp), 2, wp)
    hq, wq = hp // s, wp // s
    ph = xp.reshape(n, hq, s, wq, s, cinp).transpose(2, 4, 0, 1, 3, 5)
    ph = ph.reshape(s * s, n, hq * wq, cinp)
    chunk = ho * wq                                   # wide rows: junk cols j >= wo
    sq = _rup(max(hq * wq, (2 // s) * (wq + 1) + chunk), 8)
    ph = _pad_axis(ph, 2, sq).astype(jnp.bfloat16)

    off = _rup(wq + 1, 16)                            # sublane-aligned ring offset (bf16)
    sp1 = _rup(off + chunk + wq + 1, 16)              # rows of ring-padded conv1 output

    vmask = ((jnp.arange(chunk) % wq) < wo).astype(jnp.float32).reshape(chunk, 1)
    t = jnp.arange(sp1) - off
    bmask = ((t >= 0) & (t < chunk) & ((t % wq) < wo)
             ).astype(jnp.float32).reshape(sp1, 1)

    w1t = jnp.pad(params["w1"],
                  ((0, 0), (0, 0), (0, cinp - cin), (0, coutp - cout))
                  ).reshape(9, cinp, coutp).astype(jnp.bfloat16)
    w2t = jnp.pad(params["w2"],
                  ((0, 0), (0, 0), (0, coutp - cout), (0, coutp - cout))
                  ).reshape(9, coutp, coutp).astype(jnp.bfloat16)
    g1 = _pad_axis(params["g1"], 1, coutp)
    b1 = _pad_axis(params["b1"], 1, coutp)
    g2 = _pad_axis(params["g2"], 1, coutp)
    b2 = _pad_axis(params["b2"], 1, coutp)

    # ---- conv1 (+ fused 1x1 projection); per-image BN-stat partials ("parallel") ----
    if proj:
        wdm = jnp.pad(params["wd"], ((0, cinp - cin), (0, coutp - cout))
                      ).astype(jnp.bfloat16)
        gd = _pad_axis(params["gd"], 1, coutp)
        bd = _pad_axis(params["bd"], 1, coutp)
        y1w, s1p, ydw, sdp = _run_conv1(ph, w1t, vmask, wdm, stride=s, wq=wq,
                                        chunk=chunk, off=off, sp1=sp1,
                                        cinp=cinp, coutp=coutp)
        sd = jnp.sum(sdp, axis=0)
    else:
        y1w, s1p = _run_conv1(ph, w1t, vmask, None, stride=s, wq=wq, chunk=chunk,
                              off=off, sp1=sp1, cinp=cinp, coutp=coutp)
    s1 = jnp.sum(s1p, axis=0)                          # tiny (2, C) reduce in XLA

    # ---- conv2 (stride 1): fused bn1+ReLU, windows straight from conv1's ring layout ----
    y2w, s2p = _run_conv2(y1w, w2t, bmask, vmask, s1, g1, b1,
                          wq=wq, chunk=chunk, off=off, count=count, coutp=coutp)
    s2 = jnp.sum(s2p, axis=0)

    # ---- bn2 (+ bn_d) + residual + ReLU in the wide layout ----
    if proj:
        out = _run_tail_proj(y2w, ydw, s2, g2, b2, sd, gd, bd,
                             count=count, coutp=coutp)
    else:
        out = _run_tail_id(y2w, ph, s2, g2, b2, count=count, coutp=coutp,
                           cinp=cinp, d1=wq + 1)

    out = out.reshape(n, ho, wq, coutp)[:, :, :wo, :cout]
    return jnp.transpose(out, (0, 3, 1, 2))                    # back to NCHW


# ------------------------- deterministic parameter init -----------------------

def init_params(key, ch_in, ch_out):
    ks = jax.random.split(key, 9)

    def bn_init(kg, kb, c):
        g = 1.0 + 0.1 * jax.random.normal(kg, (1, c), jnp.float32)
        b = 0.1 * jax.random.normal(kb, (1, c), jnp.float32)
        return g, b

    p = {}
    p["w1"] = jax.random.normal(ks[0], (3, 3, ch_in, ch_out), jnp.float32) / math.sqrt(9 * ch_in)
    p["g1"], p["b1"] = bn_init(ks[1], ks[2], ch_out)
    p["w2"] = jax.random.normal(ks[3], (3, 3, ch_out, ch_out), jnp.float32) / math.sqrt(9 * ch_out)
    p["g2"], p["b2"] = bn_init(ks[4], ks[5], ch_out)
    if ch_out != ch_in:
        p["wd"] = jax.random.normal(ks[6], (ch_in, ch_out), jnp.float32) / math.sqrt(ch_in)
        p["gd"], p["bd"] = bn_init(ks[7], ks[8], ch_out)
    return p


# ------------------------------- pure-JAX reference ---------------------------

def _bn_ref(y, g, b):
    mean = y.mean(axis=(0, 1, 2), keepdims=True)
    var = ((y - mean) ** 2).mean(axis=(0, 1, 2), keepdims=True)
    return (y - mean) * jax.lax.rsqrt(var + _EPS) * g.reshape(1, 1, 1, -1) + b.reshape(1, 1, 1, -1)


def resblk_ref(x_nchw, params, stride):
    x = jnp.transpose(x_nchw, (0, 2, 3, 1))
    cin = x.shape[-1]
    cout = params["w1"].shape[-1]
    dn = ("NHWC", "HWIO", "NHWC")
    y = jax.lax.conv_general_dilated(x, params["w1"], (stride, stride),
                                     ((1, 1), (1, 1)), dimension_numbers=dn)
    y = jnp.maximum(_bn_ref(y, params["g1"], params["b1"]), 0.0)
    y = jax.lax.conv_general_dilated(y, params["w2"], (1, 1),
                                     ((1, 1), (1, 1)), dimension_numbers=dn)
    y = _bn_ref(y, params["g2"], params["b2"])
    if cout != cin:
        idt = jax.lax.conv_general_dilated(x, params["wd"].reshape(1, 1, cin, cout),
                                           (stride, stride), "VALID", dimension_numbers=dn)
        idt = _bn_ref(idt, params["gd"], params["bd"])
    else:
        idt = x
    out = jnp.maximum(y + idt, 0.0)
    return jnp.transpose(out, (0, 3, 1, 2))


# ----------------------------------- main -------------------------------------

if __name__ == "__main__":
    key = jax.random.PRNGKey(0)
    kx1, kp1, kx2, kp2 = jax.random.split(key, 4)

    fwd = jax.jit(resblk_forward, static_argnames=("stride",))

    # Case 1: ch_in=4 -> ch_out=8, stride=2  (1x1 projection / downsample branch)
    x1 = jax.random.normal(kx1, (2, 4, 16, 16), jnp.float32)   # NCHW, like PyTorch
    params_ds = init_params(kp1, 4, 8)
    out1 = jax.block_until_ready(fwd(x1, params_ds, stride=2))
    assert out1.shape == (2, 8, 8, 8), out1.shape
    err1 = float(jnp.max(jnp.abs(out1 - resblk_ref(x1, params_ds, 2))))
    # Tolerance sized for bf16 MXU operands AND bf16 HBM streaming of intermediates.
    assert err1 < 1.5e-1, f"downsample-path mismatch: {err1}"

    # Case 2: ch_in=4 -> ch_out=4, stride=1  (identity branch)
    x2 = jax.random.normal(kx2, (2, 4, 16, 16), jnp.float32)
    params_id = init_params(kp2, 4, 4)
    out2 = jax.block_until_ready(fwd(x2, params_id, stride=1))
    assert out2.shape == (2, 4, 16, 16), out2.shape
    err2 = float(jnp.max(jnp.abs(out2 - resblk_ref(x2, params_id, 1))))
    assert err2 < 1.5e-1, f"identity-path mismatch: {err2}"

    print("KERNEL_OK")
</pallas_src>

<mosaic_0001>
module attributes {stable_mosaic.version = 11 : i64} {
  func.func @_conv1_proj_kernel(%arg0: i32, %arg1: memref<4x1x88x128xbf16, #tpu.memory_space<vmem>>, %arg2: memref<9x128x128xbf16, #tpu.memory_space<vmem>>, %arg3: memref<72x1xf32, #tpu.memory_space<vmem>>, %arg4: memref<128x128xbf16, #tpu.memory_space<vmem>>, %arg5: memref<1x112x128xbf16, #tpu.memory_space<vmem>>, %arg6: memref<1x2x128xf32, #tpu.memory_space<vmem>>, %arg7: memref<1x72x128xbf16, #tpu.memory_space<vmem>>, %arg8: memref<1x2x128xf32, #tpu.memory_space<vmem>>) attributes {dimension_semantics = [#tpu.dimension_semantics<parallel>], iteration_bounds = array<i64: 2>, scalar_prefetch = 0 : i64, scratch_operands = 0 : i64, tpu.core_type = #tpu.core_type<tc>, window_params = [{transform_indices = @transform_0, window_bounds = array<i64: 4, 1, 88, 128>}, {pipeline_mode = #tpu.pipeline_mode<synchronous>, transform_indices = @transform_1, window_bounds = array<i64: 9, 128, 128>}, {pipeline_mode = #tpu.pipeline_mode<synchronous>, transform_indices = @transform_2, window_bounds = array<i64: 72, 1>}, {pipeline_mode = #tpu.pipeline_mode<synchronous>, transform_indices = @transform_3, window_bounds = array<i64: 128, 128>}, {transform_indices = @transform_4, window_bounds = array<i64: 1, 112, 128>}, {transform_indices = @transform_5, window_bounds = array<i64: 1, 2, 128>}, {transform_indices = @transform_6, window_bounds = array<i64: 1, 72, 128>}, {transform_indices = @transform_7, window_bounds = array<i64: 1, 2, 128>}]} {
    %c0 = arith.constant 0 : index
    %c0_0 = arith.constant 0 : index
    %0 = vector.load %arg3[%c0, %c0_0] : memref<72x1xf32, #tpu.memory_space<vmem>>, vector<72x1xf32>
    %c0_1 = arith.constant 0 : index
    %c0_2 = arith.constant 0 : index
    %c0_3 = arith.constant 0 : index
    %c0_4 = arith.constant 0 : index
    %1 = vector.load %arg1[%c0_1, %c0_2, %c0_3, %c0_4] : memref<4x1x88x128xbf16, #tpu.memory_space<vmem>>, vector<1x1x72x128xbf16>
    %2 = vector.shape_cast %1 : vector<1x1x72x128xbf16> to vector<72x128xbf16>
    %c0_5 = arith.constant 0 : index
    %c0_6 = arith.constant 0 : index
    %c0_7 = arith.constant 0 : index
    %3 = vector.load %arg2[%c0_5, %c0_6, %c0_7] : memref<9x128x128xbf16, #tpu.memory_space<vmem>>, vector<1x128x128xbf16>
    %4 = vector.shape_cast %3 : vector<1x128x128xbf16> to vector<128x128xbf16>
    %cst = arith.constant dense<0.000000e+00> : vector<72x128xf32>
    %5 = tpu.matmul %2, %4, %cst {dimension_numbers = #tpu.dot_dimension_numbers<[1], [0], [0], [1], [0, 0, 1, 1], [], []>} : vector<72x128xbf16>, vector<128x128xbf16>, vector<72x128xf32> -> vector<72x128xf32>
    %c1 = arith.constant 1 : index
    %c0_8 = arith.constant 0 : index
    %c0_9 = arith.constant 0 : index
    %c0_10 = arith.constant 0 : index
    %6 = vector.load %arg1[%c1, %c0_8, %c0_9, %c0_10] : memref<4x1x88x128xbf16, #tpu.memory_space<vmem>>, vector<1x1x72x128xbf16>
    %7 = vector.shape_cast %6 : vector<1x1x72x128xbf16> to vector<72x128xbf16>
    %c1_11 = arith.constant 1 : index
    %c0_12 = arith.constant 0 : index
    %c0_13 = arith.constant 0 : index
    %8 = vector.load %arg2[%c1_11, %c0_12, %c0_13] : memref<9x128x128xbf16, #tpu.memory_space<vmem>>, vector<1x128x128xbf16>
    %9 = vector.shape_cast %8 : vector<1x128x128xbf16> to vector<128x128xbf16>
    %cst_14 = arith.constant dense<0.000000e+00> : vector<72x128xf32>
    %10 = tpu.matmul %7, %9, %cst_14 {dimension_numbers = #tpu.dot_dimension_numbers<[1], [0], [0], [1], [0, 0, 1, 1], [], []>} : vector<72x128xbf16>, vector<128x128xbf16>, vector<72x128xf32> -> vector<72x128xf32>
    %11 = arith.addf %5, %10 : vector<72x128xf32>
    %c0_15 = arith.constant 0 : index
    %c0_16 = arith.constant 0 : index
    %c1_17 = arith.constant 1 : index
    %c0_18 = arith.constant 0 : index
    %12 = vector.load %arg1[%c0_15, %c0_16, %c1_17, %c0_18] : memref<4x1x88x128xbf16, #tpu.memory_space<vmem>>, vector<1x1x72x128xbf16>
    %13 = vector.shape_cast %12 : vector<1x1x72x128xbf16> to vector<72x128xbf16>
    %c2 = arith.constant 2 : index
    %c0_19 = arith.constant 0 : index
    %c0_20 = arith.constant 0 : index
    %14 = vector.load %arg2[%c2, %c0_19, %c0_20] : memref<9x128x128xbf16, #tpu.memory_space<vmem>>, vector<1x128x128xbf16>
    %15 = vector.shape_cast %14 : vector<1x128x128xbf16> to vector<128x128xbf16>
    %cst_21 = arith.constant dense<0.000000e+00> : vector<72x128xf32>
    %16 = tpu.matmul %13, %15, %cst_21 {dimension_numbers = #tpu.dot_dimension_numbers<[1], [0], [0], [1], [0, 0, 1, 1], [], []>} : vector<72x128xbf16>, vector<128x128xbf16>, vector<72x128xf32> -> vector<72x128xf32>
    %17 = arith.addf %11, %16 : vector<72x128xf32>
    %c2_22 = arith.constant 2 : index
    %c0_23 = arith.constant 0 : index
    %c0_24 = arith.constant 0 : index
    %c0_25 = arith.constant 0 : index
    %18 = vector.load %arg1[%c2_22, %c0_23, %c0_24, %c0_25] : memref<4x1x88x128xbf16, #tpu.memory_space<vmem>>, vector<1x1x72x128xbf16>
    %19 = vector.shape_cast %18 : vector<1x1x72x128xbf16> to vector<72x128xbf16>
    %c3 = arith.constant 3 : index
    %c0_26 = arith.constant 0 : index
    %c0_27 = arith.constant 0 : index
    %20 = vector.load %arg2[%c3, %c0_26, %c0_27] : memref<9x128x128xbf16, #tpu.memory_space<vmem>>, vector<1x128x128xbf16>
    %21 = vector.shape_cast %20 : vector<1x128x128xbf16> to vector<128x128xbf16>
    %cst_28 = arith.constant dense<0.000000e+00> : vector<72x128xf32>
    %22 = tpu.matmul %19, %21, %cst_28 {dimension_numbers = #tpu.dot_dimension_numbers<[1], [0], [0], [1], [0, 0, 1, 1], [], []>} : vector<72x128xbf16>, vector<128x128xbf16>, vector<72x128xf32> -> vector<72x128xf32>
    %23 = arith.addf %17, %22 : vector<72x128xf32>
    %c3_29 = arith.constant 3 : index
    %c0_30 = arith.constant 0 : index
    %c0_31 = arith.constant 0 : index
    %c0_32 = arith.constant 0 : index
    %24 = vector.load %arg1[%c3_29, %c0_30, %c0_31, %c0_32] : memref<4x1x88x128xbf16, #tpu.memory_space<vmem>>, vector<1x1x72x128xbf16>
    %25 = vector.shape_cast %24 : vector<1x1x72x128xbf16> to vector<72x128xbf16>
    %c4 = arith.constant 4 : index
    %c0_33 = arith.constant 0 : index
    %c0_34 = arith.constant 0 : index
    %26 = vector.load %arg2[%c4, %c0_33, %c0_34] : memref<9x128x128xbf16, #tpu.memory_space<vmem>>, vector<1x128x128xbf16>
    %27 = vector.shape_cast %26 : vector<1x128x128xbf16> to vector<128x128xbf16>
    %cst_35 = arith.constant dense<0.000000e+00> : vector<72x128xf32>
    %28 = tpu.matmul %25, %27, %cst_35 {dimension_numbers = #tpu.dot_dimension_numbers<[1], [0], [0], [1], [0, 0, 1, 1], [], []>} : vector<72x128xbf16>, vector<128x128xbf16>, vector<72x128xf32> -> vector<72x128xf32>
    %29 = arith.addf %23, %28 : vector<72x128xf32>
    %c2_36 = arith.constant 2 : index
    %c0_37 = arith.constant 0 : index
    %c1_38 = arith.constant 1 : index
    %c0_39 = arith.constant 0 : index
    %30 = vector.load %arg1[%c2_36, %c0_37, %c1_38, %c0_39] : memref<4x1x88x128xbf16, #tpu.memory_space<vmem>>, vector<1x1x72x128xbf16>
    %31 = vector.shape_cast %30 : vector<1x1x72x128xbf16> to vector<72x128xbf16>
    %c5 = arith.constant 5 : index
    %c0_40 = arith.constant 0 : index
    %c0_41 = arith.constant 0 : index
    %32 = vector.load %arg2[%c5, %c0_40, %c0_41] : memref<9x128x128xbf16, #tpu.memory_space<vmem>>, vector<1x128x128xbf16>
    %33 = vector.shape_cast %32 : vector<1x128x128xbf16> to vector<128x128xbf16>
    %cst_42 = arith.constant dense<0.000000e+00> : vector<72x128xf32>
    %34 = tpu.matmul %31, %33, %cst_42 {dimension_numbers = #tpu.dot_dimension_numbers<[1], [0], [0], [1], [0, 0, 1, 1], [], []>} : vector<72x128xbf16>, vector<128x128xbf16>, vector<72x128xf32> -> vector<72x128xf32>
    %35 = arith.addf %29, %34 : vector<72x128xf32>
    %c0_43 = arith.constant 0 : index
    %c0_44 = arith.constant 0 : index
    %c9 = arith.constant 9 : index
    %c0_45 = arith.constant 0 : index
    %36 = vector.load %arg1[%c0_43, %c0_44, %c9, %c0_45] : memref<4x1x88x128xbf16, #tpu.memory_space<vmem>>, vector<1x1x72x128xbf16>
    %37 = vector.shape_cast %36 : vector<1x1x72x128xbf16> to vector<72x128xbf16>
    %c6 = arith.constant 6 : index
    %c0_46 = arith.constant 0 : index
    %c0_47 = arith.constant 0 : index
    %38 = vector.load %arg2[%c6, %c0_46, %c0_47] : memref<9x128x128xbf16, #tpu.memory_space<vmem>>, vector<1x128x128xbf16>
    %39 = vector.shape_cast %38 : vector<1x128x128xbf16> to vector<128x128xbf16>
    %cst_48 = arith.constant dense<0.000000e+00> : vector<72x128xf32>
    %40 = tpu.matmul %37, %39, %cst_48 {dimension_numbers = #tpu.dot_dimension_numbers<[1], [0], [0], [1], [0, 0, 1, 1], [], []>} : vector<72x128xbf16>, vector<128x128xbf16>, vector<72x128xf32> -> vector<72x128xf32>
    %41 = arith.addf %35, %40 : vector<72x128xf32>
    %c1_49 = arith.constant 1 : index
    %c0_50 = arith.constant 0 : index
    %c9_51 = arith.constant 9 : index
    %c0_52 = arith.constant 0 : index
    %42 = vector.load %arg1[%c1_49, %c0_50, %c9_51, %c0_52] : memref<4x1x88x128xbf16, #tpu.memory_space<vmem>>, vector<1x1x72x128xbf16>
    %43 = vector.shape_cast %42 : vector<1x1x72x128xbf16> to vector<72x128xbf16>
    %c7 = arith.constant 7 : index
    %c0_53 = arith.constant 0 : index
    %c0_54 = arith.constant 0 : index
    %44 = vector.load %arg2[%c7, %c0_53, %c0_54] : memref<9x128x128xbf16, #tpu.memory_space<vmem>>, vector<1x128x128xbf16>
    %45 = vector.shape_cast %44 : vector<1x128x128xbf16> to vector<128x128xbf16>
    %cst_55 = arith.constant dense<0.000000e+00> : vector<72x128xf32>
    %46 = tpu.matmul %43, %45, %cst_55 {dimension_numbers = #tpu.dot_dimension_numbers<[1], [0], [0], [1], [0, 0, 1, 1], [], []>} : vector<72x128xbf16>, vector<128x128xbf16>, vector<72x128xf32> -> vector<72x128xf32>
    %47 = arith.addf %41, %46 : vector<72x128xf32>
    %c0_56 = arith.constant 0 : index
    %c0_57 = arith.constant 0 : index
    %c10 = arith.constant 10 : index
    %c0_58 = arith.constant 0 : index
    %48 = vector.load %arg1[%c0_56, %c0_57, %c10, %c0_58] : memref<4x1x88x128xbf16, #tpu.memory_space<vmem>>, vector<1x1x72x128xbf16>
    %49 = vector.shape_cast %48 : vector<1x1x72x128xbf16> to vector<72x128xbf16>
    %c8 = arith.constant 8 : index
    %c0_59 = arith.constant 0 : index
    %c0_60 = arith.constant 0 : index
    %50 = vector.load %arg2[%c8, %c0_59, %c0_60] : memref<9x128x128xbf16, #tpu.memory_space<vmem>>, vector<1x128x128xbf16>
    %51 = vector.shape_cast %50 : vector<1x128x128xbf16> to vector<128x128xbf16>
    %cst_61 = arith.constant dense<0.000000e+00> : vector<72x128xf32>
    %52 = tpu.matmul %49, %51, %cst_61 {dimension_numbers = #tpu.dot_dimension_numbers<[1], [0], [0], [1], [0, 0, 1, 1], [], []>} : vector<72x128xbf16>, vector<128x128xbf16>, vector<72x128xf32> -> vector<72x128xf32>
    %53 = arith.addf %47, %52 : vector<72x128xf32>
    %cst_62 = arith.constant 0.000000e+00 : bf16
    %54 = vector.broadcast %cst_62 : bf16 to vector<16x128xbf16>
    %c0_63 = arith.constant 0 : index
    %c0_64 = arith.constant 0 : index
    %c0_65 = arith.constant 0 : index
    %55 = vector.load %arg5[%c0_63, %c0_64, %c0_65] : memref<1x112x128xbf16, #tpu.memory_space<vmem>>, vector<1x16x128xbf16>
    %56 = vector.shape_cast %55 : vector<1x16x128xbf16> to vector<16x128xbf16>
    %57 = vector.shape_cast %54 : vector<16x128xbf16> to vector<1x16x128xbf16>
    tpu.vector_store %arg5[%c0_63, %c0_64, %c0_65], %57 {strides = array<i32>} : memref<1x112x128xbf16, #tpu.memory_space<vmem>>, vector<1x16x128xbf16>,
    %cst_66 = arith.constant 0.000000e+00 : bf16
    %58 = vector.broadcast %cst_66 : bf16 to vector<24x128xbf16>
    %c0_67 = arith.constant 0 : index
    %c88 = arith.constant 88 : index
    %c0_68 = arith.constant 0 : index
    %59 = vector.load %arg5[%c0_67, %c88, %c0_68] : memref<1x112x128xbf16, #tpu.memory_space<vmem>>, vector<1x24x128xbf16>
    %60 = vector.shape_cast %59 : vector<1x24x128xbf16> to vector<24x128xbf16>
    %61 = vector.shape_cast %58 : vector<24x128xbf16> to vector<1x24x128xbf16>
    tpu.vector_store %arg5[%c0_67, %c88, %c0_68], %61 {strides = array<i32>} : memref<1x112x128xbf16, #tpu.memory_space<vmem>>, vector<1x24x128xbf16>,
    %62 = arith.truncf %53 : vector<72x128xf32> to vector<72x128xbf16>
    %c0_69 = arith.constant 0 : index
    %c16 = arith.constant 16 : index
    %c0_70 = arith.constant 0 : index
    %63 = vector.load %arg5[%c0_69, %c16, %c0_70] : memref<1x112x128xbf16, #tpu.memory_space<vmem>>, vector<1x72x128xbf16>
    %64 = vector.shape_cast %63 : vector<1x72x128xbf16> to vector<72x128xbf16>
    %65 = vector.shape_cast %62 : vector<72x128xbf16> to vector<1x72x128xbf16>
    tpu.vector_store %arg5[%c0_69, %c16, %c0_70], %65 {strides = array<i32>} : memref<1x112x128xbf16, #tpu.memory_space<vmem>>, vector<1x72x128xbf16>,
    %66 = vector.broadcast %0 : vector<72x1xf32> to vector<72x128xf32>
    %67 = arith.mulf %53, %66 : vector<72x128xf32>
    %cst_71 = arith.constant dense<0.000000e+00> : vector<128xf32>
    %68 = vector.multi_reduction <add>, %67, %cst_71 [0] : vector<72x128xf32> to vector<128xf32>
    %69 = vector.shape_cast %68 : vector<128xf32> to vector<1x128xf32>
    %c0_72 = arith.constant 0 : index
    %c0_73 = arith.constant 0 : index
    %c0_74 = arith.constant 0 : index
    %70 = vector.load %arg6[%c0_72, %c0_73, %c0_74] : memref<1x2x128xf32, #tpu.memory_space<vmem>>, vector<1x1x128xf32>
    %71 = vector.shape_cast %70 : vector<1x1x128xf32> to vector<1x128xf32>
    %72 = vector.shape_cast %69 : vector<1x128xf32> to vector<1x1x128xf32>
    tpu.vector_store %arg6[%c0_72, %c0_73, %c0_74], %72 {strides = array<i32>} : memref<1x2x128xf32, #tpu.memory_space<vmem>>, vector<1x1x128xf32>,
    %73 = arith.mulf %67, %53 : vector<72x128xf32>
    %cst_75 = arith.constant dense<0.000000e+00> : vector<128xf32>
    %74 = vector.multi_reduction <add>, %73, %cst_75 [0] : vector<72x128xf32> to vector<128xf32>
    %75 = vector.shape_cast %74 : vector<128xf32> to vector<1x128xf32>
    %c0_76 = arith.constant 0 : index
    %c1_77 = arith.constant 1 : index
    %c0_78 = arith.constant 0 : index
    %76 = vector.load %arg6[%c0_76, %c1_77, %c0_78] : memref<1x2x128xf32, #tpu.memory_space<vmem>>, vector<1x1x128xf32>
    %77 = vector.shape_cast %76 : vector<1x1x128xf32> to vector<1x128xf32>
    %78 = vector.shape_cast %75 : vector<1x128xf32> to vector<1x1x128xf32>
    tpu.vector_store %arg6[%c0_76, %c1_77, %c0_78], %78 {strides = array<i32>} : memref<1x2x128xf32, #tpu.memory_space<vmem>>, vector<1x1x128xf32>,
    %c3_79 = arith.constant 3 : index
    %c0_80 = arith.constant 0 : index
    %c0_81 = arith.constant 0 : index
    %c0_82 = arith.constant 0 : index
    %79 = vector.load %arg1[%c3_79, %c0_80, %c0_81, %c0_82] : memref<4x1x88x128xbf16, #tpu.memory_space<vmem>>, vector<1x1x72x128xbf16>
    %80 = vector.shape_cast %79 : vector<1x1x72x128xbf16> to vector<72x128xbf16>
    %c0_83 = arith.constant 0 : index
    %c0_84 = arith.constant 0 : index
    %81 = vector.load %arg4[%c0_83, %c0_84] : memref<128x128xbf16, #tpu.memory_space<vmem>>, vector<128x128xbf16>
    %cst_85 = arith.constant dense<0.000000e+00> : vector<72x128xf32>
    %82 = tpu.matmul %80, %81, %cst_85 {dimension_numbers = #tpu.dot_dimension_numbers<[1], [0], [0], [1], [0, 0, 1, 1], [], []>} : vector<72x128xbf16>, vector<128x128xbf16>, vector<72x128xf32> -> vector<72x128xf32>
    %83 = arith.truncf %82 : vector<72x128xf32> to vector<72x128xbf16>
    %c0_86 = arith.constant 0 : index
    %c0_87 = arith.constant 0 : index
    %c0_88 = arith.constant 0 : index
    %84 = vector.load %arg7[%c0_86, %c0_87, %c0_88] : memref<1x72x128xbf16, #tpu.memory_space<vmem>>, vector<1x72x128xbf16>
    %85 = vector.shape_cast %84 : vector<1x72x128xbf16> to vector<72x128xbf16>
    %86 = vector.shape_cast %83 : vector<72x128xbf16> to vector<1x72x128xbf16>
    tpu.vector_store %arg7[%c0_86, %c0_87, %c0_88], %86 {strides = array<i32>} : memref<1x72x128xbf16, #tpu.memory_space<vmem>>, vector<1x72x128xbf16>,
    %87 = vector.broadcast %0 : vector<72x1xf32> to vector<72x128xf32>
    %88 = arith.mulf %82, %87 : vector<72x128xf32>
    %cst_89 = arith.constant dense<0.000000e+00> : vector<128xf32>
    %89 = vector.multi_reduction <add>, %88, %cst_89 [0] : vector<72x128xf32> to vector<128xf32>
    %90 = vector.shape_cast %89 : vector<128xf32> to vector<1x128xf32>
    %c0_90 = arith.constant 0 : index
    %c0_91 = arith.constant 0 : index
    %c0_92 = arith.constant 0 : index
    %91 = vector.load %arg8[%c0_90, %c0_91, %c0_92] : memref<1x2x128xf32, #tpu.memory_space<vmem>>, vector<1x1x128xf32>
    %92 = vector.shape_cast %91 : vector<1x1x128xf32> to vector<1x128xf32>
    %93 = vector.shape_cast %90 : vector<1x128xf32> to vector<1x1x128xf32>
    tpu.vector_store %arg8[%c0_90, %c0_91, %c0_92], %93 {strides = array<i32>} : memref<1x2x128xf32, #tpu.memory_space<vmem>>, vector<1x1x128xf32>,
    %94 = arith.mulf %88, %82 : vector<72x128xf32>
    %cst_93 = arith.constant dense<0.000000e+00> : vector<128xf32>
    %95 = vector.multi_reduction <add>, %94, %cst_93 [0] : vector<72x128xf32> to vector<128xf32>
    %96 = vector.shape_cast %95 : vector<128xf32> to vector<1x128xf32>
    %c0_94 = arith.constant 0 : index
    %c1_95 = arith.constant 1 : index
    %c0_96 = arith.constant 0 : index
    %97 = vector.load %arg8[%c0_94, %c1_95, %c0_96] : memref<1x2x128xf32, #tpu.memory_space<vmem>>, vector<1x1x128xf32>
    %98 = vector.shape_cast %97 : vector<1x1x128xf32> to vector<1x128xf32>
    %99 = vector.shape_cast %96 : vector<1x128xf32> to vector<1x1x128xf32>
    tpu.vector_store %arg8[%c0_94, %c1_95, %c0_96], %99 {strides = array<i32>} : memref<1x2x128xf32, #tpu.memory_space<vmem>>, vector<1x1x128xf32>,
    return
  }
  func.func @transform_0(%arg0: i32) -> (i32, i32, i32, i32) {
    %c0_i32 = arith.constant 0 : i32
    %c0_i32_0 = arith.constant 0 : i32
    %c0_i32_1 = arith.constant 0 : i32
    %c0_i32_2 = arith.constant 0 : i32
    return %c0_i32, %arg0, %c0_i32_0, %c0_i32_1 : i32, i32, i32, i32
  }
  func.func @transform_1(%arg0: i32) -> (i32, i32, i32) {
    %c0_i32 = arith.constant 0 : i32
    %c0_i32_0 = arith.constant 0 : i32
    %c0_i32_1 = arith.constant 0 : i32
    %c0_i32_2 = arith.constant 0 : i32
    return %c0_i32, %c0_i32_0, %c0_i32_1 : i32, i32, i32
  }
  func.func @transform_2(%arg0: i32) -> (i32, i32) {
    %c0_i32 = arith.constant 0 : i32
    %c0_i32_0 = arith.constant 0 : i32
    %c0_i32_1 = arith.constant 0 : i32
    return %c0_i32, %c0_i32_0 : i32, i32
  }
  func.func @transform_3(%arg0: i32) -> (i32, i32) {
    %c0_i32 = arith.constant 0 : i32
    %c0_i32_0 = arith.constant 0 : i32
    %c0_i32_1 = arith.constant 0 : i32
    return %c0_i32, %c0_i32_0 : i32, i32
  }
  func.func @transform_4(%arg0: i32) -> (i32, i32, i32) {
    %c0_i32 = arith.constant 0 : i32
    %c0_i32_0 = arith.constant 0 : i32
    %c0_i32_1 = arith.constant 0 : i32
    return %arg0, %c0_i32, %c0_i32_0 : i32, i32, i32
  }
  func.func @transform_5(%arg0: i32) -> (i32, i32, i32) {
    %c0_i32 = arith.constant 0 : i32
    %c0_i32_0 = arith.constant 0 : i32
    %c0_i32_1 = arith.constant 0 : i32
    return %arg0, %c0_i32, %c0_i32_0 : i32, i32, i32
  }
  func.func @transform_6(%arg0: i32) -> (i32, i32, i32) {
    %c0_i32 = arith.constant 0 : i32
    %c0_i32_0 = arith.constant 0 : i32
    %c0_i32_1 = arith.constant 0 : i32
    return %arg0, %c0_i32, %c0_i32_0 : i32, i32, i32
  }
  func.func @transform_7(%arg0: i32) -> (i32, i32, i32) {
    %c0_i32 = arith.constant 0 : i32
    %c0_i32_0 = arith.constant 0 : i32
    %c0_i32_1 = arith.constant 0 : i32
    return %arg0, %c0_i32, %c0_i32_0 : i32, i32, i32
  }
}

module attributes {stable_mosaic.version = 11 : i64} {
  func.func @_conv2_kernel(%arg0: i32, %arg1: memref<1x112x128xbf16, #tpu.memory_space<vmem>>, %arg2: memref<9x128x128xbf16, #tpu.memory_space<vmem>>, %arg3: memref<112x1xf32, #tpu.memory_space<vmem>>, %arg4: memref<72x1xf32, #tpu.memory_space<vmem>>, %arg5: memref<2x128xf32, #tpu.memory_space<vmem>>, %arg6: memref<1x128xf32, #tpu.memory_space<vmem>>, %arg7: memref<1x128xf32, #tpu.memory_space<vmem>>, %arg8: memref<1x72x128xbf16, #tpu.memory_space<vmem>>, %arg9: memref<1x2x128xf32, #tpu.memory_space<vmem>>, %arg10: memref<112x128xbf16, #tpu.memory_space<vmem>>) attributes {dimension_semantics = [#tpu.dimension_semantics<parallel>], iteration_bounds = array<i64: 2>, scalar_prefetch = 0 : i64, scratch_operands = 1 : i64, tpu.core_type = #tpu.core_type<tc>, window_params = [{transform_indices = @transform_0, window_bounds = array<i64: 1, 112, 128>}, {pipeline_mode = #tpu.pipeline_mode<synchronous>, transform_indices = @transform_1, window_bounds = array<i64: 9, 128, 128>}, {pipeline_mode = #tpu.pipeline_mode<synchronous>, transform_indices = @transform_2, window_bounds = array<i64: 112, 1>}, {pipeline_mode = #tpu.pipeline_mode<synchronous>, transform_indices = @transform_3, window_bounds = array<i64: 72, 1>}, {pipeline_mode = #tpu.pipeline_mode<synchronous>, transform_indices = @transform_4, window_bounds = array<i64: 2, 128>}, {pipeline_mode = #tpu.pipeline_mode<synchronous>, transform_indices = @transform_5, window_bounds = array<i64: 1, 128>}, {pipeline_mode = #tpu.pipeline_mode<synchronous>, transform_indices = @transform_6, window_bounds = array<i64: 1, 128>}, {transform_indices = @transform_7, window_bounds = array<i64: 1, 72, 128>}, {transform_indices = @transform_8, window_bounds = array<i64: 1, 2, 128>}]} {
    %c0 = arith.constant 0 : index
    %c0_0 = arith.constant 0 : index
    %0 = vector.load %arg5[%c0, %c0_0] : memref<2x128xf32, #tpu.memory_space<vmem>>, vector<1x128xf32>
    %cst = arith.constant 7.812500e-03 : f32
    %1 = vector.broadcast %cst : f32 to vector<1x128xf32>
    %2 = arith.mulf %0, %1 : vector<1x128xf32>
    %c1 = arith.constant 1 : index
    %c0_1 = arith.constant 0 : index
    %3 = vector.load %arg5[%c1, %c0_1] : memref<2x128xf32, #tpu.memory_space<vmem>>, vector<1x128xf32>
    %cst_2 = arith.constant 7.812500e-03 : f32
    %4 = vector.broadcast %cst_2 : f32 to vector<1x128xf32>
    %5 = arith.mulf %3, %4 : vector<1x128xf32>
    %6 = arith.mulf %2, %2 : vector<1x128xf32>
    %7 = arith.subf %5, %6 : vector<1x128xf32>
    %cst_3 = arith.constant 0.000000e+00 : f32
    %8 = vector.broadcast %cst_3 : f32 to vector<1x128xf32>
    %9 = arith.maximumf %7, %8 : vector<1x128xf32>
    %c0_4 = arith.constant 0 : index
    %c0_5 = arith.constant 0 : index
    %10 = vector.load %arg6[%c0_4, %c0_5] : memref<1x128xf32, #tpu.memory_space<vmem>>, vector<1x128xf32>
    %cst_6 = arith.constant 9.99999974E-6 : f32
    %11 = vector.broadcast %cst_6 : f32 to vector<1x128xf32>
    %12 = arith.addf %9, %11 : vector<1x128xf32>
    %13 = math.rsqrt %12 : vector<1x128xf32>
    %14 = arith.mulf %10, %13 : vector<1x128xf32>
    %c0_7 = arith.constant 0 : index
    %c0_8 = arith.constant 0 : index
    %15 = vector.load %arg7[%c0_7, %c0_8] : memref<1x128xf32, #tpu.memory_space<vmem>>, vector<1x128xf32>
    %16 = arith.mulf %2, %14 : vector<1x128xf32>
    %17 = arith.subf %15, %16 : vector<1x128xf32>
    %c0_9 = arith.constant 0 : index
    %c0_10 = arith.constant 0 : index
    %c0_11 = arith.constant 0 : index
    %18 = vector.load %arg1[%c0_9, %c0_10, %c0_11] : memref<1x112x128xbf16, #tpu.memory_space<vmem>>, vector<1x112x128xbf16>
    %19 = vector.shape_cast %18 : vector<1x112x128xbf16> to vector<112x128xbf16>
    %20 = arith.extf %19 : vector<112x128xbf16> to vector<112x128xf32>
    %21 = vector.broadcast %14 : vector<1x128xf32> to vector<112x128xf32>
    %22 = arith.mulf %20, %21 : vector<112x128xf32>
    %23 = vector.broadcast %17 : vector<1x128xf32> to vector<112x128xf32>
    %24 = arith.addf %22, %23 : vector<112x128xf32>
    %cst_12 = arith.constant 0.000000e+00 : f32
    %25 = vector.broadcast %cst_12 : f32 to vector<112x128xf32>
    %26 = arith.maximumf %24, %25 : vector<112x128xf32>
    %c0_13 = arith.constant 0 : index
    %c0_14 = arith.constant 0 : index
    %27 = vector.load %arg3[%c0_13, %c0_14] : memref<112x1xf32, #tpu.memory_space<vmem>>, vector<112x1xf32>
    %28 = vector.broadcast %27 : vector<112x1xf32> to vector<112x128xf32>
    %29 = arith.mulf %26, %28 : vector<112x128xf32>
    %30 = arith.truncf %29 : vector<112x128xf32> to vector<112x128xbf16>
    %c0_15 = arith.constant 0 : index
    %c0_16 = arith.constant 0 : index
    %31 = vector.load %arg10[%c0_15, %c0_16] : memref<112x128xbf16, #tpu.memory_space<vmem>>, vector<112x128xbf16>
    tpu.vector_store %arg10[%c0_15, %c0_16], %30 {strides = array<i32>} : memref<112x128xbf16, #tpu.memory_space<vmem>>, vector<112x128xbf16>,
    %c6 = arith.constant 6 : index
    %c0_17 = arith.constant 0 : index
    %32 = vector.load %arg10[%c6, %c0_17] : memref<112x128xbf16, #tpu.memory_space<vmem>>, vector<72x128xbf16>
    %c0_18 = arith.constant 0 : index
    %c0_19 = arith.constant 0 : index
    %c0_20 = arith.constant 0 : index
    %33 = vector.load %arg2[%c0_18, %c0_19, %c0_20] : memref<9x128x128xbf16, #tpu.memory_space<vmem>>, vector<1x128x128xbf16>
    %34 = vector.shape_cast %33 : vector<1x128x128xbf16> to vector<128x128xbf16>
    %cst_21 = arith.constant dense<0.000000e+00> : vector<72x128xf32>
    %35 = tpu.matmul %32, %34, %cst_21 {dimension_numbers = #tpu.dot_dimension_numbers<[1], [0], [0], [1], [0, 0, 1, 1], [], []>} : vector<72x128xbf16>, vector<128x128xbf16>, vector<72x128xf32> -> vector<72x128xf32>
    %c7 = arith.constant 7 : index
    %c0_22 = arith.constant 0 : index
    %36 = vector.load %arg10[%c7, %c0_22] : memref<112x128xbf16, #tpu.memory_space<vmem>>, vector<72x128xbf16>
    %c1_23 = arith.constant 1 : index
    %c0_24 = arith.constant 0 : index
    %c0_25 = arith.constant 0 : index
    %37 = vector.load %arg2[%c1_23, %c0_24, %c0_25] : memref<9x128x128xbf16, #tpu.memory_space<vmem>>, vector<1x128x128xbf16>
    %38 = vector.shape_cast %37 : vector<1x128x128xbf16> to vector<128x128xbf16>
    %cst_26 = arith.constant dense<0.000000e+00> : vector<72x128xf32>
    %39 = tpu.matmul %36, %38, %cst_26 {dimension_numbers = #tpu.dot_dimension_numbers<[1], [0], [0], [1], [0, 0, 1, 1], [], []>} : vector<72x128xbf16>, vector<128x128xbf16>, vector<72x128xf32> -> vector<72x128xf32>
    %40 = arith.addf %35, %39 : vector<72x128xf32>
    %c8 = arith.constant 8 : index
    %c0_27 = arith.constant 0 : index
    %41 = vector.load %arg10[%c8, %c0_27] : memref<112x128xbf16, #tpu.memory_space<vmem>>, vector<72x128xbf16>
    %c2 = arith.constant 2 : index
    %c0_28 = arith.constant 0 : index
    %c0_29 = arith.constant 0 : index
    %42 = vector.load %arg2[%c2, %c0_28, %c0_29] : memref<9x128x128xbf16, #tpu.memory_space<vmem>>, vector<1x128x128xbf16>
    %43 = vector.shape_cast %42 : vector<1x128x128xbf16> to vector<128x128xbf16>
    %cst_30 = arith.constant dense<0.000000e+00> : vector<72x128xf32>
    %44 = tpu.matmul %41, %43, %cst_30 {dimension_numbers = #tpu.dot_dimension_numbers<[1], [0], [0], [1], [0, 0, 1, 1], [], []>} : vector<72x128xbf16>, vector<128x128xbf16>, vector<72x128xf32> -> vector<72x128xf32>
    %45 = arith.addf %40, %44 : vector<72x128xf32>
    %c15 = arith.constant 15 : index
    %c0_31 = arith.constant 0 : index
    %46 = vector.load %arg10[%c15, %c0_31] : memref<112x128xbf16, #tpu.memory_space<vmem>>, vector<72x128xbf16>
    %c3 = arith.constant 3 : index
    %c0_32 = arith.constant 0 : index
    %c0_33 = arith.constant 0 : index
    %47 = vector.load %arg2[%c3, %c0_32, %c0_33] : memref<9x128x128xbf16, #tpu.memory_space<vmem>>, vector<1x128x128xbf16>
    %48 = vector.shape_cast %47 : vector<1x128x128xbf16> to vector<128x128xbf16>
    %cst_34 = arith.constant dense<0.000000e+00> : vector<72x128xf32>
    %49 = tpu.matmul %46, %48, %cst_34 {dimension_numbers = #tpu.dot_dimension_numbers<[1], [0], [0], [1], [0, 0, 1, 1], [], []>} : vector<72x128xbf16>, vector<128x128xbf16>, vector<72x128xf32> -> vector<72x128xf32>
    %50 = arith.addf %45, %49 : vector<72x128xf32>
    %c16 = arith.constant 16 : index
    %c0_35 = arith.constant 0 : index
    %51 = vector.load %arg10[%c16, %c0_35] : memref<112x128xbf16, #tpu.memory_space<vmem>>, vector<72x128xbf16>
    %c4 = arith.constant 4 : index
    %c0_36 = arith.constant 0 : index
    %c0_37 = arith.constant 0 : index
    %52 = vector.load %arg2[%c4, %c0_36, %c0_37] : memref<9x128x128xbf16, #tpu.memory_space<vmem>>, vector<1x128x128xbf16>
    %53 = vector.shape_cast %52 : vector<1x128x128xbf16> to vector<128x128xbf16>
    %cst_38 = arith.constant dense<0.000000e+00> : vector<72x128xf32>
    %54 = tpu.matmul %51, %53, %cst_38 {dimension_numbers = #tpu.dot_dimension_numbers<[1], [0], [0], [1], [0, 0, 1, 1], [], []>} : vector<72x128xbf16>, vector<128x128xbf16>, vector<72x128xf32> -> vector<72x128xf32>
    %55 = arith.addf %50, %54 : vector<72x128xf32>
    %c17 = arith.constant 17 : index
    %c0_39 = arith.constant 0 : index
    %56 = vector.load %arg10[%c17, %c0_39] : memref<112x128xbf16, #tpu.memory_space<vmem>>, vector<72x128xbf16>
    %c5 = arith.constant 5 : index
    %c0_40 = arith.constant 0 : index
    %c0_41 = arith.constant 0 : index
    %57 = vector.load %arg2[%c5, %c0_40, %c0_41] : memref<9x128x128xbf16, #tpu.memory_space<vmem>>, vector<1x128x128xbf16>
    %58 = vector.shape_cast %57 : vector<1x128x128xbf16> to vector<128x128xbf16>
    %cst_42 = arith.constant dense<0.000000e+00> : vector<72x128xf32>
    %59 = tpu.matmul %56, %58, %cst_42 {dimension_numbers = #tpu.dot_dimension_numbers<[1], [0], [0], [1], [0, 0, 1, 1], [], []>} : vector<72x128xbf16>, vector<128x128xbf16>, vector<72x128xf32> -> vector<72x128xf32>
    %60 = arith.addf %55, %59 : vector<72x128xf32>
    %c24 = arith.constant 24 : index
    %c0_43 = arith.constant 0 : index
    %61 = vector.load %arg10[%c24, %c0_43] : memref<112x128xbf16, #tpu.memory_space<vmem>>, vector<72x128xbf16>
    %c6_44 = arith.constant 6 : index
    %c0_45 = arith.constant 0 : index
    %c0_46 = arith.constant 0 : index
    %62 = vector.load %arg2[%c6_44, %c0_45, %c0_46] : memref<9x128x128xbf16, #tpu.memory_space<vmem>>, vector<1x128x128xbf16>
    %63 = vector.shape_cast %62 : vector<1x128x128xbf16> to vector<128x128xbf16>
    %cst_47 = arith.constant dense<0.000000e+00> : vector<72x128xf32>
    %64 = tpu.matmul %61, %63, %cst_47 {dimension_numbers = #tpu.dot_dimension_numbers<[1], [0], [0], [1], [0, 0, 1, 1], [], []>} : vector<72x128xbf16>, vector<128x128xbf16>, vector<72x128xf32> -> vector<72x128xf32>
    %65 = arith.addf %60, %64 : vector<72x128xf32>
    %c25 = arith.constant 25 : index
    %c0_48 = arith.constant 0 : index
    %66 = vector.load %arg10[%c25, %c0_48] : memref<112x128xbf16, #tpu.memory_space<vmem>>, vector<72x128xbf16>
    %c7_49 = arith.constant 7 : index
    %c0_50 = arith.constant 0 : index
    %c0_51 = arith.constant 0 : index
    %67 = vector.load %arg2[%c7_49, %c0_50, %c0_51] : memref<9x128x128xbf16, #tpu.memory_space<vmem>>, vector<1x128x128xbf16>
    %68 = vector.shape_cast %67 : vector<1x128x128xbf16> to vector<128x128xbf16>
    %cst_52 = arith.constant dense<0.000000e+00> : vector<72x128xf32>
    %69 = tpu.matmul %66, %68, %cst_52 {dimension_numbers = #tpu.dot_dimension_numbers<[1], [0], [0], [1], [0, 0, 1, 1], [], []>} : vector<72x128xbf16>, vector<128x128xbf16>, vector<72x128xf32> -> vector<72x128xf32>
    %70 = arith.addf %65, %69 : vector<72x128xf32>
    %c26 = arith.constant 26 : index
    %c0_53 = arith.constant 0 : index
    %71 = vector.load %arg10[%c26, %c0_53] : memref<112x128xbf16, #tpu.memory_space<vmem>>, vector<72x128xbf16>
    %c8_54 = arith.constant 8 : index
    %c0_55 = arith.constant 0 : index
    %c0_56 = arith.constant 0 : index
    %72 = vector.load %arg2[%c8_54, %c0_55, %c0_56] : memref<9x128x128xbf16, #tpu.memory_space<vmem>>, vector<1x128x128xbf16>
    %73 = vector.shape_cast %72 : vector<1x128x128xbf16> to vector<128x128xbf16>
    %cst_57 = arith.constant dense<0.000000e+00> : vector<72x128xf32>
    %74 = tpu.matmul %71, %73, %cst_57 {dimension_numbers = #tpu.dot_dimension_numbers<[1], [0], [0], [1], [0, 0, 1, 1], [], []>} : vector<72x128xbf16>, vector<128x128xbf16>, vector<72x128xf32> -> vector<72x128xf32>
    %75 = arith.addf %70, %74 : vector<72x128xf32>
    %76 = arith.truncf %75 : vector<72x128xf32> to vector<72x128xbf16>
    %c0_58 = arith.constant 0 : index
    %c0_59 = arith.constant 0 : index
    %c0_60 = arith.constant 0 : index
    %77 = vector.load %arg8[%c0_58, %c0_59, %c0_60] : memref<1x72x128xbf16, #tpu.memory_space<vmem>>, vector<1x72x128xbf16>
    %78 = vector.shape_cast %77 : vector<1x72x128xbf16> to vector<72x128xbf16>
    %79 = vector.shape_cast %76 : vector<72x128xbf16> to vector<1x72x128xbf16>
    tpu.vector_store %arg8[%c0_58, %c0_59, %c0_60], %79 {strides = array<i32>} : memref<1x72x128xbf16, #tpu.memory_space<vmem>>, vector<1x72x128xbf16>,
    %c0_61 = arith.constant 0 : index
    %c0_62 = arith.constant 0 : index
    %80 = vector.load %arg4[%c0_61, %c0_62] : memref<72x1xf32, #tpu.memory_space<vmem>>, vector<72x1xf32>
    %81 = vector.broadcast %80 : vector<72x1xf32> to vector<72x128xf32>
    %82 = arith.mulf %75, %81 : vector<72x128xf32>
    %cst_63 = arith.constant dense<0.000000e+00> : vector<128xf32>
    %83 = vector.multi_reduction <add>, %82, %cst_63 [0] : vector<72x128xf32> to vector<128xf32>
    %84 = vector.shape_cast %83 : vector<128xf32> to vector<1x128xf32>
    %c0_64 = arith.constant 0 : index
    %c0_65 = arith.constant 0 : index
    %c0_66 = arith.constant 0 : index
    %85 = vector.load %arg9[%c0_64, %c0_65, %c0_66] : memref<1x2x128xf32, #tpu.memory_space<vmem>>, vector<1x1x128xf32>
    %86 = vector.shape_cast %85 : vector<1x1x128xf32> to vector<1x128xf32>
    %87 = vector.shape_cast %84 : vector<1x128xf32> to vector<1x1x128xf32>
    tpu.vector_store %arg9[%c0_64, %c0_65, %c0_66], %87 {strides = array<i32>} : memref<1x2x128xf32, #tpu.memory_space<vmem>>, vector<1x1x128xf32>,
    %88 = arith.mulf %82, %75 : vector<72x128xf32>
    %cst_67 = arith.constant dense<0.000000e+00> : vector<128xf32>
    %89 = vector.multi_reduction <add>, %88, %cst_67 [0] : vector<72x128xf32> to vector<128xf32>
    %90 = vector.shape_cast %89 : vector<128xf32> to vector<1x128xf32>
    %c0_68 = arith.constant 0 : index
    %c1_69 = arith.constant 1 : index
    %c0_70 = arith.constant 0 : index
    %91 = vector.load %arg9[%c0_68, %c1_69, %c0_70] : memref<1x2x128xf32, #tpu.memory_space<vmem>>, vector<1x1x128xf32>
    %92 = vector.shape_cast %91 : vector<1x1x128xf32> to vector<1x128xf32>
    %93 = vector.shape_cast %90 : vector<1x128xf32> to vector<1x1x128xf32>
    tpu.vector_store %arg9[%c0_68, %c1_69, %c0_70], %93 {strides = array<i32>} : memref<1x2x128xf32, #tpu.memory_space<vmem>>, vector<1x1x128xf32>,
    return
  }
  func.func @transform_0(%arg0: i32) -> (i32, i32, i32) {
    %c0_i32 = arith.constant 0 : i32
    %c0_i32_0 = arith.constant 0 : i32
    %c0_i32_1 = arith.constant 0 : i32
    return %arg0, %c0_i32, %c0_i32_0 : i32, i32, i32
  }
  func.func @transform_1(%arg0: i32) -> (i32, i32, i32) {
    %c0_i32 = arith.constant 0 : i32
    %c0_i32_0 = arith.constant 0 : i32
    %c0_i32_1 = arith.constant 0 : i32
    %c0_i32_2 = arith.constant 0 : i32
    return %c0_i32, %c0_i32_0, %c0_i32_1 : i32, i32, i32
  }
  func.func @transform_2(%arg0: i32) -> (i32, i32) {
    %c0_i32 = arith.constant 0 : i32
    %c0_i32_0 = arith.constant 0 : i32
    %c0_i32_1 = arith.constant 0 : i32
    return %c0_i32, %c0_i32_0 : i32, i32
  }
  func.func @transform_3(%arg0: i32) -> (i32, i32) {
    %c0_i32 = arith.constant 0 : i32
    %c0_i32_0 = arith.constant 0 : i32
    %c0_i32_1 = arith.constant 0 : i32
    return %c0_i32, %c0_i32_0 : i32, i32
  }
  func.func @transform_4(%arg0: i32) -> (i32, i32) {
    %c0_i32 = arith.constant 0 : i32
    %c0_i32_0 = arith.constant 0 : i32
    %c0_i32_1 = arith.constant 0 : i32
    return %c0_i32, %c0_i32_0 : i32, i32
  }
  func.func @transform_5(%arg0: i32) -> (i32, i32) {
    %c0_i32 = arith.constant 0 : i32
    %c0_i32_0 = arith.constant 0 : i32
    %c0_i32_1 = arith.constant 0 : i32
    return %c0_i32, %c0_i32_0 : i32, i32
  }
  func.func @transform_6(%arg0: i32) -> (i32, i32) {
    %c0_i32 = arith.constant 0 : i32
    %c0_i32_0 = arith.constant 0 : i32
    %c0_i32_1 = arith.constant 0 : i32
    return %c0_i32, %c0_i32_0 : i32, i32
  }
  func.func @transform_7(%arg0: i32) -> (i32, i32, i32) {
    %c0_i32 = arith.constant 0 : i32
    %c0_i32_0 = arith.constant 0 : i32
    %c0_i32_1 = arith.constant 0 : i32
    return %arg0, %c0_i32, %c0_i32_0 : i32, i32, i32
  }
  func.func @transform_8(%arg0: i32) -> (i32, i32, i32) {
    %c0_i32 = arith.constant 0 : i32
    %c0_i32_0 = arith.constant 0 : i32
    %c0_i32_1 = arith.constant 0 : i32
    return %arg0, %c0_i32, %c0_i32_0 : i32, i32, i32
  }
}

module attributes {stable_mosaic.version = 11 : i64} {
  func.func @_tail_proj_kernel(%arg0: i32, %arg1: memref<1x72x128xbf16, #tpu.memory_space<vmem>>, %arg2: memref<1x72x128xbf16, #tpu.memory_space<vmem>>, %arg3: memref<2x128xf32, #tpu.memory_space<vmem>>, %arg4: memref<1x128xf32, #tpu.memory_space<vmem>>, %arg5: memref<1x128xf32, #tpu.memory_space<vmem>>, %arg6: memref<2x128xf32, #tpu.memory_space<vmem>>, %arg7: memref<1x128xf32, #tpu.memory_space<vmem>>, %arg8: memref<1x128xf32, #tpu.memory_space<vmem>>, %arg9: memref<1x72x128xf32, #tpu.memory_space<vmem>>) attributes {dimension_semantics = [#tpu.dimension_semantics<parallel>], iteration_bounds = array<i64: 2>, scalar_prefetch = 0 : i64, scratch_operands = 0 : i64, tpu.core_type = #tpu.core_type<tc>, window_params = [{transform_indices = @transform_0, window_bounds = array<i64: 1, 72, 128>}, {transform_indices = @transform_1, window_bounds = array<i64: 1, 72, 128>}, {pipeline_mode = #tpu.pipeline_mode<synchronous>, transform_indices = @transform_2, window_bounds = array<i64: 2, 128>}, {pipeline_mode = #tpu.pipeline_mode<synchronous>, transform_indices = @transform_3, window_bounds = array<i64: 1, 128>}, {pipeline_mode = #tpu.pipeline_mode<synchronous>, transform_indices = @transform_4, window_bounds = array<i64: 1, 128>}, {pipeline_mode = #tpu.pipeline_mode<synchronous>, transform_indices = @transform_5, window_bounds = array<i64: 2, 128>}, {pipeline_mode = #tpu.pipeline_mode<synchronous>, transform_indices = @transform_6, window_bounds = array<i64: 1, 128>}, {pipeline_mode = #tpu.pipeline_mode<synchronous>, transform_indices = @transform_7, window_bounds = array<i64: 1, 128>}, {transform_indices = @transform_8, window_bounds = array<i64: 1, 72, 128>}]} {
    %c0 = arith.constant 0 : index
    %c0_0 = arith.constant 0 : index
    %0 = vector.load %arg3[%c0, %c0_0] : memref<2x128xf32, #tpu.memory_space<vmem>>, vector<1x128xf32>
    %cst = arith.constant 7.812500e-03 : f32
    %1 = vector.broadcast %cst : f32 to vector<1x128xf32>
    %2 = arith.mulf %0, %1 : vector<1x128xf32>
    %c1 = arith.constant 1 : index
    %c0_1 = arith.constant 0 : index
    %3 = vector.load %arg3[%c1, %c0_1] : memref<2x128xf32, #tpu.memory_space<vmem>>, vector<1x128xf32>
    %cst_2 = arith.constant 7.812500e-03 : f32
    %4 = vector.broadcast %cst_2 : f32 to vector<1x128xf32>
    %5 = arith.mulf %3, %4 : vector<1x128xf32>
    %6 = arith.mulf %2, %2 : vector<1x128xf32>
    %7 = arith.subf %5, %6 : vector<1x128xf32>
    %cst_3 = arith.constant 0.000000e+00 : f32
    %8 = vector.broadcast %cst_3 : f32 to vector<1x128xf32>
    %9 = arith.maximumf %7, %8 : vector<1x128xf32>
    %c0_4 = arith.constant 0 : index
    %c0_5 = arith.constant 0 : index
    %10 = vector.load %arg4[%c0_4, %c0_5] : memref<1x128xf32, #tpu.memory_space<vmem>>, vector<1x128xf32>
    %cst_6 = arith.constant 9.99999974E-6 : f32
    %11 = vector.broadcast %cst_6 : f32 to vector<1x128xf32>
    %12 = arith.addf %9, %11 : vector<1x128xf32>
    %13 = math.rsqrt %12 : vector<1x128xf32>
    %14 = arith.mulf %10, %13 : vector<1x128xf32>
    %c0_7 = arith.constant 0 : index
    %c0_8 = arith.constant 0 : index
    %15 = vector.load %arg5[%c0_7, %c0_8] : memref<1x128xf32, #tpu.memory_space<vmem>>, vector<1x128xf32>
    %16 = arith.mulf %2, %14 : vector<1x128xf32>
    %17 = arith.subf %15, %16 : vector<1x128xf32>
    %c0_9 = arith.constant 0 : index
    %c0_10 = arith.constant 0 : index
    %18 = vector.load %arg6[%c0_9, %c0_10] : memref<2x128xf32, #tpu.memory_space<vmem>>, vector<1x128xf32>
    %cst_11 = arith.constant 7.812500e-03 : f32
    %19 = vector.broadcast %cst_11 : f32 to vector<1x128xf32>
    %20 = arith.mulf %18, %19 : vector<1x128xf32>
    %c1_12 = arith.constant 1 : index
    %c0_13 = arith.constant 0 : index
    %21 = vector.load %arg6[%c1_12, %c0_13] : memref<2x128xf32, #tpu.memory_space<vmem>>, vector<1x128xf32>
    %cst_14 = arith.constant 7.812500e-03 : f32
    %22 = vector.broadcast %cst_14 : f32 to vector<1x128xf32>
    %23 = arith.mulf %21, %22 : vector<1x128xf32>
    %24 = arith.mulf %20, %20 : vector<1x128xf32>
    %25 = arith.subf %23, %24 : vector<1x128xf32>
    %cst_15 = arith.constant 0.000000e+00 : f32
    %26 = vector.broadcast %cst_15 : f32 to vector<1x128xf32>
    %27 = arith.maximumf %25, %26 : vector<1x128xf32>
    %c0_16 = arith.constant 0 : index
    %c0_17 = arith.constant 0 : index
    %28 = vector.load %arg7[%c0_16, %c0_17] : memref<1x128xf32, #tpu.memory_space<vmem>>, vector<1x128xf32>
    %cst_18 = arith.constant 9.99999974E-6 : f32
    %29 = vector.broadcast %cst_18 : f32 to vector<1x128xf32>
    %30 = arith.addf %27, %29 : vector<1x128xf32>
    %31 = math.rsqrt %30 : vector<1x128xf32>
    %32 = arith.mulf %28, %31 : vector<1x128xf32>
    %c0_19 = arith.constant 0 : index
    %c0_20 = arith.constant 0 : index
    %33 = vector.load %arg8[%c0_19, %c0_20] : memref<1x128xf32, #tpu.memory_space<vmem>>, vector<1x128xf32>
    %34 = arith.mulf %20, %32 : vector<1x128xf32>
    %35 = arith.subf %33, %34 : vector<1x128xf32>
    %c0_21 = arith.constant 0 : index
    %c0_22 = arith.constant 0 : index
    %c0_23 = arith.constant 0 : index
    %36 = vector.load %arg1[%c0_21, %c0_22, %c0_23] : memref<1x72x128xbf16, #tpu.memory_space<vmem>>, vector<1x72x128xbf16>
    %37 = vector.shape_cast %36 : vector<1x72x128xbf16> to vector<72x128xbf16>
    %38 = arith.extf %37 : vector<72x128xbf16> to vector<72x128xf32>
    %c0_24 = arith.constant 0 : index
    %c0_25 = arith.constant 0 : index
    %c0_26 = arith.constant 0 : index
    %39 = vector.load %arg2[%c0_24, %c0_25, %c0_26] : memref<1x72x128xbf16, #tpu.memory_space<vmem>>, vector<1x72x128xbf16>
    %40 = vector.shape_cast %39 : vector<1x72x128xbf16> to vector<72x128xbf16>
    %41 = arith.extf %40 : vector<72x128xbf16> to vector<72x128xf32>
    %42 = vector.broadcast %14 : vector<1x128xf32> to vector<72x128xf32>
    %43 = arith.mulf %38, %42 : vector<72x128xf32>
    %44 = vector.broadcast %17 : vector<1x128xf32> to vector<72x128xf32>
    %45 = arith.addf %43, %44 : vector<72x128xf32>
    %46 = vector.broadcast %32 : vector<1x128xf32> to vector<72x128xf32>
    %47 = arith.mulf %41, %46 : vector<72x128xf32>
    %48 = arith.addf %45, %47 : vector<72x128xf32>
    %49 = vector.broadcast %35 : vector<1x128xf32> to vector<72x128xf32>
    %50 = arith.addf %48, %49 : vector<72x128xf32>
    %cst_27 = arith.constant 0.000000e+00 : f32
    %51 = vector.broadcast %cst_27 : f32 to vector<72x128xf32>
    %52 = arith.maximumf %50, %51 : vector<72x128xf32>
    %c0_28 = arith.constant 0 : index
    %c0_29 = arith.constant 0 : index
    %c0_30 = arith.constant 0 : index
    %53 = vector.load %arg9[%c0_28, %c0_29, %c0_30] : memref<1x72x128xf32, #tpu.memory_space<vmem>>, vector<1x72x128xf32>
    %54 = vector.shape_cast %53 : vector<1x72x128xf32> to vector<72x128xf32>
    %55 = vector.shape_cast %52 : vector<72x128xf32> to vector<1x72x128xf32>
    tpu.vector_store %arg9[%c0_28, %c0_29, %c0_30], %55 {strides = array<i32>} : memref<1x72x128xf32, #tpu.memory_space<vmem>>, vector<1x72x128xf32>,
    return
  }
  func.func @transform_0(%arg0: i32) -> (i32, i32, i32) {
    %c0_i32 = arith.constant 0 : i32
    %c0_i32_0 = arith.constant 0 : i32
    %c0_i32_1 = arith.constant 0 : i32
    return %arg0, %c0_i32, %c0_i32_0 : i32, i32, i32
  }
  func.func @transform_1(%arg0: i32) -> (i32, i32, i32) {
    %c0_i32 = arith.constant 0 : i32
    %c0_i32_0 = arith.constant 0 : i32
    %c0_i32_1 = arith.constant 0 : i32
    return %arg0, %c0_i32, %c0_i32_0 : i32, i32, i32
  }
  func.func @transform_2(%arg0: i32) -> (i32, i32) {
    %c0_i32 = arith.constant 0 : i32
    %c0_i32_0 = arith.constant 0 : i32
    %c0_i32_1 = arith.constant 0 : i32
    return %c0_i32, %c0_i32_0 : i32, i32
  }
  func.func @transform_3(%arg0: i32) -> (i32, i32) {
    %c0_i32 = arith.constant 0 : i32
    %c0_i32_0 = arith.constant 0 : i32
    %c0_i32_1 = arith.constant 0 : i32
    return %c0_i32, %c0_i32_0 : i32, i32
  }
  func.func @transform_4(%arg0: i32) -> (i32, i32) {
    %c0_i32 = arith.constant 0 : i32
    %c0_i32_0 = arith.constant 0 : i32
    %c0_i32_1 = arith.constant 0 : i32
    return %c0_i32, %c0_i32_0 : i32, i32
  }
  func.func @transform_5(%arg0: i32) -> (i32, i32) {
    %c0_i32 = arith.constant 0 : i32
    %c0_i32_0 = arith.constant 0 : i32
    %c0_i32_1 = arith.constant 0 : i32
    return %c0_i32, %c0_i32_0 : i32, i32
  }
  func.func @transform_6(%arg0: i32) -> (i32, i32) {
    %c0_i32 = arith.constant 0 : i32
    %c0_i32_0 = arith.constant 0 : i32
    %c0_i32_1 = arith.constant 0 : i32
    return %c0_i32, %c0_i32_0 : i32, i32
  }
  func.func @transform_7(%arg0: i32) -> (i32, i32) {
    %c0_i32 = arith.constant 0 : i32
    %c0_i32_0 = arith.constant 0 : i32
    %c0_i32_1 = arith.constant 0 : i32
    return %c0_i32, %c0_i32_0 : i32, i32
  }
  func.func @transform_8(%arg0: i32) -> (i32, i32, i32) {
    %c0_i32 = arith.constant 0 : i32
    %c0_i32_0 = arith.constant 0 : i32
    %c0_i32_1 = arith.constant 0 : i32
    return %arg0, %c0_i32, %c0_i32_0 : i32, i32, i32
  }
}

</mosaic_0001>

<llo_original>
// kernel: resblk_forward.5
$region0: #{resblk_forward.5}
  #allocation0 [shape = 'u32[]', space=smem, size = 0x4, offset = 0x4, fixed_abs, tag = 'smem constant byte address 0x4 - core index']
  #allocation1 [shape = 'u32[72,128]{1,0:T(1,128)}', space=vmem, size = 0x9000, scoped, tag = 'internal scratch']
  %s0 = inlined_call_operand.vmem [shape: bf16[2,72,128], index: 0, kind: input, shape index: {}]
  %s1 = inlined_call_operand.vmem [shape: bf16[2,72,128], index: 1, kind: input, shape index: {}]
  %s2 = inlined_call_operand.vmem [shape: f32[2,128], index: 2, kind: input, shape index: {}]
  %s3 = inlined_call_operand.vmem [shape: f32[1,128], index: 3, kind: input, shape index: {}]
  %s4 = inlined_call_operand.vmem [shape: f32[1,128], index: 4, kind: input, shape index: {}]
  %s5 = inlined_call_operand.vmem [shape: f32[2,128], index: 5, kind: input, shape index: {}]
  %s6 = inlined_call_operand.vmem [shape: f32[1,128], index: 6, kind: input, shape index: {}]
  %s7 = inlined_call_operand.vmem [shape: f32[1,128], index: 7, kind: input, shape index: {}]
  %s8 = inlined_call_operand.vmem [shape: f32[2,72,128], index: 8, kind: output, shape index: {}]
  %s9 = sld [smem:[#allocation0]]
  $region65: #{resblk_forward.5} parent=0
    _
  %s11 = ssub.s32 1, %s9
  %s12 = scalar_select 0, %s11, %s9
  loop: start=0, step=1, limit=4
  $region2: #{resblk_forward.5} parent=0 // loop_pre_header
    _
  $region3: #{resblk_forward.5} parent=0 // loop_header
    %s14 = sphi 0, %s18
    %p15 = scmp.ge.s32.totalorder %s14, 4
    %s24 = sphi 0, %s26
    %s27 = sphi 0, %s24
    %s28 = sphi 0, %s27
    %s44 = sphi 0, %s28
    %s50 = sphi 0, %s52
    %s53 = sphi 0, %s50
    %s54 = sphi 0, %s53
    %s70 = sphi 0, %s54
    %s74 = sphi 0, %s74
    %s76 = sphi 0, %s74
    %s77 = sphi 0, %s76
    %s91 = sphi 0, %s77
    %s95 = sphi 0, %s95
    %s97 = sphi 0, %s95
    %s98 = sphi 0, %s97
    %s112 = sphi 0, %s98
    %s116 = sphi 0, %s116
    %s118 = sphi 0, %s116
    %s119 = sphi 0, %s118
    %s133 = sphi 0, %s119
    %s137 = sphi 0, %s137
    %s139 = sphi 0, %s137
    %s140 = sphi 0, %s139
    %s154 = sphi 0, %s140
    %s158 = sphi 0, %s158
    %s160 = sphi 0, %s158
    %s161 = sphi 0, %s160
    %s175 = sphi 0, %s161
    %s179 = sphi 0, %s179
    %s181 = sphi 0, %s179
    %s182 = sphi 0, %s181
    %s196 = sphi 0, %s182
    %s202 = sphi 0, %s204
    %s205 = sphi 0, %s202
    %s206 = sphi 0, %s205
    %s222 = sphi 0, %s206
  $region4: #{resblk_forward.5} parent=0 // loop_header_branch
    %17 = sbr.rel (%p15) target = $region8
  $region5: #{resblk_forward.5} parent=0 // loop_body
    %s19 = ssub.s32 %s14, 1
    %s20 = ssub.s32 %s14, 2
    %s21 = sadd.s32 %s14, 1
    %s22 = ssub.s32 %s14, %s21
    %p23 = scmp.eq.s32.totalorder %s22, 0
    %s25 = sadd.s32 %s24, 1
    %s26 = scalar_select %p23, %s24, %s25
    %p29 = pneg %p23
    %p30 = scmp.eq.s32.totalorder %s14, 1
    %p31 = por %p29, %p30
    %p32 = scmp.ne.s32.totalorder %s24, %s27
    %p33 = scmp.eq.s32.totalorder %s14, 0
    %p34 = por %p32, %p33
    %p35 = scmp.ne.s32.totalorder %s24, %s27
    %p36 = scmp.eq.s32.totalorder %s19, 1
    %p37 = por %p35, %p36
    %p38 = scmp.ne.s32.totalorder %s27, %s28
    %p39 = scmp.eq.s32.totalorder %s19, 0
    %p40 = por %p38, %p39
    %p41 = scmp.ne.s32.totalorder %s27, %s28
    %p42 = scmp.eq.s32.totalorder %s20, 1
    %p43 = por %p41, %p42
    %p45 = scmp.ne.s32.totalorder %s28, %s44
    %p46 = scmp.eq.s32.totalorder %s20, 0
    %p47 = por %p45, %p46
    %s48 = ssub.s32 %s14, %s21
    %p49 = scmp.eq.s32.totalorder %s48, 0
    %s51 = sadd.s32 %s50, 1
    %s52 = scalar_select %p49, %s50, %s51
    %p55 = pneg %p49
    %p56 = scmp.eq.s32.totalorder %s14, 1
    %p57 = por %p55, %p56
    %p58 = scmp.ne.s32.totalorder %s50, %s53
    %p59 = scmp.eq.s32.totalorder %s14, 0
    %p60 = por %p58, %p59
    %p61 = scmp.ne.s32.totalorder %s50, %s53
    %p62 = scmp.eq.s32.totalorder %s19, 1
    %p63 = por %p61, %p62
    %p64 = scmp.ne.s32.totalorder %s53, %s54
    %p65 = scmp.eq.s32.totalorder %s19, 0
    %p66 = por %p64, %p65
    %p67 = scmp.ne.s32.totalorder %s53, %s54
    %p68 = scmp.eq.s32.totalorder %s20, 1
    %p69 = por %p67, %p68
    %p71 = scmp.ne.s32.totalorder %s54, %s70
    %p72 = scmp.eq.s32.totalorder %s20, 0
    %p73 = por %p71, %p72
    %s75 = sadd.s32 %s74, 1
    %p78 = scmp.eq.s32.totalorder %s14, 1
    %p79 = scmp.ne.s32.totalorder %s74, %s76
    %p80 = scmp.eq.s32.totalorder %s14, 0
    %p81 = por %p79, %p80
    %p82 = scmp.ne.s32.totalorder %s74, %s76
    %p83 = scmp.eq.s32.totalorder %s19, 1
    %p84 = por %p82, %p83
    %p85 = scmp.ne.s32.totalorder %s76, %s77
    %p86 = scmp.eq.s32.totalorder %s19, 0
    %p87 = por %p85, %p86
    %p88 = scmp.ne.s32.totalorder %s76, %s77
    %p89 = scmp.eq.s32.totalorder %s20, 1
    %p90 = por %p88, %p89
    %p92 = scmp.ne.s32.totalorder %s77, %s91
    %p93 = scmp.eq.s32.totalorder %s20, 0
    %p94 = por %p92, %p93
    %s96 = sadd.s32 %s95, 1
    %p99 = scmp.eq.s32.totalorder %s14, 1
    %p100 = scmp.ne.s32.totalorder %s95, %s97
    %p101 = scmp.eq.s32.totalorder %s14, 0
    %p102 = por %p100, %p101
    %p103 = scmp.ne.s32.totalorder %s95, %s97
    %p104 = scmp.eq.s32.totalorder %s19, 1
    %p105 = por %p103, %p104
    %p106 = scmp.ne.s32.totalorder %s97, %s98
    %p107 = scmp.eq.s32.totalorder %s19, 0
    %p108 = por %p106, %p107
    %p109 = scmp.ne.s32.totalorder %s97, %s98
    %p110 = scmp.eq.s32.totalorder %s20, 1
    %p111 = por %p109, %p110
    %p113 = scmp.ne.s32.totalorder %s98, %s112
    %p114 = scmp.eq.s32.totalorder %s20, 0
    %p115 = por %p113, %p114
    %s117 = sadd.s32 %s116, 1
    %p120 = scmp.eq.s32.totalorder %s14, 1
    %p121 = scmp.ne.s32.totalorder %s116, %s118
    %p122 = scmp.eq.s32.totalorder %s14, 0
    %p123 = por %p121, %p122
    %p124 = scmp.ne.s32.totalorder %s116, %s118
    %p125 = scmp.eq.s32.totalorder %s19, 1
    %p126 = por %p124, %p125
    %p127 = scmp.ne.s32.totalorder %s118, %s119
    %p128 = scmp.eq.s32.totalorder %s19, 0
    %p129 = por %p127, %p128
    %p130 = scmp.ne.s32.totalorder %s118, %s119
    %p131 = scmp.eq.s32.totalorder %s20, 1
    %p132 = por %p130, %p131
    %p134 = scmp.ne.s32.totalorder %s119, %s133
    %p135 = scmp.eq.s32.totalorder %s20, 0
    %p136 = por %p134, %p135
    %s138 = sadd.s32 %s137, 1
    %p141 = scmp.eq.s32.totalorder %s14, 1
    %p142 = scmp.ne.s32.totalorder %s137, %s139
    %p143 = scmp.eq.s32.totalorder %s14, 0
    %p144 = por %p142, %p143
    %p145 = scmp.ne.s32.totalorder %s137, %s139
    %p146 = scmp.eq.s32.totalorder %s19, 1
    %p147 = por %p145, %p146
    %p148 = scmp.ne.s32.totalorder %s139, %s140
    %p149 = scmp.eq.s32.totalorder %s19, 0
    %p150 = por %p148, %p149
    %p151 = scmp.ne.s32.totalorder %s139, %s140
    %p152 = scmp.eq.s32.totalorder %s20, 1
    %p153 = por %p151, %p152
    %p155 = scmp.ne.s32.totalorder %s140, %s154
    %p156 = scmp.eq.s32.totalorder %s20, 0
    %p157 = por %p155, %p156
    %s159 = sadd.s32 %s158, 1
    %p162 = scmp.eq.s32.totalorder %s14, 1
    %p163 = scmp.ne.s32.totalorder %s158, %s160
    %p164 = scmp.eq.s32.totalorder %s14, 0
    %p165 = por %p163, %p164
    %p166 = scmp.ne.s32.totalorder %s158, %s160
    %p167 = scmp.eq.s32.totalorder %s19, 1
    %p168 = por %p166, %p167
    %p169 = scmp.ne.s32.totalorder %s160, %s161
    %p170 = scmp.eq.s32.totalorder %s19, 0
    %p171 = por %p169, %p170
    %p172 = scmp.ne.s32.totalorder %s160, %s161
    %p173 = scmp.eq.s32.totalorder %s20, 1
    %p174 = por %p172, %p173
    %p176 = scmp.ne.s32.totalorder %s161, %s175
    %p177 = scmp.eq.s32.totalorder %s20, 0
    %p178 = por %p176, %p177
    %s180 = sadd.s32 %s179, 1
    %p183 = scmp.eq.s32.totalorder %s14, 1
    %p184 = scmp.ne.s32.totalorder %s179, %s181
    %p185 = scmp.eq.s32.totalorder %s14, 0
    %p186 = por %p184, %p185
    %p187 = scmp.ne.s32.totalorder %s179, %s181
    %p188 = scmp.eq.s32.totalorder %s19, 1
    %p189 = por %p187, %p188
    %p190 = scmp.ne.s32.totalorder %s181, %s182
    %p191 = scmp.eq.s32.totalorder %s19, 0
    %p192 = por %p190, %p191
    %p193 = scmp.ne.s32.totalorder %s181, %s182
    %p194 = scmp.eq.s32.totalorder %s20, 1
    %p195 = por %p193, %p194
    %p197 = scmp.ne.s32.totalorder %s182, %s196
    %p198 = scmp.eq.s32.totalorder %s20, 0
    %p199 = por %p197, %p198
    %s200 = ssub.s32 %s14, %s21
    %p201 = scmp.eq.s32.totalorder %s200, 0
    %s203 = sadd.s32 %s202, 1
    %s204 = scalar_select %p201, %s202, %s203
    %p207 = pneg %p201
    %p208 = scmp.eq.s32.totalorder %s14, 1
    %p209 = por %p207, %p208
    %p210 = scmp.ne.s32.totalorder %s202, %s205
    %p211 = scmp.eq.s32.totalorder %s14, 0
    %p212 = por %p210, %p211
    %p213 = scmp.ne.s32.totalorder %s202, %s205
    %p214 = scmp.eq.s32.totalorder %s19, 1
    %p215 = por %p213, %p214
    %p216 = scmp.ne.s32.totalorder %s205, %s206
    %p217 = scmp.eq.s32.totalorder %s19, 0
    %p218 = por %p216, %p217
    %p219 = scmp.ne.s32.totalorder %s205, %s206
    %p220 = scmp.eq.s32.totalorder %s20, 1
    %p221 = por %p219, %p220
    %p223 = scmp.ne.s32.totalorder %s206, %s222
    %p224 = scmp.eq.s32.totalorder %s20, 0
    %p225 = por %p223, %p224
    %p226 = scmp.le.s32.totalorder 1, %s14
    %p227 = scmp.lt.s32.totalorder %s14, 3
    %p228 = pnand %p226, %p227
    %p229 = pneg %p228
    // Predicated region
    $region9: #{resblk_forward.5} parent=5 // pred_check
      _
    $region10: #{resblk_forward.5} parent=5 // pred_check_branch
      %231 = sbr.rel (%p228) target = $region12
    $region11: #{resblk_forward.5} parent=5 // pred_region
      %s232 = ssub.s32 %s14, 1
      // Predicated region
      $region13: #{resblk_forward.5} parent=11 // pred_check
        %p233 = pneg %p87
      $region14: #{resblk_forward.5} parent=11 // pred_check_branch
        %235 = sbr.rel (%p233) target = $region16
      $region15: #{resblk_forward.5} parent=11 // pred_region
        _
      $region16: #{resblk_forward.5} parent=11 // pred_fallthru
        _
      // Predicated region
      $region17: #{resblk_forward.5} parent=11 // pred_check
        %p236 = pneg %p108
      $region18: #{resblk_forward.5} parent=11 // pred_check_branch
        %238 = sbr.rel (%p236) target = $region20
      $region19: #{resblk_forward.5} parent=11 // pred_region
        _
      $region20: #{resblk_forward.5} parent=11 // pred_fallthru
        _
      // Predicated region
      $region21: #{resblk_forward.5} parent=11 // pred_check
        %p239 = pneg %p129
      $region22: #{resblk_forward.5} parent=11 // pred_check_branch
        %241 = sbr.rel (%p239) target = $region24
      $region23: #{resblk_forward.5} parent=11 // pred_region
        _
      $region24: #{resblk_forward.5} parent=11 // pred_fallthru
        _
      // Predicated region
      $region25: #{resblk_forward.5} parent=11 // pred_check
        %p242 = pneg %p150
      $region26: #{resblk_forward.5} parent=11 // pred_check_branch
        %244 = sbr.rel (%p242) target = $region28
      $region27: #{resblk_forward.5} parent=11 // pred_region
        _
      $region28: #{resblk_forward.5} parent=11 // pred_fallthru
        _
      // Predicated region
      $region29: #{resblk_forward.5} parent=11 // pred_check
        %p245 = pneg %p171
      $region30: #{resblk_forward.5} parent=11 // pred_check_branch
        %247 = sbr.rel (%p245) target = $region32
      $region31: #{resblk_forward.5} parent=11 // pred_region
        _
      $region32: #{resblk_forward.5} parent=11 // pred_fallthru
        _
      // Predicated region
      $region33: #{resblk_forward.5} parent=11 // pred_check
        %p248 = pneg %p192
      $region34: #{resblk_forward.5} parent=11 // pred_check_branch
        %250 = sbr.rel (%p248) target = $region36
      $region35: #{resblk_forward.5} parent=11 // pred_region
        _
      $region36: #{resblk_forward.5} parent=11 // pred_fallthru
        _
    $region12: #{resblk_forward.5} parent=5 // pred_fallthru
      _
    %p251 = scmp.lt.s32.totalorder %s14, 2
    // Predicated region
    $region37: #{resblk_forward.5} parent=5 // pred_check
      %p252 = pneg %p251
    $region38: #{resblk_forward.5} parent=5 // pred_check_branch
      %254 = sbr.rel (%p252) target = $region40
    $region39: #{resblk_forward.5} parent=5 // pred_region
      // Predicated region
      $region41: #{resblk_forward.5} parent=39 // pred_check
        %p255 = pneg %p34
      $region42: #{resblk_forward.5} parent=39 // pred_check_branch
        %257 = sbr.rel (%p255) target = $region44
      $region43: #{resblk_forward.5} parent=39 // pred_region
        %p258 = scmp.lt.s32.totalorder %s14, 1
        %s259 = scalar_select %p258, %s14, 1
        %s260 = smul.addr %s259, 9
        %s261 = smul.addr %s260, 4
        %s262 = scalar_lea.vmem %s0, %s261
      $region44: #{resblk_forward.5} parent=39 // pred_fallthru
        _
      // Predicated region
      $region45: #{resblk_forward.5} parent=39 // pred_check
        %p263 = pneg %p60
      $region46: #{resblk_forward.5} parent=39 // pred_check_branch
        %265 = sbr.rel (%p263) target = $region48
      $region47: #{resblk_forward.5} parent=39 // pred_region
        %p266 = scmp.lt.s32.totalorder %s14, 1
        %s267 = scalar_select %p266, %s14, 1
        %s268 = smul.addr %s267, 9
        %s269 = smul.addr %s268, 4
        %s270 = scalar_lea.vmem %s1, %s269
      $region48: #{resblk_forward.5} parent=39 // pred_fallthru
        _
    $region40: #{resblk_forward.5} parent=5 // pred_fallthru
      _
    %p271 = scmp.le.s32.totalorder 1, %s14
    %p272 = scmp.lt.s32.totalorder %s14, 3
    %p273 = pnand %p271, %p272
    %p274 = pneg %p273
    // Predicated region
    $region49: #{resblk_forward.5} parent=5 // pred_check
      _
    $region50: #{resblk_forward.5} parent=5 // pred_check_branch
      %276 = sbr.rel (%p273) target = $region52
    $region51: #{resblk_forward.5} parent=5 // pred_region
      %s277 = ssub.s32 %s14, 1
      %p278 = scmp.lt.s32.totalorder %s19, 1
      %s279 = scalar_select %p278, %s19, 1
      %s280 = smul.addr %s279, 9
      %s281 = smul.addr %s280, 4
      %s282 = scalar_lea.vmem %s0, %s281
      %p283 = pneg %p40
      %p284 = pneg %p37
      %p285 = scmp.lt.s32.totalorder %s19, 1
      %s286 = scalar_select %p285, %s19, 1
      %s287 = smul.addr %s286, 9
      %s288 = smul.addr %s287, 4
      %s289 = scalar_lea.vmem %s1, %s288
      %p290 = pneg %p66
      %p291 = pneg %p63
      %p292 = pneg %p87
      %p293 = pneg %p84
      %p294 = pneg %p108
      %p295 = pneg %p105
      %p296 = pneg %p129
      %p297 = pneg %p126
      %p298 = pneg %p150
      %p299 = pneg %p147
      %p300 = pneg %p171
      %p301 = pneg %p168
      %p302 = pneg %p192
      %p303 = pneg %p189
      %p304 = pneg %p218
      %p305 = pneg %p215
      %p306 = scmp.lt.s32.totalorder %s19, 1
      %s307 = scalar_select %p306, %s19, 1
      %s308 = smul.addr %s307, 9
      %s309 = smul.addr %s308, 8
      %s310 = scalar_lea.vmem %s8, %s309
      %p311 = scmp.lt.s32.totalorder %s19, 1
      %s312 = scalar_select %p311, %s19, 1
      %s313 = smul.addr %s312, 9
      %s314 = smul.addr %s313, 4
      %s315 = scalar_lea.vmem %s0, %s314
      %p316 = scmp.lt.s32.totalorder %s19, 1
      %s317 = scalar_select %p316, %s19, 1
      %s318 = smul.addr %s317, 9
      %s319 = smul.addr %s318, 4
      %s320 = scalar_lea.vmem %s1, %s319
      %p321 = scmp.lt.s32.totalorder %s19, 1
      %s322 = scalar_select %p321, %s19, 1
      %s323 = smul.addr %s322, 9
      %s324 = smul.addr %s323, 8
      %s325 = scalar_lea.vmem %s8, %s324
      %v326 = vld [vmem:[%s2] sm:$0x1]
      %v327 = vmul.f32 %v326, 0.0078125
      %v328 = vld [vmem:[%s2 + $0x1] sm:$0x1]
      %v329 = vmul.f32 %v328, 0.0078125
      %v330 = vmul.f32 %v327, %v327
      %v331 = vsub.f32 %v329, %v330
      %v332 = vmax.f32 %v331, 0.0
      %v333 = vld [vmem:[%s3] sm:$0x1]
      %v334 = vadd.f32 %v332, 1e-05
      %v335 = vrsqrt.pop %v334
      %v336 = vmul.f32 %v335, %v334
      %v337 = vmul.f32 %v336, %v335
      %v338 = vmul.f32 0.5, %v337
      %v339 = vsub.f32 1.5, %v338
      %v340 = vmul.f32 %v335, %v339
      %vm341 = vweird.f32 %v334
      %vm342 = vweird.f32 %v335
      %vm343 = vmor %vm341, %vm342
      %v344 = vsel %vm343, %v335, %v340
      %v345 = vmul.f32 %v333, %v344
      %v346 = vld [vmem:[%s4] sm:$0x1]
      %v347 = vmul.f32 %v327, %v345
      %v348 = vsub.f32 %v346, %v347
      %v349 = vld [vmem:[%s5] sm:$0x1]
      %v350 = vmul.f32 %v349, 0.0078125
      %v351 = vld [vmem:[%s5 + $0x1] sm:$0x1]
      %v352 = vmul.f32 %v351, 0.0078125
      %v353 = vmul.f32 %v350, %v350
      %v354 = vsub.f32 %v352, %v353
      %v355 = vmax.f32 %v354, 0.0
      %v356 = vld [vmem:[%s6] sm:$0x1]
      %v357 = vadd.f32 %v355, 1e-05
      %v358 = vrsqrt.pop %v357
      %v359 = vmul.f32 %v358, %v357
      %v360 = vmul.f32 %v359, %v358
      %v361 = vmul.f32 0.5, %v360
      %v362 = vsub.f32 1.5, %v361
      %v363 = vmul.f32 %v358, %v362
      %vm364 = vweird.f32 %v357
      %vm365 = vweird.f32 %v358
      %vm366 = vmor %vm364, %vm365
      %v367 = vsel %vm366, %v358, %v363
      %v368 = vmul.f32 %v356, %v367
      %v369 = vld [vmem:[%s7] sm:$0x1]
      %v370 = vmul.f32 %v350, %v368
      %v371 = vsub.f32 %v369, %v370
      %v372 = vld [vmem:[%s315] sm:$0xf]
      %v373 = vld [vmem:[%s315 + $0x4] sm:$0xf]
      %v374 = vld [vmem:[%s315 + $0x8] sm:$0xf]
      %v375 = vld [vmem:[%s315 + $0xc] sm:$0xf]
      %v376 = vld [vmem:[%s315 + $0x10] sm:$0xf]
      %v377 = vld [vmem:[%s315 + $0x14] sm:$0xf]
      %v378 = vld [vmem:[%s315 + $0x18] sm:$0xf]
      %v379 = vld [vmem:[%s315 + $0x1c] sm:$0xf]
      %v380 = vld [vmem:[%s315 + $0x20] sm:$0xf]
      %v381 = vunpack.c.l.bf16 %v372
      %v382 = vunpack.c.l.bf16 %v373
      %v383 = vunpack.c.l.bf16 %v374
      %v384 = vunpack.c.l.bf16 %v375
      %v385 = vunpack.c.l.bf16 %v376
      %v386 = vunpack.c.l.bf16 %v377
      %v387 = vunpack.c.l.bf16 %v378
      %v388 = vunpack.c.l.bf16 %v379
      %v389 = vunpack.c.l.bf16 %v380
      %v390 = vld [vmem:[%s320] sm:$0xf]
      %v391 = vld [vmem:[%s320 + $0x4] sm:$0xf]
      %v392 = vld [vmem:[%s320 + $0x8] sm:$0xf]
      %v393 = vld [vmem:[%s320 + $0xc] sm:$0xf]
      %v394 = vld [vmem:[%s320 + $0x10] sm:$0xf]
      %v395 = vld [vmem:[%s320 + $0x14] sm:$0xf]
      %v396 = vld [vmem:[%s320 + $0x18] sm:$0xf]
      %v397 = vld [vmem:[%s320 + $0x1c] sm:$0xf]
      %v398 = vld [vmem:[%s320 + $0x20] sm:$0xf]
      %v399 = vunpack.c.l.bf16 %v390
      %v400 = vunpack.c.l.bf16 %v391
      %v401 = vunpack.c.l.bf16 %v392
      %v402 = vunpack.c.l.bf16 %v393
      %v403 = vunpack.c.l.bf16 %v394
      %v404 = vunpack.c.l.bf16 %v395
      %v405 = vunpack.c.l.bf16 %v396
      %v406 = vunpack.c.l.bf16 %v397
      %v407 = vunpack.c.l.bf16 %v398
      %v409 = vperm.slane %v345, 0
      %v411 = vmul.f32 %v381, %v409
      %v412 = vmul.f32 %v382, %v409
      %v413 = vmul.f32 %v383, %v409
      %v414 = vmul.f32 %v384, %v409
      %v415 = vmul.f32 %v385, %v409
      %v416 = vmul.f32 %v386, %v409
      %v417 = vmul.f32 %v387, %v409
      %v418 = vmul.f32 %v388, %v409
      %v419 = vmul.f32 %v389, %v409
      %v421 = vperm.slane %v348, 0
      %v423 = vadd.f32 %v411, %v421
      %v424 = vadd.f32 %v412, %v421
      %v425 = vadd.f32 %v413, %v421
      %v426 = vadd.f32 %v414, %v421
      %v427 = vadd.f32 %v415, %v421
      %v428 = vadd.f32 %v416, %v421
      %v429 = vadd.f32 %v417, %v421
      %v430 = vadd.f32 %v418, %v421
      %v431 = vadd.f32 %v419, %v421
      %v433 = vperm.slane %v368, 0
      %v435 = vmul.f32 %v399, %v433
      %v436 = vmul.f32 %v400, %v433
      %v437 = vmul.f32 %v401, %v433
      %v438 = vmul.f32 %v402, %v433
      %v439 = vmul.f32 %v403, %v433
      %v440 = vmul.f32 %v404, %v433
      %v441 = vmul.f32 %v405, %v433
      %v442 = vmul.f32 %v406, %v433
      %v443 = vmul.f32 %v407, %v433
      %v444 = vadd.f32 %v423, %v435
      %v445 = vadd.f32 %v424, %v436
      %v446 = vadd.f32 %v425, %v437
      %v447 = vadd.f32 %v426, %v438
      %v448 = vadd.f32 %v427, %v439
      %v449 = vadd.f32 %v428, %v440
      %v450 = vadd.f32 %v429, %v441
      %v451 = vadd.f32 %v430, %v442
      %v452 = vadd.f32 %v431, %v443
      %v454 = vperm.slane %v371, 0
      %v456 = vadd.f32 %v444, %v454
      %v457 = vadd.f32 %v445, %v454
      %v458 = vadd.f32 %v446, %v454
      %v459 = vadd.f32 %v447, %v454
      %v460 = vadd.f32 %v448, %v454
      %v461 = vadd.f32 %v449, %v454
      %v462 = vadd.f32 %v450, %v454
      %v463 = vadd.f32 %v451, %v454
      %v464 = vadd.f32 %v452, %v454
      %v465 = vmax.f32 %v456, 0.0
      %v466 = vmax.f32 %v457, 0.0
      %v467 = vmax.f32 %v458, 0.0
      %v468 = vmax.f32 %v459, 0.0
      %v469 = vmax.f32 %v460, 0.0
      %v470 = vmax.f32 %v461, 0.0
      %v471 = vmax.f32 %v462, 0.0
      %v472 = vmax.f32 %v463, 0.0
      %v473 = vmax.f32 %v464, 0.0
      %474 = vst [vmem:[%s325] sm:$0xff] %v465
      %475 = vst [vmem:[%s325 + $0x8] sm:$0xff] %v466
      %476 = vst [vmem:[%s325 + $0x10] sm:$0xff] %v467
      %477 = vst [vmem:[%s325 + $0x18] sm:$0xff] %v468
      %478 = vst [vmem:[%s325 + $0x20] sm:$0xff] %v469
      %479 = vst [vmem:[%s325 + $0x28] sm:$0xff] %v470
      %480 = vst [vmem:[%s325 + $0x30] sm:$0xff] %v471
      %481 = vst [vmem:[%s325 + $0x38] sm:$0xff] %v472
      %482 = vst [vmem:[%s325 + $0x40] sm:$0xff] %v473
      %p483 = scmp.lt.s32.totalorder %s19, 1
      %s484 = scalar_select %p483, %s19, 1
      %s485 = smul.addr %s484, 9
      %s486 = smul.addr %s485, 8
      %s487 = scalar_lea.vmem %s8, %s486
      // Predicated region
      $region53: #{resblk_forward.5} parent=51 // pred_check
        %p488 = pneg %p215
      $region54: #{resblk_forward.5} parent=51 // pred_check_branch
        %490 = sbr.rel (%p488) target = $region56
      $region55: #{resblk_forward.5} parent=51 // pred_region
        _
      $region56: #{resblk_forward.5} parent=51 // pred_fallthru
        _
    $region52: #{resblk_forward.5} parent=5 // pred_fallthru
      _
    %p491 = scmp.le.s32.totalorder 2, %s14
    // Predicated region
    $region57: #{resblk_forward.5} parent=5 // pred_check
      %p492 = pneg %p491
    $region58: #{resblk_forward.5} parent=5 // pred_check_branch
      %494 = sbr.rel (%p492) target = $region60
    $region59: #{resblk_forward.5} parent=5 // pred_region
      %s495 = ssub.s32 %s14, 2
      // Predicated region
      $region61: #{resblk_forward.5} parent=59 // pred_check
        %p496 = pneg %p221
      $region62: #{resblk_forward.5} parent=59 // pred_check_branch
        %498 = sbr.rel (%p496) target = $region64
      $region63: #{resblk_forward.5} parent=59 // pred_region
        %p499 = scmp.lt.s32.totalorder %s20, 1
        %s500 = scalar_select %p499, %s20, 1
        %s501 = smul.addr %s500, 9
        %s502 = smul.addr %s501, 8
        %s503 = scalar_lea.vmem %s8, %s502
      $region64: #{resblk_forward.5} parent=59 // pred_fallthru
        _
    $region60: #{resblk_forward.5} parent=5 // pred_fallthru
      _
  $region6: #{resblk_forward.5} parent=0 // loop_footer
    %s18 = sadd.s32 1, %s14
  $region7: #{resblk_forward.5} parent=0 // loop_footer_branch
    %13 = sbr.rel target = $region3
  $region8: #{resblk_forward.5} parent=0 // loop_exit
    _

// kernel: resblk_forward.4
$region0: #{resblk_forward.4}
  #allocation0 [shape = 'u32[]', space=smem, size = 0x4, offset = 0x4, fixed_abs, tag = 'smem constant byte address 0x4 - core index']
  #allocation1 [shape = 'u32[72,128]{1,0:T(1,128)}', space=vmem, size = 0x9000, scoped, tag = 'internal scratch']
  #allocation2 [shape = 'bf16[112,128]{1,0:T(8,128)(2,1)}', space=vmem, size = 0x7000, scoped, tag = 'scratch operand']
  %s0 = inlined_call_operand.vmem [shape: bf16[2,112,128], index: 0, kind: input, shape index: {}]
  %s1 = inlined_call_operand.vmem [shape: bf16[9,128,128], index: 1, kind: input, shape index: {}]
  %s2 = inlined_call_operand.vmem [shape: f32[112,1], index: 2, kind: input, shape index: {}]
  %s3 = inlined_call_operand.vmem [shape: f32[72,1], index: 3, kind: input, shape index: {}]
  %s4 = inlined_call_operand.vmem [shape: f32[2,128], index: 4, kind: input, shape index: {}]
  %s5 = inlined_call_operand.vmem [shape: f32[1,128], index: 5, kind: input, shape index: {}]
  %s6 = inlined_call_operand.vmem [shape: f32[1,128], index: 6, kind: input, shape index: {}]
  %s7 = inlined_call_operand.vmem [shape: bf16[2,72,128], index: 7, kind: output, shape index: {0}]
  %s8 = inlined_call_operand.vmem [shape: f32[2,2,128], index: 8, kind: output, shape index: {1}]
  %9 = xla_tuple %s7, %s8
  %s10 = sld [smem:[#allocation0]]
  $region69: #{resblk_forward.4} parent=0
    _
  %s12 = ssub.s32 1, %s10
  %s13 = scalar_select 0, %s12, %s10
  loop: start=0, step=1, limit=4
  $region2: #{resblk_forward.4} parent=0 // loop_pre_header
    _
  $region3: #{resblk_forward.4} parent=0 // loop_header
    %s15 = sphi 0, %s19
    %p16 = scmp.ge.s32.totalorder %s15, 4
    %s25 = sphi 0, %s27
    %s28 = sphi 0, %s25
    %s29 = sphi 0, %s28
    %s45 = sphi 0, %s29
    %s49 = sphi 0, %s49
    %s51 = sphi 0, %s49
    %s52 = sphi 0, %s51
    %s66 = sphi 0, %s52
    %s70 = sphi 0, %s70
    %s72 = sphi 0, %s70
    %s73 = sphi 0, %s72
    %s87 = sphi 0, %s73
    %s91 = sphi 0, %s91
    %s93 = sphi 0, %s91
    %s94 = sphi 0, %s93
    %s108 = sphi 0, %s94
    %s112 = sphi 0, %s112
    %s114 = sphi 0, %s112
    %s115 = sphi 0, %s114
    %s129 = sphi 0, %s115
    %s133 = sphi 0, %s133
    %s135 = sphi 0, %s133
    %s136 = sphi 0, %s135
    %s150 = sphi 0, %s136
    %s154 = sphi 0, %s154
    %s156 = sphi 0, %s154
    %s157 = sphi 0, %s156
    %s171 = sphi 0, %s157
    %s177 = sphi 0, %s179
    %s180 = sphi 0, %s177
    %s181 = sphi 0, %s180
    %s197 = sphi 0, %s181
    %s203 = sphi 0, %s205
    %s206 = sphi 0, %s203
    %s207 = sphi 0, %s206
    %s223 = sphi 0, %s207
  $region4: #{resblk_forward.4} parent=0 // loop_header_branch
    %18 = sbr.rel (%p16) target = $region8
  $region5: #{resblk_forward.4} parent=0 // loop_body
    %s20 = ssub.s32 %s15, 1
    %s21 = ssub.s32 %s15, 2
    %s22 = sadd.s32 %s15, 1
    %s23 = ssub.s32 %s15, %s22
    %p24 = scmp.eq.s32.totalorder %s23, 0
    %s26 = sadd.s32 %s25, 1
    %s27 = scalar_select %p24, %s25, %s26
    %p30 = pneg %p24
    %p31 = scmp.eq.s32.totalorder %s15, 1
    %p32 = por %p30, %p31
    %p33 = scmp.ne.s32.totalorder %s25, %s28
    %p34 = scmp.eq.s32.totalorder %s15, 0
    %p35 = por %p33, %p34
    %p36 = scmp.ne.s32.totalorder %s25, %s28
    %p37 = scmp.eq.s32.totalorder %s20, 1
    %p38 = por %p36, %p37
    %p39 = scmp.ne.s32.totalorder %s28, %s29
    %p40 = scmp.eq.s32.totalorder %s20, 0
    %p41 = por %p39, %p40
    %p42 = scmp.ne.s32.totalorder %s28, %s29
    %p43 = scmp.eq.s32.totalorder %s21, 1
    %p44 = por %p42, %p43
    %p46 = scmp.ne.s32.totalorder %s29, %s45
    %p47 = scmp.eq.s32.totalorder %s21, 0
    %p48 = por %p46, %p47
    %s50 = sadd.s32 %s49, 1
    %p53 = scmp.eq.s32.totalorder %s15, 1
    %p54 = scmp.ne.s32.totalorder %s49, %s51
    %p55 = scmp.eq.s32.totalorder %s15, 0
    %p56 = por %p54, %p55
    %p57 = scmp.ne.s32.totalorder %s49, %s51
    %p58 = scmp.eq.s32.totalorder %s20, 1
    %p59 = por %p57, %p58
    %p60 = scmp.ne.s32.totalorder %s51, %s52
    %p61 = scmp.eq.s32.totalorder %s20, 0
    %p62 = por %p60, %p61
    %p63 = scmp.ne.s32.totalorder %s51, %s52
    %p64 = scmp.eq.s32.totalorder %s21, 1
    %p65 = por %p63, %p64
    %p67 = scmp.ne.s32.totalorder %s52, %s66
    %p68 = scmp.eq.s32.totalorder %s21, 0
    %p69 = por %p67, %p68
    %s71 = sadd.s32 %s70, 1
    %p74 = scmp.eq.s32.totalorder %s15, 1
    %p75 = scmp.ne.s32.totalorder %s70, %s72
    %p76 = scmp.eq.s32.totalorder %s15, 0
    %p77 = por %p75, %p76
    %p78 = scmp.ne.s32.totalorder %s70, %s72
    %p79 = scmp.eq.s32.totalorder %s20, 1
    %p80 = por %p78, %p79
    %p81 = scmp.ne.s32.totalorder %s72, %s73
    %p82 = scmp.eq.s32.totalorder %s20, 0
    %p83 = por %p81, %p82
    %p84 = scmp.ne.s32.totalorder %s72, %s73
    %p85 = scmp.eq.s32.totalorder %s21, 1
    %p86 = por %p84, %p85
    %p88 = scmp.ne.s32.totalorder %s73, %s87
    %p89 = scmp.eq.s32.totalorder %s21, 0
    %p90 = por %p88, %p89
    %s92 = sadd.s32 %s91, 1
    %p95 = scmp.eq.s32.totalorder %s15, 1
    %p96 = scmp.ne.s32.totalorder %s91, %s93
    %p97 = scmp.eq.s32.totalorder %s15, 0
    %p98 = por %p96, %p97
    %p99 = scmp.ne.s32.totalorder %s91, %s93
    %p100 = scmp.eq.s32.totalorder %s20, 1
    %p101 = por %p99, %p100
    %p102 = scmp.ne.s32.totalorder %s93, %s94
    %p103 = scmp.eq.s32.totalorder %s20, 0
    %p104 = por %p102, %p103
    %p105 = scmp.ne.s32.totalorder %s93, %s94
    %p106 = scmp.eq.s32.totalorder %s21, 1
    %p107 = por %p105, %p106
    %p109 = scmp.ne.s32.totalorder %s94, %s108
    %p110 = scmp.eq.s32.totalorder %s21, 0
    %p111 = por %p109, %p110
    %s113 = sadd.s32 %s112, 1
    %p116 = scmp.eq.s32.totalorder %s15, 1
    %p117 = scmp.ne.s32.totalorder %s112, %s114
    %p118 = scmp.eq.s32.totalorder %s15, 0
    %p119 = por %p117, %p118
    %p120 = scmp.ne.s32.totalorder %s112, %s114
    %p121 = scmp.eq.s32.totalorder %s20, 1
    %p122 = por %p120, %p121
    %p123 = scmp.ne.s32.totalorder %s114, %s115
    %p124 = scmp.eq.s32.totalorder %s20, 0
    %p125 = por %p123, %p124
    %p126 = scmp.ne.s32.totalorder %s114, %s115
    %p127 = scmp.eq.s32.totalorder %s21, 1
    %p128 = por %p126, %p127
    %p130 = scmp.ne.s32.totalorder %s115, %s129
    %p131 = scmp.eq.s32.totalorder %s21, 0
    %p132 = por %p130, %p131
    %s134 = sadd.s32 %s133, 1
    %p137 = scmp.eq.s32.totalorder %s15, 1
    %p138 = scmp.ne.s32.totalorder %s133, %s135
    %p139 = scmp.eq.s32.totalorder %s15, 0
    %p140 = por %p138, %p139
    %p141 = scmp.ne.s32.totalorder %s133, %s135
    %p142 = scmp.eq.s32.totalorder %s20, 1
    %p143 = por %p141, %p142
    %p144 = scmp.ne.s32.totalorder %s135, %s136
    %p145 = scmp.eq.s32.totalorder %s20, 0
    %p146 = por %p144, %p145
    %p147 = scmp.ne.s32.totalorder %s135, %s136
    %p148 = scmp.eq.s32.totalorder %s21, 1
    %p149 = por %p147, %p148
    %p151 = scmp.ne.s32.totalorder %s136, %s150
    %p152 = scmp.eq.s32.totalorder %s21, 0
    %p153 = por %p151, %p152
    %s155 = sadd.s32 %s154, 1
    %p158 = scmp.eq.s32.totalorder %s15, 1
    %p159 = scmp.ne.s32.totalorder %s154, %s156
    %p160 = scmp.eq.s32.totalorder %s15, 0
    %p161 = por %p159, %p160
    %p162 = scmp.ne.s32.totalorder %s154, %s156
    %p163 = scmp.eq.s32.totalorder %s20, 1
    %p164 = por %p162, %p163
    %p165 = scmp.ne.s32.totalorder %s156, %s157
    %p166 = scmp.eq.s32.totalorder %s20, 0
    %p167 = por %p165, %p166
    %p168 = scmp.ne.s32.totalorder %s156, %s157
    %p169 = scmp.eq.s32.totalorder %s21, 1
    %p170 = por %p168, %p169
    %p172 = scmp.ne.s32.totalorder %s157, %s171
    %p173 = scmp.eq.s32.totalorder %s21, 0
    %p174 = por %p172, %p173
    %s175 = ssub.s32 %s15, %s22
    %p176 = scmp.eq.s32.totalorder %s175, 0
    %s178 = sadd.s32 %s177, 1
    %s179 = scalar_select %p176, %s177, %s178
    %p182 = pneg %p176
    %p183 = scmp.eq.s32.totalorder %s15, 1
    %p184 = por %p182, %p183
    %p185 = scmp.ne.s32.totalorder %s177, %s180
    %p186 = scmp.eq.s32.totalorder %s15, 0
    %p187 = por %p185, %p186
    %p188 = scmp.ne.s32.totalorder %s177, %s180
    %p189 = scmp.eq.s32.totalorder %s20, 1
    %p190 = por %p188, %p189
    %p191 = scmp.ne.s32.totalorder %s180, %s181
    %p192 = scmp.eq.s32.totalorder %s20, 0
    %p193 = por %p191, %p192
    %p194 = scmp.ne.s32.totalorder %s180, %s181
    %p195 = scmp.eq.s32.totalorder %s21, 1
    %p196 = por %p194, %p195
    %p198 = scmp.ne.s32.totalorder %s181, %s197
    %p199 = scmp.eq.s32.totalorder %s21, 0
    %p200 = por %p198, %p199
    %s201 = ssub.s32 %s15, %s22
    %p202 = scmp.eq.s32.totalorder %s201, 0
    %s204 = sadd.s32 %s203, 1
    %s205 = scalar_select %p202, %s203, %s204
    %p208 = pneg %p202
    %p209 = scmp.eq.s32.totalorder %s15, 1
    %p210 = por %p208, %p209
    %p211 = scmp.ne.s32.totalorder %s203, %s206
    %p212 = scmp.eq.s32.totalorder %s15, 0
    %p213 = por %p211, %p212
    %p214 = scmp.ne.s32.totalorder %s203, %s206
    %p215 = scmp.eq.s32.totalorder %s20, 1
    %p216 = por %p214, %p215
    %p217 = scmp.ne.s32.totalorder %s206, %s207
    %p218 = scmp.eq.s32.totalorder %s20, 0
    %p219 = por %p217, %p218
    %p220 = scmp.ne.s32.totalorder %s206, %s207
    %p221 = scmp.eq.s32.totalorder %s21, 1
    %p222 = por %p220, %p221
    %p224 = scmp.ne.s32.totalorder %s207, %s223
    %p225 = scmp.eq.s32.totalorder %s21, 0
    %p226 = por %p224, %p225
    %p227 = scmp.le.s32.totalorder 1, %s15
    %p228 = scmp.lt.s32.totalorder %s15, 3
    %p229 = pnand %p227, %p228
    %p230 = pneg %p229
    // Predicated region
    $region9: #{resblk_forward.4} parent=5 // pred_check
      _
    $region10: #{resblk_forward.4} parent=5 // pred_check_branch
      %232 = sbr.rel (%p229) target = $region12
    $region11: #{resblk_forward.4} parent=5 // pred_region
      %s233 = ssub.s32 %s15, 1
      // Predicated region
      $region13: #{resblk_forward.4} parent=11 // pred_check
        %p234 = pneg %p62
      $region14: #{resblk_forward.4} parent=11 // pred_check_branch
        %236 = sbr.rel (%p234) target = $region16
      $region15: #{resblk_forward.4} parent=11 // pred_region
        _
      $region16: #{resblk_forward.4} parent=11 // pred_fallthru
        _
      // Predicated region
      $region17: #{resblk_forward.4} parent=11 // pred_check
        %p237 = pneg %p83
      $region18: #{resblk_forward.4} parent=11 // pred_check_branch
        %239 = sbr.rel (%p237) target = $region20
      $region19: #{resblk_forward.4} parent=11 // pred_region
        _
      $region20: #{resblk_forward.4} parent=11 // pred_fallthru
        _
      // Predicated region
      $region21: #{resblk_forward.4} parent=11 // pred_check
        %p240 = pneg %p104
      $region22: #{resblk_forward.4} parent=11 // pred_check_branch
        %242 = sbr.rel (%p240) target = $region24
      $region23: #{resblk_forward.4} parent=11 // pred_region
        _
      $region24: #{resblk_forward.4} parent=11 // pred_fallthru
        _
      // Predicated region
      $region25: #{resblk_forward.4} parent=11 // pred_check
        %p243 = pneg %p125
      $region26: #{resblk_forward.4} parent=11 // pred_check_branch
        %245 = sbr.rel (%p243) target = $region28
      $region27: #{resblk_forward.4} parent=11 // pred_region
        _
      $region28: #{resblk_forward.4} parent=11 // pred_fallthru
        _
      // Predicated region
      $region29: #{resblk_forward.4} parent=11 // pred_check
        %p246 = pneg %p146
      $region30: #{resblk_forward.4} parent=11 // pred_check_branch
        %248 = sbr.rel (%p246) target = $region32
      $region31: #{resblk_forward.4} parent=11 // pred_region
        _
      $region32: #{resblk_forward.4} parent=11 // pred_fallthru
        _
      // Predicated region
      $region33: #{resblk_forward.4} parent=11 // pred_check
        %p249 = pneg %p167
      $region34: #{resblk_forward.4} parent=11 // pred_check_branch
        %251 = sbr.rel (%p249) target = $region36
      $region35: #{resblk_forward.4} parent=11 // pred_region
        _
      $region36: #{resblk_forward.4} parent=11 // pred_fallthru
        _
    $region12: #{resblk_forward.4} parent=5 // pred_fallthru
      _
    %p252 = scmp.lt.s32.totalorder %s15, 2
    // Predicated region
    $region37: #{resblk_forward.4} parent=5 // pred_check
      %p253 = pneg %p252
    $region38: #{resblk_forward.4} parent=5 // pred_check_branch
      %255 = sbr.rel (%p253) target = $region40
    $region39: #{resblk_forward.4} parent=5 // pred_region
      // Predicated region
      $region41: #{resblk_forward.4} parent=39 // pred_check
        %p256 = pneg %p35
      $region42: #{resblk_forward.4} parent=39 // pred_check_branch
        %258 = sbr.rel (%p256) target = $region44
      $region43: #{resblk_forward.4} parent=39 // pred_region
        %p259 = scmp.lt.s32.totalorder %s15, 1
        %s260 = scalar_select %p259, %s15, 1
        %s261 = smul.addr %s260, 14
        %s262 = smul.addr %s261, 4
        %s263 = scalar_lea.vmem %s0, %s262
      $region44: #{resblk_forward.4} parent=39 // pred_fallthru
        _
    $region40: #{resblk_forward.4} parent=5 // pred_fallthru
      _
    %p264 = scmp.le.s32.totalorder 1, %s15
    %p265 = scmp.lt.s32.totalorder %s15, 3
    %p266 = pnand %p264, %p265
    %p267 = pneg %p266
    // Predicated region
    $region45: #{resblk_forward.4} parent=5 // pred_check
      _
    $region46: #{resblk_forward.4} parent=5 // pred_check_branch
      %269 = sbr.rel (%p266) target = $region48
    $region47: #{resblk_forward.4} parent=5 // pred_region
      %s270 = ssub.s32 %s15, 1
      %p271 = scmp.lt.s32.totalorder %s20, 1
      %s272 = scalar_select %p271, %s20, 1
      %s273 = smul.addr %s272, 14
      %s274 = smul.addr %s273, 4
      %s275 = scalar_lea.vmem %s0, %s274
      %p276 = pneg %p41
      %p277 = pneg %p38
      %p278 = pneg %p62
      %p279 = pneg %p59
      %p280 = pneg %p83
      %p281 = pneg %p80
      %p282 = pneg %p104
      %p283 = pneg %p101
      %p284 = pneg %p125
      %p285 = pneg %p122
      %p286 = pneg %p146
      %p287 = pneg %p143
      %p288 = pneg %p167
      %p289 = pneg %p164
      %p290 = pneg %p193
      %p291 = pneg %p190
      %p292 = scmp.lt.s32.totalorder %s20, 1
      %s293 = scalar_select %p292, %s20, 1
      %s294 = smul.addr %s293, 9
      %s295 = smul.addr %s294, 4
      %s296 = scalar_lea.vmem %s7, %s295
      %p297 = pneg %p219
      %p298 = pneg %p216
      %p299 = scmp.lt.s32.totalorder %s20, 1
      %s300 = scalar_select %p299, %s20, 1
      %s301 = smul.addr %s300, 2
      %s302 = scalar_lea.vmem %s8, %s301
      %p303 = scmp.lt.s32.totalorder %s20, 1
      %s304 = scalar_select %p303, %s20, 1
      %s305 = smul.addr %s304, 14
      %s306 = smul.addr %s305, 4
      %s307 = scalar_lea.vmem %s0, %s306
      %p308 = scmp.lt.s32.totalorder %s20, 1
      %s309 = scalar_select %p308, %s20, 1
      %s310 = smul.addr %s309, 9
      %s311 = smul.addr %s310, 4
      %s312 = scalar_lea.vmem %s7, %s311
      %p313 = scmp.lt.s32.totalorder %s20, 1
      %s314 = scalar_select %p313, %s20, 1
      %s315 = smul.addr %s314, 2
      %s316 = scalar_lea.vmem %s8, %s315
      %v317 = vld [vmem:[%s4] sm:$0x1]
      %v318 = vmul.f32 %v317, 0.0078125
      %v319 = vld [vmem:[%s4 + $0x1] sm:$0x1]
      %v320 = vmul.f32 %v319, 0.0078125
      %v321 = vmul.f32 %v318, %v318
      %v322 = vsub.f32 %v320, %v321
      %v323 = vmax.f32 %v322, 0.0
      %v324 = vld [vmem:[%s5] sm:$0x1]
      %v325 = vadd.f32 %v323, 1e-05
      %v326 = vrsqrt.pop %v325
      %v327 = vmul.f32 %v326, %v325
      %v328 = vmul.f32 %v327, %v326
      %v329 = vmul.f32 0.5, %v328
      %v330 = vsub.f32 1.5, %v329
      %v331 = vmul.f32 %v326, %v330
      %vm332 = vweird.f32 %v325
      %vm333 = vweird.f32 %v326
      %vm334 = vmor %vm332, %vm333
      %v335 = vsel %vm334, %v326, %v331
      %v336 = vmul.f32 %v324, %v335
      %v337 = vld [vmem:[%s6] sm:$0x1]
      %v338 = vmul.f32 %v318, %v336
      %v339 = vsub.f32 %v337, %v338
      %v340 = vld [vmem:[%s307] sm:$0xf]
      %v341 = vld [vmem:[%s307 + $0x4] sm:$0xf]
      %v342 = vld [vmem:[%s307 + $0x8] sm:$0xf]
      %v343 = vld [vmem:[%s307 + $0xc] sm:$0xf]
      %v344 = vld [vmem:[%s307 + $0x10] sm:$0xf]
      %v345 = vld [vmem:[%s307 + $0x14] sm:$0xf]
      %v346 = vld [vmem:[%s307 + $0x18] sm:$0xf]
      %v347 = vld [vmem:[%s307 + $0x1c] sm:$0xf]
      %v348 = vld [vmem:[%s307 + $0x20] sm:$0xf]
      %v349 = vld [vmem:[%s307 + $0x24] sm:$0xf]
      %v350 = vld [vmem:[%s307 + $0x28] sm:$0xf]
      %v351 = vld [vmem:[%s307 + $0x2c] sm:$0xf]
      %v352 = vld [vmem:[%s307 + $0x30] sm:$0xf]
      %v353 = vld [vmem:[%s307 + $0x34] sm:$0xf]
      %v354 = vunpack.c.l.bf16 %v340
      %v355 = vunpack.c.l.bf16 %v341
      %v356 = vunpack.c.l.bf16 %v342
      %v357 = vunpack.c.l.bf16 %v343
      %v358 = vunpack.c.l.bf16 %v344
      %v359 = vunpack.c.l.bf16 %v345
      %v360 = vunpack.c.l.bf16 %v346
      %v361 = vunpack.c.l.bf16 %v347
      %v362 = vunpack.c.l.bf16 %v348
      %v363 = vunpack.c.l.bf16 %v349
      %v364 = vunpack.c.l.bf16 %v350
      %v365 = vunpack.c.l.bf16 %v351
      %v366 = vunpack.c.l.bf16 %v352
      %v367 = vunpack.c.l.bf16 %v353
      %v369 = vperm.slane %v336, 0
      %v371 = vmul.f32 %v354, %v369
      %v372 = vmul.f32 %v355, %v369
      %v373 = vmul.f32 %v356, %v369
      %v374 = vmul.f32 %v357, %v369
      %v375 = vmul.f32 %v358, %v369
      %v376 = vmul.f32 %v359, %v369
      %v377 = vmul.f32 %v360, %v369
      %v378 = vmul.f32 %v361, %v369
      %v379 = vmul.f32 %v362, %v369
      %v380 = vmul.f32 %v363, %v369
      %v381 = vmul.f32 %v364, %v369
      %v382 = vmul.f32 %v365, %v369
      %v383 = vmul.f32 %v366, %v369
      %v384 = vmul.f32 %v367, %v369
      %v386 = vperm.slane %v339, 0
      %v388 = vadd.f32 %v371, %v386
      %v389 = vadd.f32 %v372, %v386
      %v390 = vadd.f32 %v373, %v386
      %v391 = vadd.f32 %v374, %v386
      %v392 = vadd.f32 %v375, %v386
      %v393 = vadd.f32 %v376, %v386
      %v394 = vadd.f32 %v377, %v386
      %v395 = vadd.f32 %v378, %v386
      %v396 = vadd.f32 %v379, %v386
      %v397 = vadd.f32 %v380, %v386
      %v398 = vadd.f32 %v381, %v386
      %v399 = vadd.f32 %v382, %v386
      %v400 = vadd.f32 %v383, %v386
      %v401 = vadd.f32 %v384, %v386
      %v402 = vmax.f32 %v388, 0.0
      %v403 = vmax.f32 %v389, 0.0
      %v404 = vmax.f32 %v390, 0.0
      %v405 = vmax.f32 %v391, 0.0
      %v406 = vmax.f32 %v392, 0.0
      %v407 = vmax.f32 %v393, 0.0
      %v408 = vmax.f32 %v394, 0.0
      %v409 = vmax.f32 %v395, 0.0
      %v410 = vmax.f32 %v396, 0.0
      %v411 = vmax.f32 %v397, 0.0
      %v412 = vmax.f32 %v398, 0.0
      %v413 = vmax.f32 %v399, 0.0
      %v414 = vmax.f32 %v400, 0.0
      %v415 = vmax.f32 %v401, 0.0
      %v416 = vld [vmem:[%s2] sm:$0xff]
      %v417 = vld [vmem:[%s2 + $0x8] sm:$0xff]
      %v418 = vld [vmem:[%s2 + $0x10] sm:$0xff]
      %v419 = vld [vmem:[%s2 + $0x18] sm:$0xff]
      %v420 = vld [vmem:[%s2 + $0x20] sm:$0xff]
      %v421 = vld [vmem:[%s2 + $0x28] sm:$0xff]
      %v422 = vld [vmem:[%s2 + $0x30] sm:$0xff]
      %v423 = vld [vmem:[%s2 + $0x38] sm:$0xff]
      %v424 = vld [vmem:[%s2 + $0x40] sm:$0xff]
      %v425 = vld [vmem:[%s2 + $0x48] sm:$0xff]
      %v426 = vld [vmem:[%s2 + $0x50] sm:$0xff]
      %v427 = vld [vmem:[%s2 + $0x58] sm:$0xff]
      %v428 = vld [vmem:[%s2 + $0x60] sm:$0xff]
      %v429 = vld [vmem:[%s2 + $0x68] sm:$0xff]
      %431 = vset.pattern.permute.xlu0 0
      %432 = vperm.xlu0 %431, %v416
      %v433 = vpop.permute.xlu0 %432
      %436 = vset.pattern.permute.xlu0 0
      %437 = vperm.xlu0 %436, %v417
      %v438 = vpop.permute.xlu0 %437
      %441 = vset.pattern.permute.xlu0 0
      %442 = vperm.xlu0 %441, %v418
      %v443 = vpop.permute.xlu0 %442
      %446 = vset.pattern.permute.xlu0 0
      %447 = vperm.xlu0 %446, %v419
      %v448 = vpop.permute.xlu0 %447
      %451 = vset.pattern.permute.xlu0 0
      %452 = vperm.xlu0 %451, %v420
      %v453 = vpop.permute.xlu0 %452
      %456 = vset.pattern.permute.xlu0 0
      %457 = vperm.xlu0 %456, %v421
      %v458 = vpop.permute.xlu0 %457
      %461 = vset.pattern.permute.xlu0 0
      %462 = vperm.xlu0 %461, %v422
      %v463 = vpop.permute.xlu0 %462
      %466 = vset.pattern.permute.xlu0 0
      %467 = vperm.xlu0 %466, %v423
      %v468 = vpop.permute.xlu0 %467
      %471 = vset.pattern.permute.xlu0 0
      %472 = vperm.xlu0 %471, %v424
      %v473 = vpop.permute.xlu0 %472
      %476 = vset.pattern.permute.xlu0 0
      %477 = vperm.xlu0 %476, %v425
      %v478 = vpop.permute.xlu0 %477
      %481 = vset.pattern.permute.xlu0 0
      %482 = vperm.xlu0 %481, %v426
      %v483 = vpop.permute.xlu0 %482
      %486 = vset.pattern.permute.xlu0 0
      %487 = vperm.xlu0 %486, %v427
      %v488 = vpop.permute.xlu0 %487
      %491 = vset.pattern.permute.xlu0 0
      %492 = vperm.xlu0 %491, %v428
      %v493 = vpop.permute.xlu0 %492
      %496 = vset.pattern.permute.xlu0 0
      %497 = vperm.xlu0 %496, %v429
      %v498 = vpop.permute.xlu0 %497
      %v500 = vmul.f32 %v402, %v433
      %v501 = vmul.f32 %v403, %v438
      %v502 = vmul.f32 %v404, %v443
      %v503 = vmul.f32 %v405, %v448
      %v504 = vmul.f32 %v406, %v453
      %v505 = vmul.f32 %v407, %v458
      %v506 = vmul.f32 %v408, %v463
      %v507 = vmul.f32 %v409, %v468
      %v508 = vmul.f32 %v410, %v473
      %v509 = vmul.f32 %v411, %v478
      %v510 = vmul.f32 %v412, %v483
      %v511 = vmul.f32 %v413, %v488
      %v512 = vmul.f32 %v414, %v493
      %v513 = vmul.f32 %v415, %v498
      %v514 = vpack.c.bf16 %v500, %v500
      %v515 = vpack.c.bf16 %v501, %v501
      %v516 = vpack.c.bf16 %v502, %v502
      %v517 = vpack.c.bf16 %v503, %v503
      %v518 = vpack.c.bf16 %v504, %v504
      %v519 = vpack.c.bf16 %v505, %v505
      %v520 = vpack.c.bf16 %v506, %v506
      %v521 = vpack.c.bf16 %v507, %v507
      %v522 = vpack.c.bf16 %v508, %v508
      %v523 = vpack.c.bf16 %v509, %v509
      %v524 = vpack.c.bf16 %v510, %v510
      %v525 = vpack.c.bf16 %v511, %v511
      %v526 = vpack.c.bf16 %v512, %v512
      %v527 = vpack.c.bf16 %v513, %v513
      %528 = vst [vmem:[#allocation2] sm:$0xf] %v514
      %529 = vst [vmem:[#allocation2 + $0x4] sm:$0xf] %v515
      %530 = vst [vmem:[#allocation2 + $0x8] sm:$0xf] %v516
      %531 = vst [vmem:[#allocation2 + $0xc] sm:$0xf] %v517
      %532 = vst [vmem:[#allocation2 + $0x10] sm:$0xf] %v518
      %533 = vst [vmem:[#allocation2 + $0x14] sm:$0xf] %v519
      %534 = vst [vmem:[#allocation2 + $0x18] sm:$0xf] %v520
      %535 = vst [vmem:[#allocation2 + $0x1c] sm:$0xf] %v521
      %536 = vst [vmem:[#allocation2 + $0x20] sm:$0xf] %v522
      %537 = vst [vmem:[#allocation2 + $0x24] sm:$0xf] %v523
      %538 = vst [vmem:[#allocation2 + $0x28] sm:$0xf] %v524
      %539 = vst [vmem:[#allocation2 + $0x2c] sm:$0xf] %v525
      %540 = vst [vmem:[#allocation2 + $0x30] sm:$0xf] %v526
      %541 = vst [vmem:[#allocation2 + $0x34] sm:$0xf] %v527
      %v542 = vld [vmem:[#allocation2] sm:$0x8]
      %v543 = vld [vmem:[#allocation2 + $0x4] sm:$0xf]
      %v544 = vld [vmem:[#allocation2 + $0x8] sm:$0xf]
      %v545 = vld [vmem:[#allocation2 + $0xc] sm:$0xf]
      %v546 = vld [vmem:[#allocation2 + $0x10] sm:$0xf]
      %v547 = vld [vmem:[#allocation2 + $0x14] sm:$0xf]
      %v548 = vld [vmem:[#allocation2 + $0x18] sm:$0xf]
      %v549 = vld [vmem:[#allocation2 + $0x1c] sm:$0xf]
      %v550 = vld [vmem:[#allocation2 + $0x20] sm:$0xf]
      %v551 = vld [vmem:[#allocation2 + $0x24] sm:$0x7]
      %v552 = vld [vmem:[%s1] sm:$0xf]
      %v553 = vld [vmem:[%s1 + $0x4] sm:$0xf]
      %v554 = vld [vmem:[%s1 + $0x8] sm:$0xf]
      %v555 = vld [vmem:[%s1 + $0xc] sm:$0xf]
      %v556 = vld [vmem:[%s1 + $0x10] sm:$0xf]
      %v557 = vld [vmem:[%s1 + $0x14] sm:$0xf]
      %v558 = vld [vmem:[%s1 + $0x18] sm:$0xf]
      %v559 = vld [vmem:[%s1 + $0x1c] sm:$0xf]
      %v560 = vld [vmem:[%s1 + $0x20] sm:$0xf]
      %v561 = vld [vmem:[%s1 + $0x24] sm:$0xf]
      %v562 = vld [vmem:[%s1 + $0x28] sm:$0xf]
      %v563 = vld [vmem:[%s1 + $0x2c] sm:$0xf]
      %v564 = vld [vmem:[%s1 + $0x30] sm:$0xf]
      %v565 = vld [vmem:[%s1 + $0x34] sm:$0xf]
      %v566 = vld [vmem:[%s1 + $0x38] sm:$0xf]
      %v567 = vld [vmem:[%s1 + $0x3c] sm:$0xf]
      %v568 = vld [vmem:[#allocation2 + $0x24] sm:$0xf]
      %s569 = scalar_lea.vmem %s1, 64
      %v570 = vld [vmem:[%s569] sm:$0xf]
      %v571 = vld [vmem:[%s569 + $0x4] sm:$0xf]
      %v572 = vld [vmem:[%s569 + $0x8] sm:$0xf]
      %v573 = vld [vmem:[%s569 + $0xc] sm:$0xf]
      %v574 = vld [vmem:[%s569 + $0x10] sm:$0xf]
      %v575 = vld [vmem:[%s569 + $0x14] sm:$0xf]
      %v576 = vld [vmem:[%s569 + $0x18] sm:$0xf]
      %v577 = vld [vmem:[%s569 + $0x1c] sm:$0xf]
      %v578 = vld [vmem:[%s569 + $0x20] sm:$0xf]
      %v579 = vld [vmem:[%s569 + $0x24] sm:$0xf]
      %v580 = vld [vmem:[%s569 + $0x28] sm:$0xf]
      %v581 = vld [vmem:[%s569 + $0x2c] sm:$0xf]
      %v582 = vld [vmem:[%s569 + $0x30] sm:$0xf]
      %v583 = vld [vmem:[%s569 + $0x34] sm:$0xf]
      %v584 = vld [vmem:[%s569 + $0x38] sm:$0xf]
      %v585 = vld [vmem:[%s569 + $0x3c] sm:$0xf]
      %v596 = vunpack.c.l.b16 %v542
      %v597 = vunpack.c.l.b16 %v543
      %v598 = vunpack.c.l.b16 %v544
      %v599 = vunpack.c.l.b16 %v545
      %v600 = vunpack.c.l.b16 %v546
      %v601 = vunpack.c.l.b16 %v547
      %v602 = vunpack.c.l.b16 %v548
      %v603 = vunpack.c.l.b16 %v549
      %v604 = vunpack.c.l.b16 %v550
      %v605 = vunpack.c.l.b16 %v568
      %v606 = vpack.c.b16 %v597, %v596
      %v607 = vpack.c.b16 %v599, %v598
      %v608 = vpack.c.b16 %v601, %v600
      %v609 = vpack.c.b16 %v603, %v602
      %v610 = vpack.c.b16 %v605, %v604
      %vm611 = vsmask.f32 4352
      %v613 = vshrl.u32 %v606, 16
      %v615 = vrot.slane %v613, 3
      %v616 = vshll.u32 %v606, 16
      %v618 = vrot.slane %v616, 4
      %v619 = vor.u32 %v615, %v618
      %v621 = vshrl.u32 %v607, 16
      %v623 = vrot.slane %v621, 3
      %v624 = vshll.u32 %v607, 16
      %v626 = vrot.slane %v624, 4
      %v627 = vor.u32 %v623, %v626
      %v628 = vsel %vm611, %v619, %v627
      %v630 = vshrl.u32 %v608, 16
      %v632 = vrot.slane %v630, 3
      %v633 = vshll.u32 %v608, 16
      %v635 = vrot.slane %v633, 4
      %v636 = vor.u32 %v632, %v635
      %v637 = vsel %vm611, %v627, %v636
      %v639 = vshrl.u32 %v609, 16
      %v641 = vrot.slane %v639, 3
      %v642 = vshll.u32 %v609, 16
      %v644 = vrot.slane %v642, 4
      %v645 = vor.u32 %v641, %v644
      %v646 = vsel %vm611, %v636, %v645
      %v648 = vshrl.u32 %v610, 16
      %v650 = vrot.slane %v648, 3
      %v651 = vshll.u32 %v610, 16
      %v653 = vrot.slane %v651, 4
      %v654 = vor.u32 %v650, %v653
      %v655 = vsel %vm611, %v645, %v654
      %v677 = vunpack.c.l.b16 %v570
      %v678 = vunpack.c.l.b16 %v571
      %v679 = vunpack.c.l.b16 %v572
      %v680 = vunpack.c.l.b16 %v573
      %v681 = vunpack.c.l.b16 %v574
      %v682 = vunpack.c.l.b16 %v575
      %v683 = vunpack.c.l.b16 %v576
      %v684 = vunpack.c.l.b16 %v577
      %v685 = vunpack.c.l.b16 %v578
      %v686 = vunpack.c.l.b16 %v579
      %v687 = vunpack.c.l.b16 %v580
      %v688 = vunpack.c.l.b16 %v581
      %v689 = vunpack.c.l.b16 %v582
      %v690 = vunpack.c.l.b16 %v583
      %v691 = vunpack.c.l.b16 %v584
      %v692 = vunpack.c.l.b16 %v585
      %v693 = vpack.c.b16 %v678, %v677
      %v694 = vpack.c.b16 %v680, %v679
      %v695 = vpack.c.b16 %v682, %v681
      %v696 = vpack.c.b16 %v684, %v683
      %v697 = vpack.c.b16 %v686, %v685
      %v698 = vpack.c.b16 %v688, %v687
      %v699 = vpack.c.b16 %v690, %v689
      %v700 = vpack.c.b16 %v692, %v691
      %709 = vmatpush.bf16.msra.mxu0 %v700
      %710 = vmatpush.bf16.msra.mxu0 %v699
      %711 = vmatpush.bf16.msra.mxu0 %v698
      %712 = vmatpush.bf16.msra.mxu0 %v697
      %713 = vmatpush.bf16.msra.mxu0 %v696
      %714 = vmatpush.bf16.msra.mxu0 %v695
      %715 = vmatpush.bf16.msra.mxu0 %v694
      %716 = vmatpush.bf16.msra.mxu0 %v693
      %717 = vmatmul.bf16.gmra.mxu0 %v628
      %v718 = vpop.f32.mrf.mxu0
      %v719 = vadd.f32 0.0, %v718
      %v720 = vpop.f32.mrf.mxu0
      %v721 = vadd.f32 0.0, %v720
      %722 = vmatmul.bf16.gmra.mxu0 %v637
      %v723 = vpop.f32.mrf.mxu0
      %v724 = vadd.f32 0.0, %v723
      %v725 = vpop.f32.mrf.mxu0
      %v726 = vadd.f32 0.0, %v725
      %727 = vmatmul.bf16.gmra.mxu0 %v646
      %v728 = vpop.f32.mrf.mxu0
      %v729 = vadd.f32 0.0, %v728
      %v730 = vpop.f32.mrf.mxu0
      %v731 = vadd.f32 0.0, %v730
      %732 = vmatmul.bf16.gmra.mxu0 %v655
      %v733 = vpop.f32.mrf.mxu0
      %v734 = vadd.f32 0.0, %v733
      %v735 = vpop.f32.mrf.mxu0
      %v736 = vadd.f32 0.0, %v735
      %737 = vmatmul.bf16.gmra.mxu0 %v654
      %v738 = vpop.f32.mrf.mxu0
      %v739 = vadd.f32 0.0, %v738
      %v740 = vpop.f32.mrf.mxu0
      %741 = vdwg.mxu0
      %v743 = vunpack.c.l.b16 %v551
      %v744 = vpack.c.b16 %v743, %v604
      %vm745 = vcmask 1044480
      %v746 = vrot.slane %v606, 3
      %v747 = vrot.slane %v607, 3
      %v748 = vsel %vm745, %v746, %v747
      %v749 = vrot.slane %v608, 3
      %v750 = vsel %vm745, %v747, %v749
      %v751 = vrot.slane %v609, 3
      %v752 = vsel %vm745, %v749, %v751
      %v753 = vrot.slane %v744, 3
      %v754 = vsel %vm745, %v751, %v753
      %v776 = vunpack.c.l.b16 %v552
      %v777 = vunpack.c.l.b16 %v553
      %v778 = vunpack.c.l.b16 %v554
      %v779 = vunpack.c.l.b16 %v555
      %v780 = vunpack.c.l.b16 %v556
      %v781 = vunpack.c.l.b16 %v557
      %v782 = vunpack.c.l.b16 %v558
      %v783 = vunpack.c.l.b16 %v559
      %v784 = vunpack.c.l.b16 %v560
      %v785 = vunpack.c.l.b16 %v561
      %v786 = vunpack.c.l.b16 %v562
      %v787 = vunpack.c.l.b16 %v563
      %v788 = vunpack.c.l.b16 %v564
      %v789 = vunpack.c.l.b16 %v565
      %v790 = vunpack.c.l.b16 %v566
      %v791 = vunpack.c.l.b16 %v567
      %v792 = vpack.c.b16 %v777, %v776
      %v793 = vpack.c.b16 %v779, %v778
      %v794 = vpack.c.b16 %v781, %v780
      %v795 = vpack.c.b16 %v783, %v782
      %v796 = vpack.c.b16 %v785, %v784
      %v797 = vpack.c.b16 %v787, %v786
      %v798 = vpack.c.b16 %v789, %v788
      %v799 = vpack.c.b16 %v791, %v790
      %808 = vmatpush.bf16.msra.mxu0 %v799
      %809 = vmatpush.bf16.msra.mxu0 %v798
      %810 = vmatpush.bf16.msra.mxu0 %v797
      %811 = vmatpush.bf16.msra.mxu0 %v796
      %812 = vmatpush.bf16.msra.mxu0 %v795
      %813 = vmatpush.bf16.msra.mxu0 %v794
      %814 = vmatpush.bf16.msra.mxu0 %v793
      %815 = vmatpush.bf16.msra.mxu0 %v792
      %816 = vmatmul.bf16.gmra.mxu0 %v748
      %v817 = vpop.f32.mrf.mxu0
      %v818 = vadd.f32 %v719, %v817
      %v819 = vpop.f32.mrf.mxu0
      %v820 = vadd.f32 %v721, %v819
      %821 = vmatmul.bf16.gmra.mxu0 %v750
      %v822 = vpop.f32.mrf.mxu0
      %v823 = vadd.f32 %v724, %v822
      %v824 = vpop.f32.mrf.mxu0
      %v825 = vadd.f32 %v726, %v824
      %826 = vmatmul.bf16.gmra.mxu0 %v752
      %v827 = vpop.f32.mrf.mxu0
      %v828 = vadd.f32 %v729, %v827
      %v829 = vpop.f32.mrf.mxu0
      %v830 = vadd.f32 %v731, %v829
      %831 = vmatmul.bf16.gmra.mxu0 %v754
      %v832 = vpop.f32.mrf.mxu0
      %v833 = vadd.f32 %v734, %v832
      %v834 = vpop.f32.mrf.mxu0
      %v835 = vadd.f32 %v736, %v834
      %836 = vmatmul.bf16.gmra.mxu0 %v753
      %v837 = vpop.f32.mrf.mxu0
      %v838 = vadd.f32 %v739, %v837
      %v839 = vpop.f32.mrf.mxu0
      %840 = vdwg.mxu0
      %s841 = scalar_lea.vmem %s1, 128
      %v842 = vld [vmem:[%s841] sm:$0xf]
      %v843 = vld [vmem:[%s841 + $0x4] sm:$0xf]
      %v844 = vld [vmem:[%s841 + $0x8] sm:$0xf]
      %v845 = vld [vmem:[%s841 + $0xc] sm:$0xf]
      %v846 = vld [vmem:[%s841 + $0x10] sm:$0xf]
      %v847 = vld [vmem:[%s841 + $0x14] sm:$0xf]
      %v848 = vld [vmem:[%s841 + $0x18] sm:$0xf]
      %v849 = vld [vmem:[%s841 + $0x1c] sm:$0xf]
      %v850 = vld [vmem:[%s841 + $0x20] sm:$0xf]
      %v851 = vld [vmem:[%s841 + $0x24] sm:$0xf]
      %v852 = vld [vmem:[%s841 + $0x28] sm:$0xf]
      %v853 = vld [vmem:[%s841 + $0x2c] sm:$0xf]
      %v854 = vld [vmem:[%s841 + $0x30] sm:$0xf]
      %v855 = vld [vmem:[%s841 + $0x34] sm:$0xf]
      %v856 = vld [vmem:[%s841 + $0x38] sm:$0xf]
      %v857 = vld [vmem:[%s841 + $0x3c] sm:$0xf]
      %v858 = vpack.c.b16 %v598, %v597
      %v859 = vpack.c.b16 %v600, %v599
      %v860 = vpack.c.b16 %v602, %v601
      %v861 = vpack.c.b16 %v604, %v603
      %v862 = vpack.c.b16 %v605, %v605
      %v884 = vunpack.c.l.b16 %v842
      %v885 = vunpack.c.l.b16 %v843
      %v886 = vunpack.c.l.b16 %v844
      %v887 = vunpack.c.l.b16 %v845
      %v888 = vunpack.c.l.b16 %v846
      %v889 = vunpack.c.l.b16 %v847
      %v890 = vunpack.c.l.b16 %v848
      %v891 = vunpack.c.l.b16 %v849
      %v892 = vunpack.c.l.b16 %v850
      %v893 = vunpack.c.l.b16 %v851
      %v894 = vunpack.c.l.b16 %v852
      %v895 = vunpack.c.l.b16 %v853
      %v896 = vunpack.c.l.b16 %v854
      %v897 = vunpack.c.l.b16 %v855
      %v898 = vunpack.c.l.b16 %v856
      %v899 = vunpack.c.l.b16 %v857
      %v900 = vpack.c.b16 %v885, %v884
      %v901 = vpack.c.b16 %v887, %v886
      %v902 = vpack.c.b16 %v889, %v888
      %v903 = vpack.c.b16 %v891, %v890
      %v904 = vpack.c.b16 %v893, %v892
      %v905 = vpack.c.b16 %v895, %v894
      %v906 = vpack.c.b16 %v897, %v896
      %v907 = vpack.c.b16 %v899, %v898
      %916 = vmatpush.bf16.msra.mxu0 %v907
      %917 = vmatpush.bf16.msra.mxu0 %v906
      %918 = vmatpush.bf16.msra.mxu0 %v905
      %919 = vmatpush.bf16.msra.mxu0 %v904
      %920 = vmatpush.bf16.msra.mxu0 %v903
      %921 = vmatpush.bf16.msra.mxu0 %v902
      %922 = vmatpush.bf16.msra.mxu0 %v901
      %923 = vmatpush.bf16.msra.mxu0 %v900
      %924 = vmatmul.bf16.gmra.mxu0 %v858
      %v925 = vpop.f32.mrf.mxu0
      %v926 = vadd.f32 0.0, %v925
      %v927 = vpop.f32.mrf.mxu0
      %v928 = vadd.f32 0.0, %v927
      %929 = vmatmul.bf16.gmra.mxu0 %v859
      %v930 = vpop.f32.mrf.mxu0
      %v931 = vadd.f32 0.0, %v930
      %v932 = vpop.f32.mrf.mxu0
      %v933 = vadd.f32 0.0, %v932
      %934 = vmatmul.bf16.gmra.mxu0 %v860
      %v935 = vpop.f32.mrf.mxu0
      %v936 = vadd.f32 0.0, %v935
      %v937 = vpop.f32.mrf.mxu0
      %v938 = vadd.f32 0.0, %v937
      %939 = vmatmul.bf16.gmra.mxu0 %v861
      %v940 = vpop.f32.mrf.mxu0
      %v941 = vadd.f32 0.0, %v940
      %v942 = vpop.f32.mrf.mxu0
      %v943 = vadd.f32 0.0, %v942
      %944 = vmatmul.bf16.gmra.mxu0 %v862
      %v945 = vpop.f32.mrf.mxu0
      %v946 = vadd.f32 0.0, %v945
      %v947 = vpop.f32.mrf.mxu0
      %948 = vdwg.mxu0
      %v949 = vadd.f32 %v818, %v926
      %v950 = vadd.f32 %v820, %v928
      %v951 = vadd.f32 %v823, %v931
      %v952 = vadd.f32 %v825, %v933
      %v953 = vadd.f32 %v828, %v936
      %v954 = vadd.f32 %v830, %v938
      %v955 = vadd.f32 %v833, %v941
      %v956 = vadd.f32 %v835, %v943
      %v957 = vadd.f32 %v838, %v946
      %v958 = vld [vmem:[#allocation2 + $0x4] sm:$0x8]
      %v959 = vld [vmem:[#allocation2 + $0x8] sm:$0xf]
      %v960 = vld [vmem:[#allocation2 + $0xc] sm:$0xf]
      %v961 = vld [vmem:[#allocation2 + $0x10] sm:$0xf]
      %v962 = vld [vmem:[#allocation2 + $0x14] sm:$0xf]
      %v963 = vld [vmem:[#allocation2 + $0x18] sm:$0xf]
      %v964 = vld [vmem:[#allocation2 + $0x1c] sm:$0xf]
      %v965 = vld [vmem:[#allocation2 + $0x20] sm:$0xf]
      %v966 = vld [vmem:[#allocation2 + $0x24] sm:$0xf]
      %v967 = vld [vmem:[#allocation2 + $0x28] sm:$0xf]
      %s968 = scalar_lea.vmem %s1, 192
      %v969 = vld [vmem:[%s968] sm:$0xf]
      %v970 = vld [vmem:[%s968 + $0x4] sm:$0xf]
      %v971 = vld [vmem:[%s968 + $0x8] sm:$0xf]
      %v972 = vld [vmem:[%s968 + $0xc] sm:$0xf]
      %v973 = vld [vmem:[%s968 + $0x10] sm:$0xf]
      %v974 = vld [vmem:[%s968 + $0x14] sm:$0xf]
      %v975 = vld [vmem:[%s968 + $0x18] sm:$0xf]
      %v976 = vld [vmem:[%s968 + $0x1c] sm:$0xf]
      %v977 = vld [vmem:[%s968 + $0x20] sm:$0xf]
      %v978 = vld [vmem:[%s968 + $0x24] sm:$0xf]
      %v979 = vld [vmem:[%s968 + $0x28] sm:$0xf]
      %v980 = vld [vmem:[%s968 + $0x2c] sm:$0xf]
      %v981 = vld [vmem:[%s968 + $0x30] sm:$0xf]
      %v982 = vld [vmem:[%s968 + $0x34] sm:$0xf]
      %v983 = vld [vmem:[%s968 + $0x38] sm:$0xf]
      %v984 = vld [vmem:[%s968 + $0x3c] sm:$0xf]
      %v995 = vunpack.c.l.b16 %v958
      %v996 = vunpack.c.l.b16 %v959
      %v997 = vunpack.c.l.b16 %v960
      %v998 = vunpack.c.l.b16 %v961
      %v999 = vunpack.c.l.b16 %v962
      %v1000 = vunpack.c.l.b16 %v963
      %v1001 = vunpack.c.l.b16 %v964
      %v1002 = vunpack.c.l.b16 %v965
      %v1003 = vunpack.c.l.b16 %v966
      %v1004 = vunpack.c.l.b16 %v967
      %v1005 = vpack.c.b16 %v996, %v995
      %v1006 = vpack.c.b16 %v998, %v997
      %v1007 = vpack.c.b16 %v1000, %v999
      %v1008 = vpack.c.b16 %v1002, %v1001
      %v1009 = vpack.c.b16 %v1004, %v1003
      %v1011 = vshrl.u32 %v1005, 16
      %v1013 = vrot.slane %v1011, 3
      %v1014 = vshll.u32 %v1005, 16
      %v1016 = vrot.slane %v1014, 4
      %v1017 = vor.u32 %v1013, %v1016
      %v1019 = vshrl.u32 %v1006, 16
      %v1021 = vrot.slane %v1019, 3
      %v1022 = vshll.u32 %v1006, 16
      %v1024 = vrot.slane %v1022, 4
      %v1025 = vor.u32 %v1021, %v1024
      %v1026 = vsel %vm611, %v1017, %v1025
      %v1028 = vshrl.u32 %v1007, 16
      %v1030 = vrot.slane %v1028, 3
      %v1031 = vshll.u32 %v1007, 16
      %v1033 = vrot.slane %v1031, 4
      %v1034 = vor.u32 %v1030, %v1033
      %v1035 = vsel %vm611, %v1025, %v1034
      %v1037 = vshrl.u32 %v1008, 16
      %v1039 = vrot.slane %v1037, 3
      %v1040 = vshll.u32 %v1008, 16
      %v1042 = vrot.slane %v1040, 4
      %v1043 = vor.u32 %v1039, %v1042
      %v1044 = vsel %vm611, %v1034, %v1043
      %v1046 = vshrl.u32 %v1009, 16
      %v1048 = vrot.slane %v1046, 3
      %v1049 = vshll.u32 %v1009, 16
      %v1051 = vrot.slane %v1049, 4
      %v1052 = vor.u32 %v1048, %v1051
      %v1053 = vsel %vm611, %v1043, %v1052
      %v1075 = vunpack.c.l.b16 %v969
      %v1076 = vunpack.c.l.b16 %v970
      %v1077 = vunpack.c.l.b16 %v971
      %v1078 = vunpack.c.l.b16 %v972
      %v1079 = vunpack.c.l.b16 %v973
      %v1080 = vunpack.c.l.b16 %v974
      %v1081 = vunpack.c.l.b16 %v975
      %v1082 = vunpack.c.l.b16 %v976
      %v1083 = vunpack.c.l.b16 %v977
      %v1084 = vunpack.c.l.b16 %v978
      %v1085 = vunpack.c.l.b16 %v979
      %v1086 = vunpack.c.l.b16 %v980
      %v1087 = vunpack.c.l.b16 %v981
      %v1088 = vunpack.c.l.b16 %v982
      %v1089 = vunpack.c.l.b16 %v983
      %v1090 = vunpack.c.l.b16 %v984
      %v1091 = vpack.c.b16 %v1076, %v1075
      %v1092 = vpack.c.b16 %v1078, %v1077
      %v1093 = vpack.c.b16 %v1080, %v1079
      %v1094 = vpack.c.b16 %v1082, %v1081
      %v1095 = vpack.c.b16 %v1084, %v1083
      %v1096 = vpack.c.b16 %v1086, %v1085
      %v1097 = vpack.c.b16 %v1088, %v1087
      %v1098 = vpack.c.b16 %v1090, %v1089
      %1107 = vmatpush.bf16.msra.mxu0 %v1098
      %1108 = vmatpush.bf16.msra.mxu0 %v1097
      %1109 = vmatpush.bf16.msra.mxu0 %v1096
      %1110 = vmatpush.bf16.msra.mxu0 %v1095
      %1111 = vmatpush.bf16.msra.mxu0 %v1094
      %1112 = vmatpush.bf16.msra.mxu0 %v1093
      %1113 = vmatpush.bf16.msra.mxu0 %v1092
      %1114 = vmatpush.bf16.msra.mxu0 %v1091
      %1115 = vmatmul.bf16.gmra.mxu0 %v1026
      %v1116 = vpop.f32.mrf.mxu0
      %v1117 = vadd.f32 0.0, %v1116
      %v1118 = vpop.f32.mrf.mxu0
      %v1119 = vadd.f32 0.0, %v1118
      %1120 = vmatmul.bf16.gmra.mxu0 %v1035
      %v1121 = vpop.f32.mrf.mxu0
      %v1122 = vadd.f32 0.0, %v1121
      %v1123 = vpop.f32.mrf.mxu0
      %v1124 = vadd.f32 0.0, %v1123
      %1125 = vmatmul.bf16.gmra.mxu0 %v1044
      %v1126 = vpop.f32.mrf.mxu0
      %v1127 = vadd.f32 0.0, %v1126
      %v1128 = vpop.f32.mrf.mxu0
      %v1129 = vadd.f32 0.0, %v1128
      %1130 = vmatmul.bf16.gmra.mxu0 %v1053
      %v1131 = vpop.f32.mrf.mxu0
      %v1132 = vadd.f32 0.0, %v1131
      %v1133 = vpop.f32.mrf.mxu0
      %v1134 = vadd.f32 0.0, %v1133
      %1135 = vmatmul.bf16.gmra.mxu0 %v1052
      %v1136 = vpop.f32.mrf.mxu0
      %v1137 = vadd.f32 0.0, %v1136
      %v1138 = vpop.f32.mrf.mxu0
      %1139 = vdwg.mxu0
      %v1140 = vadd.f32 %v949, %v1117
      %v1141 = vadd.f32 %v950, %v1119
      %v1142 = vadd.f32 %v951, %v1122
      %v1143 = vadd.f32 %v952, %v1124
      %v1144 = vadd.f32 %v953, %v1127
      %v1145 = vadd.f32 %v954, %v1129
      %v1146 = vadd.f32 %v955, %v1132
      %v1147 = vadd.f32 %v956, %v1134
      %v1148 = vadd.f32 %v957, %v1137
      %s1149 = scalar_lea.vmem %s1, 256
      %v1150 = vld [vmem:[%s1149] sm:$0xf]
      %v1151 = vld [vmem:[%s1149 + $0x4] sm:$0xf]
      %v1152 = vld [vmem:[%s1149 + $0x8] sm:$0xf]
      %v1153 = vld [vmem:[%s1149 + $0xc] sm:$0xf]
      %v1154 = vld [vmem:[%s1149 + $0x10] sm:$0xf]
      %v1155 = vld [vmem:[%s1149 + $0x14] sm:$0xf]
      %v1156 = vld [vmem:[%s1149 + $0x18] sm:$0xf]
      %v1157 = vld [vmem:[%s1149 + $0x1c] sm:$0xf]
      %v1158 = vld [vmem:[%s1149 + $0x20] sm:$0xf]
      %v1159 = vld [vmem:[%s1149 + $0x24] sm:$0xf]
      %v1160 = vld [vmem:[%s1149 + $0x28] sm:$0xf]
      %v1161 = vld [vmem:[%s1149 + $0x2c] sm:$0xf]
      %v1162 = vld [vmem:[%s1149 + $0x30] sm:$0xf]
      %v1163 = vld [vmem:[%s1149 + $0x34] sm:$0xf]
      %v1164 = vld [vmem:[%s1149 + $0x38] sm:$0xf]
      %v1165 = vld [vmem:[%s1149 + $0x3c] sm:$0xf]
      %v1166 = vpack.c.b16 %v997, %v996
      %v1167 = vpack.c.b16 %v999, %v998
      %v1168 = vpack.c.b16 %v1001, %v1000
      %v1169 = vpack.c.b16 %v1003, %v1002
      %v1170 = vpack.c.b16 %v1004, %v1004
      %v1192 = vunpack.c.l.b16 %v1150
      %v1193 = vunpack.c.l.b16 %v1151
      %v1194 = vunpack.c.l.b16 %v1152
      %v1195 = vunpack.c.l.b16 %v1153
      %v1196 = vunpack.c.l.b16 %v1154
      %v1197 = vunpack.c.l.b16 %v1155
      %v1198 = vunpack.c.l.b16 %v1156
      %v1199 = vunpack.c.l.b16 %v1157
      %v1200 = vunpack.c.l.b16 %v1158
      %v1201 = vunpack.c.l.b16 %v1159
      %v1202 = vunpack.c.l.b16 %v1160
      %v1203 = vunpack.c.l.b16 %v1161
      %v1204 = vunpack.c.l.b16 %v1162
      %v1205 = vunpack.c.l.b16 %v1163
      %v1206 = vunpack.c.l.b16 %v1164
      %v1207 = vunpack.c.l.b16 %v1165
      %v1208 = vpack.c.b16 %v1193, %v1192
      %v1209 = vpack.c.b16 %v1195, %v1194
      %v1210 = vpack.c.b16 %v1197, %v1196
      %v1211 = vpack.c.b16 %v1199, %v1198
      %v1212 = vpack.c.b16 %v1201, %v1200
      %v1213 = vpack.c.b16 %v1203, %v1202
      %v1214 = vpack.c.b16 %v1205, %v1204
      %v1215 = vpack.c.b16 %v1207, %v1206
      %1224 = vmatpush.bf16.msra.mxu0 %v1215
      %1225 = vmatpush.bf16.msra.mxu0 %v1214
      %1226 = vmatpush.bf16.msra.mxu0 %v1213
      %1227 = vmatpush.bf16.msra.mxu0 %v1212
      %1228 = vmatpush.bf16.msra.mxu0 %v1211
      %1229 = vmatpush.bf16.msra.mxu0 %v1210
      %1230 = vmatpush.bf16.msra.mxu0 %v1209
      %1231 = vmatpush.bf16.msra.mxu0 %v1208
      %1232 = vmatmul.bf16.gmra.mxu0 %v1166
      %v1233 = vpop.f32.mrf.mxu0
      %v1234 = vadd.f32 0.0, %v1233
      %v1235 = vpop.f32.mrf.mxu0
      %v1236 = vadd.f32 0.0, %v1235
      %1237 = vmatmul.bf16.gmra.mxu0 %v1167
      %v1238 = vpop.f32.mrf.mxu0
      %v1239 = vadd.f32 0.0, %v1238
      %v1240 = vpop.f32.mrf.mxu0
      %v1241 = vadd.f32 0.0, %v1240
      %1242 = vmatmul.bf16.gmra.mxu0 %v1168
      %v1243 = vpop.f32.mrf.mxu0
      %v1244 = vadd.f32 0.0, %v1243
      %v1245 = vpop.f32.mrf.mxu0
      %v1246 = vadd.f32 0.0, %v1245
      %1247 = vmatmul.bf16.gmra.mxu0 %v1169
      %v1248 = vpop.f32.mrf.mxu0
      %v1249 = vadd.f32 0.0, %v1248
      %v1250 = vpop.f32.mrf.mxu0
      %v1251 = vadd.f32 0.0, %v1250
      %1252 = vmatmul.bf16.gmra.mxu0 %v1170
      %v1253 = vpop.f32.mrf.mxu0
      %v1254 = vadd.f32 0.0, %v1253
      %v1255 = vpop.f32.mrf.mxu0
      %1256 = vdwg.mxu0
      %v1257 = vadd.f32 %v1140, %v1234
      %v1258 = vadd.f32 %v1141, %v1236
      %v1259 = vadd.f32 %v1142, %v1239
      %v1260 = vadd.f32 %v1143, %v1241
      %v1261 = vadd.f32 %v1144, %v1244
      %v1262 = vadd.f32 %v1145, %v1246
      %v1263 = vadd.f32 %v1146, %v1249
      %v1264 = vadd.f32 %v1147, %v1251
      %v1265 = vadd.f32 %v1148, %v1254
      %v1266 = vld [vmem:[#allocation2 + $0x8] sm:$0xf]
      %v1267 = vld [vmem:[#allocation2 + $0xc] sm:$0xf]
      %v1268 = vld [vmem:[#allocation2 + $0x10] sm:$0xf]
      %v1269 = vld [vmem:[#allocation2 + $0x14] sm:$0xf]
      %v1270 = vld [vmem:[#allocation2 + $0x18] sm:$0xf]
      %v1271 = vld [vmem:[#allocation2 + $0x1c] sm:$0xf]
      %v1272 = vld [vmem:[#allocation2 + $0x20] sm:$0xf]
      %v1273 = vld [vmem:[#allocation2 + $0x24] sm:$0xf]
      %v1274 = vld [vmem:[#allocation2 + $0x28] sm:$0xf]
      %v1275 = vld [vmem:[#allocation2 + $0x2c] sm:$0x1]
      %s1276 = scalar_lea.vmem %s1, 320
      %v1277 = vld [vmem:[%s1276] sm:$0xf]
      %v1278 = vld [vmem:[%s1276 + $0x4] sm:$0xf]
      %v1279 = vld [vmem:[%s1276 + $0x8] sm:$0xf]
      %v1280 = vld [vmem:[%s1276 + $0xc] sm:$0xf]
      %v1281 = vld [vmem:[%s1276 + $0x10] sm:$0xf]
      %v1282 = vld [vmem:[%s1276 + $0x14] sm:$0xf]
      %v1283 = vld [vmem:[%s1276 + $0x18] sm:$0xf]
      %v1284 = vld [vmem:[%s1276 + $0x1c] sm:$0xf]
      %v1285 = vld [vmem:[%s1276 + $0x20] sm:$0xf]
      %v1286 = vld [vmem:[%s1276 + $0x24] sm:$0xf]
      %v1287 = vld [vmem:[%s1276 + $0x28] sm:$0xf]
      %v1288 = vld [vmem:[%s1276 + $0x2c] sm:$0xf]
      %v1289 = vld [vmem:[%s1276 + $0x30] sm:$0xf]
      %v1290 = vld [vmem:[%s1276 + $0x34] sm:$0xf]
      %v1291 = vld [vmem:[%s1276 + $0x38] sm:$0xf]
      %v1292 = vld [vmem:[%s1276 + $0x3c] sm:$0xf]
      %v1303 = vunpack.c.l.b16 %v1266
      %v1304 = vunpack.c.l.b16 %v1267
      %v1305 = vunpack.c.l.b16 %v1268
      %v1306 = vunpack.c.l.b16 %v1269
      %v1307 = vunpack.c.l.b16 %v1270
      %v1308 = vunpack.c.l.b16 %v1271
      %v1309 = vunpack.c.l.b16 %v1272
      %v1310 = vunpack.c.l.b16 %v1273
      %v1311 = vunpack.c.l.b16 %v1274
      %v1312 = vunpack.c.l.b16 %v1275
      %v1313 = vpack.c.b16 %v1304, %v1303
      %v1314 = vpack.c.b16 %v1306, %v1305
      %v1315 = vpack.c.b16 %v1308, %v1307
      %v1316 = vpack.c.b16 %v1310, %v1309
      %v1317 = vpack.c.b16 %v1312, %v1311
      %vm1318 = vsmask.f32 7424
      %v1320 = vshrl.u32 %v1313, 16
      %v1322 = vshll.u32 %v1313, 16
      %v1324 = vrot.slane %v1322, 1
      %v1325 = vor.u32 %v1320, %v1324
      %v1327 = vshll.u32 %v1314, 16
      %v1329 = vrot.slane %v1327, 1
      %v1330 = vsel %vm1318, %v1325, %v1329
      %v1331 = vshrl.u32 %v1314, 16
      %v1333 = vor.u32 %v1331, %v1329
      %v1335 = vshll.u32 %v1315, 16
      %v1337 = vrot.slane %v1335, 1
      %v1338 = vsel %vm1318, %v1333, %v1337
      %v1339 = vshrl.u32 %v1315, 16
      %v1341 = vor.u32 %v1339, %v1337
      %v1343 = vshll.u32 %v1316, 16
      %v1345 = vrot.slane %v1343, 1
      %v1346 = vsel %vm1318, %v1341, %v1345
      %v1347 = vshrl.u32 %v1316, 16
      %v1349 = vor.u32 %v1347, %v1345
      %v1351 = vshll.u32 %v1317, 16
      %v1353 = vrot.slane %v1351, 1
      %v1354 = vsel %vm1318, %v1349, %v1353
      %v1355 = vshrl.u32 %v1317, 16
      %v1357 = vor.u32 %v1355, %v1353
      %v1379 = vunpack.c.l.b16 %v1277
      %v1380 = vunpack.c.l.b16 %v1278
      %v1381 = vunpack.c.l.b16 %v1279
      %v1382 = vunpack.c.l.b16 %v1280
      %v1383 = vunpack.c.l.b16 %v1281
      %v1384 = vunpack.c.l.b16 %v1282
      %v1385 = vunpack.c.l.b16 %v1283
      %v1386 = vunpack.c.l.b16 %v1284
      %v1387 = vunpack.c.l.b16 %v1285
      %v1388 = vunpack.c.l.b16 %v1286
      %v1389 = vunpack.c.l.b16 %v1287
      %v1390 = vunpack.c.l.b16 %v1288
      %v1391 = vunpack.c.l.b16 %v1289
      %v1392 = vunpack.c.l.b16 %v1290
      %v1393 = vunpack.c.l.b16 %v1291
      %v1394 = vunpack.c.l.b16 %v1292
      %v1395 = vpack.c.b16 %v1380, %v1379
      %v1396 = vpack.c.b16 %v1382, %v1381
      %v1397 = vpack.c.b16 %v1384, %v1383
      %v1398 = vpack.c.b16 %v1386, %v1385
      %v1399 = vpack.c.b16 %v1388, %v1387
      %v1400 = vpack.c.b16 %v1390, %v1389
      %v1401 = vpack.c.b16 %v1392, %v1391
      %v1402 = vpack.c.b16 %v1394, %v1393
      %1411 = vmatpush.bf16.msra.mxu0 %v1402
      %1412 = vmatpush.bf16.msra.mxu0 %v1401
      %1413 = vmatpush.bf16.msra.mxu0 %v1400
      %1414 = vmatpush.bf16.msra.mxu0 %v1399
      %1415 = vmatpush.bf16.msra.mxu0 %v1398
      %1416 = vmatpush.bf16.msra.mxu0 %v1397
      %1417 = vmatpush.bf16.msra.mxu0 %v1396
      %1418 = vmatpush.bf16.msra.mxu0 %v1395
      %1419 = vmatmul.bf16.gmra.mxu0 %v1330
      %v1420 = vpop.f32.mrf.mxu0
      %v1421 = vadd.f32 0.0, %v1420
      %v1422 = vpop.f32.mrf.mxu0
      %v1423 = vadd.f32 0.0, %v1422
      %1424 = vmatmul.bf16.gmra.mxu0 %v1338
      %v1425 = vpop.f32.mrf.mxu0
      %v1426 = vadd.f32 0.0, %v1425
      %v1427 = vpop.f32.mrf.mxu0
      %v1428 = vadd.f32 0.0, %v1427
      %1429 = vmatmul.bf16.gmra.mxu0 %v1346
      %v1430 = vpop.f32.mrf.mxu0
      %v1431 = vadd.f32 0.0, %v1430
      %v1432 = vpop.f32.mrf.mxu0
      %v1433 = vadd.f32 0.0, %v1432
      %1434 = vmatmul.bf16.gmra.mxu0 %v1354
      %v1435 = vpop.f32.mrf.mxu0
      %v1436 = vadd.f32 0.0, %v1435
      %v1437 = vpop.f32.mrf.mxu0
      %v1438 = vadd.f32 0.0, %v1437
      %1439 = vmatmul.bf16.gmra.mxu0 %v1357
      %v1440 = vpop.f32.mrf.mxu0
      %v1441 = vadd.f32 0.0, %v1440
      %v1442 = vpop.f32.mrf.mxu0
      %1443 = vdwg.mxu0
      %v1444 = vadd.f32 %v1257, %v1421
      %v1445 = vadd.f32 %v1258, %v1423
      %v1446 = vadd.f32 %v1259, %v1426
      %v1447 = vadd.f32 %v1260, %v1428
      %v1448 = vadd.f32 %v1261, %v1431
      %v1449 = vadd.f32 %v1262, %v1433
      %v1450 = vadd.f32 %v1263, %v1436
      %v1451 = vadd.f32 %v1264, %v1438
      %v1452 = vadd.f32 %v1265, %v1441
      %v1453 = vld [vmem:[#allocation2 + $0x2c] sm:$0xf]
      %s1454 = scalar_lea.vmem %s1, 384
      %v1455 = vld [vmem:[%s1454] sm:$0xf]
      %v1456 = vld [vmem:[%s1454 + $0x4] sm:$0xf]
      %v1457 = vld [vmem:[%s1454 + $0x8] sm:$0xf]
      %v1458 = vld [vmem:[%s1454 + $0xc] sm:$0xf]
      %v1459 = vld [vmem:[%s1454 + $0x10] sm:$0xf]
      %v1460 = vld [vmem:[%s1454 + $0x14] sm:$0xf]
      %v1461 = vld [vmem:[%s1454 + $0x18] sm:$0xf]
      %v1462 = vld [vmem:[%s1454 + $0x1c] sm:$0xf]
      %v1463 = vld [vmem:[%s1454 + $0x20] sm:$0xf]
      %v1464 = vld [vmem:[%s1454 + $0x24] sm:$0xf]
      %v1465 = vld [vmem:[%s1454 + $0x28] sm:$0xf]
      %v1466 = vld [vmem:[%s1454 + $0x2c] sm:$0xf]
      %v1467 = vld [vmem:[%s1454 + $0x30] sm:$0xf]
      %v1468 = vld [vmem:[%s1454 + $0x34] sm:$0xf]
      %v1469 = vld [vmem:[%s1454 + $0x38] sm:$0xf]
      %v1470 = vld [vmem:[%s1454 + $0x3c] sm:$0xf]
      %v1472 = vunpack.c.l.b16 %v1453
      %v1473 = vpack.c.b16 %v1305, %v1304
      %v1474 = vpack.c.b16 %v1307, %v1306
      %v1475 = vpack.c.b16 %v1309, %v1308
      %v1476 = vpack.c.b16 %v1311, %v1310
      %v1477 = vpack.c.b16 %v1472, %v1472
      %v1499 = vunpack.c.l.b16 %v1455
      %v1500 = vunpack.c.l.b16 %v1456
      %v1501 = vunpack.c.l.b16 %v1457
      %v1502 = vunpack.c.l.b16 %v1458
      %v1503 = vunpack.c.l.b16 %v1459
      %v1504 = vunpack.c.l.b16 %v1460
      %v1505 = vunpack.c.l.b16 %v1461
      %v1506 = vunpack.c.l.b16 %v1462
      %v1507 = vunpack.c.l.b16 %v1463
      %v1508 = vunpack.c.l.b16 %v1464
      %v1509 = vunpack.c.l.b16 %v1465
      %v1510 = vunpack.c.l.b16 %v1466
      %v1511 = vunpack.c.l.b16 %v1467
      %v1512 = vunpack.c.l.b16 %v1468
      %v1513 = vunpack.c.l.b16 %v1469
      %v1514 = vunpack.c.l.b16 %v1470
      %v1515 = vpack.c.b16 %v1500, %v1499
      %v1516 = vpack.c.b16 %v1502, %v1501
      %v1517 = vpack.c.b16 %v1504, %v1503
      %v1518 = vpack.c.b16 %v1506, %v1505
      %v1519 = vpack.c.b16 %v1508, %v1507
      %v1520 = vpack.c.b16 %v1510, %v1509
      %v1521 = vpack.c.b16 %v1512, %v1511
      %v1522 = vpack.c.b16 %v1514, %v1513
      %1531 = vmatpush.bf16.msra.mxu0 %v1522
      %1532 = vmatpush.bf16.msra.mxu0 %v1521
      %1533 = vmatpush.bf16.msra.mxu0 %v1520
      %1534 = vmatpush.bf16.msra.mxu0 %v1519
      %1535 = vmatpush.bf16.msra.mxu0 %v1518
      %1536 = vmatpush.bf16.msra.mxu0 %v1517
      %1537 = vmatpush.bf16.msra.mxu0 %v1516
      %1538 = vmatpush.bf16.msra.mxu0 %v1515
      %1539 = vmatmul.bf16.gmra.mxu0 %v1473
      %v1540 = vpop.f32.mrf.mxu0
      %v1541 = vadd.f32 0.0, %v1540
      %v1542 = vpop.f32.mrf.mxu0
      %v1543 = vadd.f32 0.0, %v1542
      %1544 = vmatmul.bf16.gmra.mxu0 %v1474
      %v1545 = vpop.f32.mrf.mxu0
      %v1546 = vadd.f32 0.0, %v1545
      %v1547 = vpop.f32.mrf.mxu0
      %v1548 = vadd.f32 0.0, %v1547
      %1549 = vmatmul.bf16.gmra.mxu0 %v1475
      %v1550 = vpop.f32.mrf.mxu0
      %v1551 = vadd.f32 0.0, %v1550
      %v1552 = vpop.f32.mrf.mxu0
      %v1553 = vadd.f32 0.0, %v1552
      %1554 = vmatmul.bf16.gmra.mxu0 %v1476
      %v1555 = vpop.f32.mrf.mxu0
      %v1556 = vadd.f32 0.0, %v1555
      %v1557 = vpop.f32.mrf.mxu0
      %v1558 = vadd.f32 0.0, %v1557
      %1559 = vmatmul.bf16.gmra.mxu0 %v1477
      %v1560 = vpop.f32.mrf.mxu0
      %v1561 = vadd.f32 0.0, %v1560
      %v1562 = vpop.f32.mrf.mxu0
      %1563 = vdwg.mxu0
      %v1564 = vadd.f32 %v1444, %v1541
      %v1565 = vadd.f32 %v1445, %v1543
      %v1566 = vadd.f32 %v1446, %v1546
      %v1567 = vadd.f32 %v1447, %v1548
      %v1568 = vadd.f32 %v1448, %v1551
      %v1569 = vadd.f32 %v1449, %v1553
      %v1570 = vadd.f32 %v1450, %v1556
      %v1571 = vadd.f32 %v1451, %v1558
      %v1572 = vadd.f32 %v1452, %v1561
      %v1573 = vld [vmem:[#allocation2 + $0xc] sm:$0xf]
      %v1574 = vld [vmem:[#allocation2 + $0x10] sm:$0xf]
      %v1575 = vld [vmem:[#allocation2 + $0x14] sm:$0xf]
      %v1576 = vld [vmem:[#allocation2 + $0x18] sm:$0xf]
      %v1577 = vld [vmem:[#allocation2 + $0x1c] sm:$0xf]
      %v1578 = vld [vmem:[#allocation2 + $0x20] sm:$0xf]
      %v1579 = vld [vmem:[#allocation2 + $0x24] sm:$0xf]
      %v1580 = vld [vmem:[#allocation2 + $0x28] sm:$0xf]
      %v1581 = vld [vmem:[#allocation2 + $0x2c] sm:$0xf]
      %v1582 = vld [vmem:[#allocation2 + $0x30] sm:$0x1]
      %s1583 = scalar_lea.vmem %s1, 448
      %v1584 = vld [vmem:[%s1583] sm:$0xf]
      %v1585 = vld [vmem:[%s1583 + $0x4] sm:$0xf]
      %v1586 = vld [vmem:[%s1583 + $0x8] sm:$0xf]
      %v1587 = vld [vmem:[%s1583 + $0xc] sm:$0xf]
      %v1588 = vld [vmem:[%s1583 + $0x10] sm:$0xf]
      %v1589 = vld [vmem:[%s1583 + $0x14] sm:$0xf]
      %v1590 = vld [vmem:[%s1583 + $0x18] sm:$0xf]
      %v1591 = vld [vmem:[%s1583 + $0x1c] sm:$0xf]
      %v1592 = vld [vmem:[%s1583 + $0x20] sm:$0xf]
      %v1593 = vld [vmem:[%s1583 + $0x24] sm:$0xf]
      %v1594 = vld [vmem:[%s1583 + $0x28] sm:$0xf]
      %v1595 = vld [vmem:[%s1583 + $0x2c] sm:$0xf]
      %v1596 = vld [vmem:[%s1583 + $0x30] sm:$0xf]
      %v1597 = vld [vmem:[%s1583 + $0x34] sm:$0xf]
      %v1598 = vld [vmem:[%s1583 + $0x38] sm:$0xf]
      %v1599 = vld [vmem:[%s1583 + $0x3c] sm:$0xf]
      %v1610 = vunpack.c.l.b16 %v1573
      %v1611 = vunpack.c.l.b16 %v1574
      %v1612 = vunpack.c.l.b16 %v1575
      %v1613 = vunpack.c.l.b16 %v1576
      %v1614 = vunpack.c.l.b16 %v1577
      %v1615 = vunpack.c.l.b16 %v1578
      %v1616 = vunpack.c.l.b16 %v1579
      %v1617 = vunpack.c.l.b16 %v1580
      %v1618 = vunpack.c.l.b16 %v1581
      %v1619 = vunpack.c.l.b16 %v1582
      %v1620 = vpack.c.b16 %v1611, %v1610
      %v1621 = vpack.c.b16 %v1613, %v1612
      %v1622 = vpack.c.b16 %v1615, %v1614
      %v1623 = vpack.c.b16 %v1617, %v1616
      %v1624 = vpack.c.b16 %v1619, %v1618
      %v1626 = vshrl.u32 %v1620, 16
      %v1628 = vshll.u32 %v1620, 16
      %v1630 = vrot.slane %v1628, 1
      %v1631 = vor.u32 %v1626, %v1630
      %v1633 = vshll.u32 %v1621, 16
      %v1635 = vrot.slane %v1633, 1
      %v1636 = vsel %vm1318, %v1631, %v1635
      %v1637 = vshrl.u32 %v1621, 16
      %v1639 = vor.u32 %v1637, %v1635
      %v1641 = vshll.u32 %v1622, 16
      %v1643 = vrot.slane %v1641, 1
      %v1644 = vsel %vm1318, %v1639, %v1643
      %v1645 = vshrl.u32 %v1622, 16
      %v1647 = vor.u32 %v1645, %v1643
      %v1649 = vshll.u32 %v1623, 16
      %v1651 = vrot.slane %v1649, 1
      %v1652 = vsel %vm1318, %v1647, %v1651
      %v1653 = vshrl.u32 %v1623, 16
      %v1655 = vor.u32 %v1653, %v1651
      %v1657 = vshll.u32 %v1624, 16
      %v1659 = vrot.slane %v1657, 1
      %v1660 = vsel %vm1318, %v1655, %v1659
      %v1661 = vshrl.u32 %v1624, 16
      %v1663 = vor.u32 %v1661, %v1659
      %v1685 = vunpack.c.l.b16 %v1584
      %v1686 = vunpack.c.l.b16 %v1585
      %v1687 = vunpack.c.l.b16 %v1586
      %v1688 = vunpack.c.l.b16 %v1587
      %v1689 = vunpack.c.l.b16 %v1588
      %v1690 = vunpack.c.l.b16 %v1589
      %v1691 = vunpack.c.l.b16 %v1590
      %v1692 = vunpack.c.l.b16 %v1591
      %v1693 = vunpack.c.l.b16 %v1592
      %v1694 = vunpack.c.l.b16 %v1593
      %v1695 = vunpack.c.l.b16 %v1594
      %v1696 = vunpack.c.l.b16 %v1595
      %v1697 = vunpack.c.l.b16 %v1596
      %v1698 = vunpack.c.l.b16 %v1597
      %v1699 = vunpack.c.l.b16 %v1598
      %v1700 = vunpack.c.l.b16 %v1599
      %v1701 = vpack.c.b16 %v1686, %v1685
      %v1702 = vpack.c.b16 %v1688, %v1687
      %v1703 = vpack.c.b16 %v1690, %v1689
      %v1704 = vpack.c.b16 %v1692, %v1691
      %v1705 = vpack.c.b16 %v1694, %v1693
      %v1706 = vpack.c.b16 %v1696, %v1695
      %v1707 = vpack.c.b16 %v1698, %v1697
      %v1708 = vpack.c.b16 %v1700, %v1699
      %1717 = vmatpush.bf16.msra.mxu0 %v1708
      %1718 = vmatpush.bf16.msra.mxu0 %v1707
      %1719 = vmatpush.bf16.msra.mxu0 %v1706
      %1720 = vmatpush.bf16.msra.mxu0 %v1705
      %1721 = vmatpush.bf16.msra.mxu0 %v1704
      %1722 = vmatpush.bf16.msra.mxu0 %v1703
      %1723 = vmatpush.bf16.msra.mxu0 %v1702
      %1724 = vmatpush.bf16.msra.mxu0 %v1701
      %1725 = vmatmul.bf16.gmra.mxu0 %v1636
      %v1726 = vpop.f32.mrf.mxu0
      %v1727 = vadd.f32 0.0, %v1726
      %v1728 = vpop.f32.mrf.mxu0
      %v1729 = vadd.f32 0.0, %v1728
      %1730 = vmatmul.bf16.gmra.mxu0 %v1644
      %v1731 = vpop.f32.mrf.mxu0
      %v1732 = vadd.f32 0.0, %v1731
      %v1733 = vpop.f32.mrf.mxu0
      %v1734 = vadd.f32 0.0, %v1733
      %1735 = vmatmul.bf16.gmra.mxu0 %v1652
      %v1736 = vpop.f32.mrf.mxu0
      %v1737 = vadd.f32 0.0, %v1736
      %v1738 = vpop.f32.mrf.mxu0
      %v1739 = vadd.f32 0.0, %v1738
      %1740 = vmatmul.bf16.gmra.mxu0 %v1660
      %v1741 = vpop.f32.mrf.mxu0
      %v1742 = vadd.f32 0.0, %v1741
      %v1743 = vpop.f32.mrf.mxu0
      %v1744 = vadd.f32 0.0, %v1743
      %1745 = vmatmul.bf16.gmra.mxu0 %v1663
      %v1746 = vpop.f32.mrf.mxu0
      %v1747 = vadd.f32 0.0, %v1746
      %v1748 = vpop.f32.mrf.mxu0
      %1749 = vdwg.mxu0
      %v1750 = vadd.f32 %v1564, %v1727
      %v1751 = vadd.f32 %v1565, %v1729
      %v1752 = vadd.f32 %v1566, %v1732
      %v1753 = vadd.f32 %v1567, %v1734
      %v1754 = vadd.f32 %v1568, %v1737
      %v1755 = vadd.f32 %v1569, %v1739
      %v1756 = vadd.f32 %v1570, %v1742
      %v1757 = vadd.f32 %v1571, %v1744
      %v1758 = vadd.f32 %v1572, %v1747
      %v1759 = vld [vmem:[#allocation2 + $0xc] sm:$0xe]
      %s1760 = scalar_lea.vmem %s1, 512
      %v1761 = vld [vmem:[%s1760] sm:$0xf]
      %v1762 = vld [vmem:[%s1760 + $0x4] sm:$0xf]
      %v1763 = vld [vmem:[%s1760 + $0x8] sm:$0xf]
      %v1764 = vld [vmem:[%s1760 + $0xc] sm:$0xf]
      %v1765 = vld [vmem:[%s1760 + $0x10] sm:$0xf]
      %v1766 = vld [vmem:[%s1760 + $0x14] sm:$0xf]
      %v1767 = vld [vmem:[%s1760 + $0x18] sm:$0xf]
      %v1768 = vld [vmem:[%s1760 + $0x1c] sm:$0xf]
      %v1769 = vld [vmem:[%s1760 + $0x20] sm:$0xf]
      %v1770 = vld [vmem:[%s1760 + $0x24] sm:$0xf]
      %v1771 = vld [vmem:[%s1760 + $0x28] sm:$0xf]
      %v1772 = vld [vmem:[%s1760 + $0x2c] sm:$0xf]
      %v1773 = vld [vmem:[%s1760 + $0x30] sm:$0xf]
      %v1774 = vld [vmem:[%s1760 + $0x34] sm:$0xf]
      %v1775 = vld [vmem:[%s1760 + $0x38] sm:$0xf]
      %v1776 = vld [vmem:[%s1760 + $0x3c] sm:$0xf]
      %v1778 = vunpack.c.l.b16 %v1759
      %v1779 = vpack.c.b16 %v1611, %v1778
      %vm1780 = vcmask 1046528
      %v1781 = vrot.slane %v1779, 1
      %v1782 = vrot.slane %v1621, 1
      %v1783 = vsel %vm1780, %v1781, %v1782
      %v1784 = vrot.slane %v1622, 1
      %v1785 = vsel %vm1780, %v1782, %v1784
      %v1786 = vrot.slane %v1623, 1
      %v1787 = vsel %vm1780, %v1784, %v1786
      %v1788 = vrot.slane %v1624, 1
      %v1789 = vsel %vm1780, %v1786, %v1788
      %v1811 = vunpack.c.l.b16 %v1761
      %v1812 = vunpack.c.l.b16 %v1762
      %v1813 = vunpack.c.l.b16 %v1763
      %v1814 = vunpack.c.l.b16 %v1764
      %v1815 = vunpack.c.l.b16 %v1765
      %v1816 = vunpack.c.l.b16 %v1766
      %v1817 = vunpack.c.l.b16 %v1767
      %v1818 = vunpack.c.l.b16 %v1768
      %v1819 = vunpack.c.l.b16 %v1769
      %v1820 = vunpack.c.l.b16 %v1770
      %v1821 = vunpack.c.l.b16 %v1771
      %v1822 = vunpack.c.l.b16 %v1772
      %v1823 = vunpack.c.l.b16 %v1773
      %v1824 = vunpack.c.l.b16 %v1774
      %v1825 = vunpack.c.l.b16 %v1775
      %v1826 = vunpack.c.l.b16 %v1776
      %v1827 = vpack.c.b16 %v1812, %v1811
      %v1828 = vpack.c.b16 %v1814, %v1813
      %v1829 = vpack.c.b16 %v1816, %v1815
      %v1830 = vpack.c.b16 %v1818, %v1817
      %v1831 = vpack.c.b16 %v1820, %v1819
      %v1832 = vpack.c.b16 %v1822, %v1821
      %v1833 = vpack.c.b16 %v1824, %v1823
      %v1834 = vpack.c.b16 %v1826, %v1825
      %1843 = vmatpush.bf16.msra.mxu0 %v1834
      %1844 = vmatpush.bf16.msra.mxu0 %v1833
      %1845 = vmatpush.bf16.msra.mxu0 %v1832
      %1846 = vmatpush.bf16.msra.mxu0 %v1831
      %1847 = vmatpush.bf16.msra.mxu0 %v1830
      %1848 = vmatpush.bf16.msra.mxu0 %v1829
      %1849 = vmatpush.bf16.msra.mxu0 %v1828
      %1850 = vmatpush.bf16.msra.mxu0 %v1827
      %1851 = vmatmul.bf16.gmra.mxu0 %v1783
      %v1852 = vpop.f32.mrf.mxu0
      %v1853 = vadd.f32 0.0, %v1852
      %v1854 = vpop.f32.mrf.mxu0
      %v1855 = vadd.f32 0.0, %v1854
      %1856 = vmatmul.bf16.gmra.mxu0 %v1785
      %v1857 = vpop.f32.mrf.mxu0
      %v1858 = vadd.f32 0.0, %v1857
      %v1859 = vpop.f32.mrf.mxu0
      %v1860 = vadd.f32 0.0, %v1859
      %1861 = vmatmul.bf16.gmra.mxu0 %v1787
      %v1862 = vpop.f32.mrf.mxu0
      %v1863 = vadd.f32 0.0, %v1862
      %v1864 = vpop.f32.mrf.mxu0
      %v1865 = vadd.f32 0.0, %v1864
      %1866 = vmatmul.bf16.gmra.mxu0 %v1789
      %v1867 = vpop.f32.mrf.mxu0
      %v1868 = vadd.f32 0.0, %v1867
      %v1869 = vpop.f32.mrf.mxu0
      %v1870 = vadd.f32 0.0, %v1869
      %1871 = vmatmul.bf16.gmra.mxu0 %v1788
      %v1872 = vpop.f32.mrf.mxu0
      %v1873 = vadd.f32 0.0, %v1872
      %v1874 = vpop.f32.mrf.mxu0
      %1875 = vdwg.mxu0
      %v1876 = vadd.f32 %v1750, %v1853
      %v1877 = vadd.f32 %v1751, %v1855
      %v1878 = vadd.f32 %v1752, %v1858
      %v1879 = vadd.f32 %v1753, %v1860
      %v1880 = vadd.f32 %v1754, %v1863
      %v1881 = vadd.f32 %v1755, %v1865
      %v1882 = vadd.f32 %v1756, %v1868
      %v1883 = vadd.f32 %v1757, %v1870
      %v1884 = vadd.f32 %v1758, %v1873
      %v1885 = vpack.c.bf16 %v1876, %v1876
      %v1886 = vpack.c.bf16 %v1877, %v1877
      %v1887 = vpack.c.bf16 %v1878, %v1878
      %v1888 = vpack.c.bf16 %v1879, %v1879
      %v1889 = vpack.c.bf16 %v1880, %v1880
      %v1890 = vpack.c.bf16 %v1881, %v1881
      %v1891 = vpack.c.bf16 %v1882, %v1882
      %v1892 = vpack.c.bf16 %v1883, %v1883
      %v1893 = vpack.c.bf16 %v1884, %v1884
      %1894 = vst [vmem:[%s312] sm:$0xf] %v1885
      %1895 = vst [vmem:[%s312 + $0x4] sm:$0xf] %v1886
      %1896 = vst [vmem:[%s312 + $0x8] sm:$0xf] %v1887
      %1897 = vst [vmem:[%s312 + $0xc] sm:$0xf] %v1888
      %1898 = vst [vmem:[%s312 + $0x10] sm:$0xf] %v1889
      %1899 = vst [vmem:[%s312 + $0x14] sm:$0xf] %v1890
      %1900 = vst [vmem:[%s312 + $0x18] sm:$0xf] %v1891
      %1901 = vst [vmem:[%s312 + $0x1c] sm:$0xf] %v1892
      %1902 = vst [vmem:[%s312 + $0x20] sm:$0xf] %v1893
      %v1903 = vld [vmem:[%s3] sm:$0xff]
      %v1904 = vld [vmem:[%s3 + $0x8] sm:$0xff]
      %v1905 = vld [vmem:[%s3 + $0x10] sm:$0xff]
      %v1906 = vld [vmem:[%s3 + $0x18] sm:$0xff]
      %v1907 = vld [vmem:[%s3 + $0x20] sm:$0xff]
      %v1908 = vld [vmem:[%s3 + $0x28] sm:$0xff]
      %v1909 = vld [vmem:[%s3 + $0x30] sm:$0xff]
      %v1910 = vld [vmem:[%s3 + $0x38] sm:$0xff]
      %v1911 = vld [vmem:[%s3 + $0x40] sm:$0xff]
      %1913 = vset.pattern.permute.xlu0 0
      %1914 = vperm.xlu0 %1913, %v1903
      %v1915 = vpop.permute.xlu0 %1914
      %1918 = vset.pattern.permute.xlu0 0
      %1919 = vperm.xlu0 %1918, %v1904
      %v1920 = vpop.permute.xlu0 %1919
      %1923 = vset.pattern.permute.xlu0 0
      %1924 = vperm.xlu0 %1923, %v1905
      %v1925 = vpop.permute.xlu0 %1924
      %1928 = vset.pattern.permute.xlu0 0
      %1929 = vperm.xlu0 %1928, %v1906
      %v1930 = vpop.permute.xlu0 %1929
      %1933 = vset.pattern.permute.xlu0 0
      %1934 = vperm.xlu0 %1933, %v1907
      %v1935 = vpop.permute.xlu0 %1934
      %1938 = vset.pattern.permute.xlu0 0
      %1939 = vperm.xlu0 %1938, %v1908
      %v1940 = vpop.permute.xlu0 %1939
      %1943 = vset.pattern.permute.xlu0 0
      %1944 = vperm.xlu0 %1943, %v1909
      %v1945 = vpop.permute.xlu0 %1944
      %1948 = vset.pattern.permute.xlu0 0
      %1949 = vperm.xlu0 %1948, %v1910
      %v1950 = vpop.permute.xlu0 %1949
      %1953 = vset.pattern.permute.xlu0 0
      %1954 = vperm.xlu0 %1953, %v1911
      %v1955 = vpop.permute.xlu0 %1954
      %v1957 = vmul.f32 %v1876, %v1915
      %v1958 = vmul.f32 %v1877, %v1920
      %v1959 = vmul.f32 %v1878, %v1925
      %v1960 = vmul.f32 %v1879, %v1930
      %v1961 = vmul.f32 %v1880, %v1935
      %v1962 = vmul.f32 %v1881, %v1940
      %v1963 = vmul.f32 %v1882, %v1945
      %v1964 = vmul.f32 %v1883, %v1950
      %v1965 = vmul.f32 %v1884, %v1955
      %v1966 = vadd.f32 %v1957, %v1958
      %v1967 = vadd.f32 %v1966, %v1959
      %v1968 = vadd.f32 %v1967, %v1960
      %v1969 = vadd.f32 %v1968, %v1961
      %v1970 = vadd.f32 %v1969, %v1962
      %v1971 = vadd.f32 %v1970, %v1963
      %v1972 = vadd.f32 %v1971, %v1964
      %v1973 = vadd.f32 %v1972, %v1965
      %v1974 = vrot.slane %v1973, 4
      %v1975 = vadd.f32 %v1973, %v1974
      %v1976 = vrot.slane %v1975, 2
      %v1977 = vadd.f32 %v1975, %v1976
      %v1978 = vrot.slane %v1977, 1
      %v1979 = vadd.f32 %v1977, %v1978
      %1980 = vst [vmem:[%s316] sm:$0x1] %v1979
      %v1981 = vmul.f32 %v1957, %v1876
      %v1982 = vmul.f32 %v1958, %v1877
      %v1983 = vmul.f32 %v1959, %v1878
      %v1984 = vmul.f32 %v1960, %v1879
      %v1985 = vmul.f32 %v1961, %v1880
      %v1986 = vmul.f32 %v1962, %v1881
      %v1987 = vmul.f32 %v1963, %v1882
      %v1988 = vmul.f32 %v1964, %v1883
      %v1989 = vmul.f32 %v1965, %v1884
      %v1990 = vadd.f32 %v1981, %v1982
      %v1991 = vadd.f32 %v1990, %v1983
      %v1992 = vadd.f32 %v1991, %v1984
      %v1993 = vadd.f32 %v1992, %v1985
      %v1994 = vadd.f32 %v1993, %v1986
      %v1995 = vadd.f32 %v1994, %v1987
      %v1996 = vadd.f32 %v1995, %v1988
      %v1997 = vadd.f32 %v1996, %v1989
      %v1998 = vrot.slane %v1997, 4
      %v1999 = vadd.f32 %v1997, %v1998
      %v2000 = vrot.slane %v1999, 2
      %v2001 = vadd.f32 %v1999, %v2000
      %v2002 = vrot.slane %v2001, 1
      %v2003 = vadd.f32 %v2001, %v2002
      %2004 = vst [vmem:[%s316 + $0x1] sm:$0x1] %v2003
      %p2005 = scmp.lt.s32.totalorder %s20, 1
      %s2006 = scalar_select %p2005, %s20, 1
      %s2007 = smul.addr %s2006, 9
      %s2008 = smul.addr %s2007, 4
      %s2009 = scalar_lea.vmem %s7, %s2008
      %p2010 = scmp.lt.s32.totalorder %s20, 1
      %s2011 = scalar_select %p2010, %s20, 1
      %s2012 = smul.addr %s2011, 2
      %s2013 = scalar_lea.vmem %s8, %s2012
      // Predicated region
      $region49: #{resblk_forward.4} parent=47 // pred_check
        %p2014 = pneg %p190
      $region50: #{resblk_forward.4} parent=47 // pred_check_branch
        %2016 = sbr.rel (%p2014) target = $region52
      $region51: #{resblk_forward.4} parent=47 // pred_region
        _
      $region52: #{resblk_forward.4} parent=47 // pred_fallthru
        _
      // Predicated region
      $region53: #{resblk_forward.4} parent=47 // pred_check
        %p2017 = pneg %p216
      $region54: #{resblk_forward.4} parent=47 // pred_check_branch
        %2019 = sbr.rel (%p2017) target = $region56
      $region55: #{resblk_forward.4} parent=47 // pred_region
        _
      $region56: #{resblk_forward.4} parent=47 // pred_fallthru
        _
    $region48: #{resblk_forward.4} parent=5 // pred_fallthru
      _
    %p2020 = scmp.le.s32.totalorder 2, %s15
    // Predicated region
    $region57: #{resblk_forward.4} parent=5 // pred_check
      %p2021 = pneg %p2020
    $region58: #{resblk_forward.4} parent=5 // pred_check_branch
      %2023 = sbr.rel (%p2021) target = $region60
    $region59: #{resblk_forward.4} parent=5 // pred_region
      %s2024 = ssub.s32 %s15, 2
      // Predicated region
      $region61: #{resblk_forward.4} parent=59 // pred_check
        %p2025 = pneg %p196
      $region62: #{resblk_forward.4} parent=59 // pred_check_branch
        %2027 = sbr.rel (%p2025) target = $region64
      $region63: #{resblk_forward.4} parent=59 // pred_region
        %p2028 = scmp.lt.s32.totalorder %s21, 1
        %s2029 = scalar_select %p2028, %s21, 1
        %s2030 = smul.addr %s2029, 9
        %s2031 = smul.addr %s2030, 4
        %s2032 = scalar_lea.vmem %s7, %s2031
      $region64: #{resblk_forward.4} parent=59 // pred_fallthru
        _
      // Predicated region
      $region65: #{resblk_forward.4} parent=59 // pred_check
        %p2033 = pneg %p222
      $region66: #{resblk_forward.4} parent=59 // pred_check_branch
        %2035 = sbr.rel (%p2033) target = $region68
      $region67: #{resblk_forward.4} parent=59 // pred_region
        %p2036 = scmp.lt.s32.totalorder %s21, 1
        %s2037 = scalar_select %p2036, %s21, 1
        %s2038 = smul.addr %s2037, 2
        %s2039 = scalar_lea.vmem %s8, %s2038
      $region68: #{resblk_forward.4} parent=59 // pred_fallthru
        _
    $region60: #{resblk_forward.4} parent=5 // pred_fallthru
      _
  $region6: #{resblk_forward.4} parent=0 // loop_footer
    %s19 = sadd.s32 1, %s15
  $region7: #{resblk_forward.4} parent=0 // loop_footer_branch
    %14 = sbr.rel target = $region3
  $region8: #{resblk_forward.4} parent=0 // loop_exit
    _

// kernel: resblk_forward.3
$region0: #{resblk_forward.3}
  #allocation0 [shape = 'u32[]', space=smem, size = 0x4, offset = 0x4, fixed_abs, tag = 'smem constant byte address 0x4 - core index']
  #allocation1 [shape = 'u32[72,128]{1,0:T(1,128)}', space=vmem, size = 0x9000, scoped, tag = 'internal scratch']
  %s0 = inlined_call_operand.vmem [shape: bf16[4,2,88,128], index: 0, kind: input, shape index: {}]
  %s1 = inlined_call_operand.vmem [shape: bf16[9,128,128], index: 1, kind: input, shape index: {}]
  %s2 = inlined_call_operand.vmem [shape: f32[72,1], index: 2, kind: input, shape index: {}]
  %s3 = inlined_call_operand.vmem [shape: bf16[128,128], index: 3, kind: input, shape index: {}]
  %s4 = inlined_call_operand.vmem [shape: bf16[2,112,128], index: 4, kind: output, shape index: {0}]
  %s5 = inlined_call_operand.vmem [shape: f32[2,2,128], index: 5, kind: output, shape index: {1}]
  %s6 = inlined_call_operand.vmem [shape: bf16[2,72,128], index: 6, kind: output, shape index: {2}]
  %s7 = inlined_call_operand.vmem [shape: f32[2,2,128], index: 7, kind: output, shape index: {3}]
  %8 = xla_tuple %s4, %s5, %s6, %s7
  %s9 = sld [smem:[#allocation0]]
  $region114: #{resblk_forward.3} parent=0
    _
  %s11 = ssub.s32 1, %s9
  %s12 = scalar_select 0, %s11, %s9
  $region1: #{resblk_forward.3} parent=0
    #allocation2 [shape = 'u8[180224]{0}', space=vmem, size = 0x2c000, scoped, tag = 'input window, operand 0']
    loop: start=0, step=1, limit=4
    $region2: #{resblk_forward.3} parent=1 // loop_pre_header
      _
    $region3: #{resblk_forward.3} parent=1 // loop_header
      %s14 = sphi 0, %s18
      %p15 = scmp.ge.s32.totalorder %s14, 4
      %s24 = sphi 0, %s26
      %s27 = sphi 0, %s24
      %s28 = sphi 0, %s27
      %s44 = sphi 0, %s28
      %s48 = sphi 0, %s48
      %s50 = sphi 0, %s48
      %s51 = sphi 0, %s50
      %s65 = sphi 0, %s51
      %s69 = sphi 0, %s69
      %s71 = sphi 0, %s69
      %s72 = sphi 0, %s71
      %s86 = sphi 0, %s72
      %s90 = sphi 0, %s90
      %s92 = sphi 0, %s90
      %s93 = sphi 0, %s92
      %s107 = sphi 0, %s93
      %s113 = sphi 0, %s115
      %s116 = sphi 0, %s113
      %s117 = sphi 0, %s116
      %s133 = sphi 0, %s117
      %s139 = sphi 0, %s141
      %s142 = sphi 0, %s139
      %s143 = sphi 0, %s142
      %s159 = sphi 0, %s143
      %s165 = sphi 0, %s167
      %s168 = sphi 0, %s165
      %s169 = sphi 0, %s168
      %s185 = sphi 0, %s169
      %s191 = sphi 0, %s193
      %s194 = sphi 0, %s191
      %s195 = sphi 0, %s194
      %s211 = sphi 0, %s195
    $region4: #{resblk_forward.3} parent=1 // loop_header_branch
      %17 = sbr.rel (%p15) target = $region8
    $region5: #{resblk_forward.3} parent=1 // loop_body
      %s19 = ssub.s32 %s14, 1
      %s20 = ssub.s32 %s14, 2
      %s21 = sadd.s32 %s14, 1
      %s22 = ssub.s32 %s14, %s21
      %p23 = scmp.eq.s32.totalorder %s22, 0
      %s25 = sadd.s32 %s24, 1
      %s26 = scalar_select %p23, %s24, %s25
      %p29 = pneg %p23
      %p30 = scmp.eq.s32.totalorder %s14, 1
      %p31 = por %p29, %p30
      %p32 = scmp.ne.s32.totalorder %s24, %s27
      %p33 = scmp.eq.s32.totalorder %s14, 0
      %p34 = por %p32, %p33
      %p35 = scmp.ne.s32.totalorder %s24, %s27
      %p36 = scmp.eq.s32.totalorder %s19, 1
      %p37 = por %p35, %p36
      %p38 = scmp.ne.s32.totalorder %s27, %s28
      %p39 = scmp.eq.s32.totalorder %s19, 0
      %p40 = por %p38, %p39
      %p41 = scmp.ne.s32.totalorder %s27, %s28
      %p42 = scmp.eq.s32.totalorder %s20, 1
      %p43 = por %p41, %p42
      %p45 = scmp.ne.s32.totalorder %s28, %s44
      %p46 = scmp.eq.s32.totalorder %s20, 0
      %p47 = por %p45, %p46
      %s49 = sadd.s32 %s48, 1
      %p52 = scmp.eq.s32.totalorder %s14, 1
      %p53 = scmp.ne.s32.totalorder %s48, %s50
      %p54 = scmp.eq.s32.totalorder %s14, 0
      %p55 = por %p53, %p54
      %p56 = scmp.ne.s32.totalorder %s48, %s50
      %p57 = scmp.eq.s32.totalorder %s19, 1
      %p58 = por %p56, %p57
      %p59 = scmp.ne.s32.totalorder %s50, %s51
      %p60 = scmp.eq.s32.totalorder %s19, 0
      %p61 = por %p59, %p60
      %p62 = scmp.ne.s32.totalorder %s50, %s51
      %p63 = scmp.eq.s32.totalorder %s20, 1
      %p64 = por %p62, %p63
      %p66 = scmp.ne.s32.totalorder %s51, %s65
      %p67 = scmp.eq.s32.totalorder %s20, 0
      %p68 = por %p66, %p67
      %s70 = sadd.s32 %s69, 1
      %p73 = scmp.eq.s32.totalorder %s14, 1
      %p74 = scmp.ne.s32.totalorder %s69, %s71
      %p75 = scmp.eq.s32.totalorder %s14, 0
      %p76 = por %p74, %p75
      %p77 = scmp.ne.s32.totalorder %s69, %s71
      %p78 = scmp.eq.s32.totalorder %s19, 1
      %p79 = por %p77, %p78
      %p80 = scmp.ne.s32.totalorder %s71, %s72
      %p81 = scmp.eq.s32.totalorder %s19, 0
      %p82 = por %p80, %p81
      %p83 = scmp.ne.s32.totalorder %s71, %s72
      %p84 = scmp.eq.s32.totalorder %s20, 1
      %p85 = por %p83, %p84
      %p87 = scmp.ne.s32.totalorder %s72, %s86
      %p88 = scmp.eq.s32.totalorder %s20, 0
      %p89 = por %p87, %p88
      %s91 = sadd.s32 %s90, 1
      %p94 = scmp.eq.s32.totalorder %s14, 1
      %p95 = scmp.ne.s32.totalorder %s90, %s92
      %p96 = scmp.eq.s32.totalorder %s14, 0
      %p97 = por %p95, %p96
      %p98 = scmp.ne.s32.totalorder %s90, %s92
      %p99 = scmp.eq.s32.totalorder %s19, 1
      %p100 = por %p98, %p99
      %p101 = scmp.ne.s32.totalorder %s92, %s93
      %p102 = scmp.eq.s32.totalorder %s19, 0
      %p103 = por %p101, %p102
      %p104 = scmp.ne.s32.totalorder %s92, %s93
      %p105 = scmp.eq.s32.totalorder %s20, 1
      %p106 = por %p104, %p105
      %p108 = scmp.ne.s32.totalorder %s93, %s107
      %p109 = scmp.eq.s32.totalorder %s20, 0
      %p110 = por %p108, %p109
      %s111 = ssub.s32 %s14, %s21
      %p112 = scmp.eq.s32.totalorder %s111, 0
      %s114 = sadd.s32 %s113, 1
      %s115 = scalar_select %p112, %s113, %s114
      %p118 = pneg %p112
      %p119 = scmp.eq.s32.totalorder %s14, 1
      %p120 = por %p118, %p119
      %p121 = scmp.ne.s32.totalorder %s113, %s116
      %p122 = scmp.eq.s32.totalorder %s14, 0
      %p123 = por %p121, %p122
      %p124 = scmp.ne.s32.totalorder %s113, %s116
      %p125 = scmp.eq.s32.totalorder %s19, 1
      %p126 = por %p124, %p125
      %p127 = scmp.ne.s32.totalorder %s116, %s117
      %p128 = scmp.eq.s32.totalorder %s19, 0
      %p129 = por %p127, %p128
      %p130 = scmp.ne.s32.totalorder %s116, %s117
      %p131 = scmp.eq.s32.totalorder %s20, 1
      %p132 = por %p130, %p131
      %p134 = scmp.ne.s32.totalorder %s117, %s133
      %p135 = scmp.eq.s32.totalorder %s20, 0
      %p136 = por %p134, %p135
      %s137 = ssub.s32 %s14, %s21
      %p138 = scmp.eq.s32.totalorder %s137, 0
      %s140 = sadd.s32 %s139, 1
      %s141 = scalar_select %p138, %s139, %s140
      %p144 = pneg %p138
      %p145 = scmp.eq.s32.totalorder %s14, 1
      %p146 = por %p144, %p145
      %p147 = scmp.ne.s32.totalorder %s139, %s142
      %p148 = scmp.eq.s32.totalorder %s14, 0
      %p149 = por %p147, %p148
      %p150 = scmp.ne.s32.totalorder %s139, %s142
      %p151 = scmp.eq.s32.totalorder %s19, 1
      %p152 = por %p150, %p151
      %p153 = scmp.ne.s32.totalorder %s142, %s143
      %p154 = scmp.eq.s32.totalorder %s19, 0
      %p155 = por %p153, %p154
      %p156 = scmp.ne.s32.totalorder %s142, %s143
      %p157 = scmp.eq.s32.totalorder %s20, 1
      %p158 = por %p156, %p157
      %p160 = scmp.ne.s32.totalorder %s143, %s159
      %p161 = scmp.eq.s32.totalorder %s20, 0
      %p162 = por %p160, %p161
      %s163 = ssub.s32 %s14, %s21
      %p164 = scmp.eq.s32.totalorder %s163, 0
      %s166 = sadd.s32 %s165, 1
      %s167 = scalar_select %p164, %s165, %s166
      %p170 = pneg %p164
      %p171 = scmp.eq.s32.totalorder %s14, 1
      %p172 = por %p170, %p171
      %p173 = scmp.ne.s32.totalorder %s165, %s168
      %p174 = scmp.eq.s32.totalorder %s14, 0
      %p175 = por %p173, %p174
      %p176 = scmp.ne.s32.totalorder %s165, %s168
      %p177 = scmp.eq.s32.totalorder %s19, 1
      %p178 = por %p176, %p177
      %p179 = scmp.ne.s32.totalorder %s168, %s169
      %p180 = scmp.eq.s32.totalorder %s19, 0
      %p181 = por %p179, %p180
      %p182 = scmp.ne.s32.totalorder %s168, %s169
      %p183 = scmp.eq.s32.totalorder %s20, 1
      %p184 = por %p182, %p183
      %p186 = scmp.ne.s32.totalorder %s169, %s185
      %p187 = scmp.eq.s32.totalorder %s20, 0
      %p188 = por %p186, %p187
      %s189 = ssub.s32 %s14, %s21
      %p190 = scmp.eq.s32.totalorder %s189, 0
      %s192 = sadd.s32 %s191, 1
      %s193 = scalar_select %p190, %s191, %s192
      %p196 = pneg %p190
      %p197 = scmp.eq.s32.totalorder %s14, 1
      %p198 = por %p196, %p197
      %p199 = scmp.ne.s32.totalorder %s191, %s194
      %p200 = scmp.eq.s32.totalorder %s14, 0
      %p201 = por %p199, %p200
      %p202 = scmp.ne.s32.totalorder %s191, %s194
      %p203 = scmp.eq.s32.totalorder %s19, 1
      %p204 = por %p202, %p203
      %p205 = scmp.ne.s32.totalorder %s194, %s195
      %p206 = scmp.eq.s32.totalorder %s19, 0
      %p207 = por %p205, %p206
      %p208 = scmp.ne.s32.totalorder %s194, %s195
      %p209 = scmp.eq.s32.totalorder %s20, 1
      %p210 = por %p208, %p209
      %p212 = scmp.ne.s32.totalorder %s195, %s211
      %p213 = scmp.eq.s32.totalorder %s20, 0
      %p214 = por %p212, %p213
      %p215 = scmp.le.s32.totalorder 1, %s14
      %p216 = scmp.lt.s32.totalorder %s14, 3
      %p217 = pnand %p215, %p216
      %p218 = pneg %p217
      // Predicated region
      $region9: #{resblk_forward.3} parent=5 // pred_check
        _
      $region10: #{resblk_forward.3} parent=5 // pred_check_branch
        %220 = sbr.rel (%p217) target = $region12
      $region11: #{resblk_forward.3} parent=5 // pred_region
        %s221 = ssub.s32 %s14, 1
        // Predicated region
        $region13: #{resblk_forward.3} parent=11 // pred_check
          %p222 = pneg %p61
        $region14: #{resblk_forward.3} parent=11 // pred_check_branch
          %224 = sbr.rel (%p222) target = $region16
        $region15: #{resblk_forward.3} parent=11 // pred_region
          _
        $region16: #{resblk_forward.3} parent=11 // pred_fallthru
          _
        // Predicated region
        $region17: #{resblk_forward.3} parent=11 // pred_check
          %p225 = pneg %p82
        $region18: #{resblk_forward.3} parent=11 // pred_check_branch
          %227 = sbr.rel (%p225) target = $region20
        $region19: #{resblk_forward.3} parent=11 // pred_region
          _
        $region20: #{resblk_forward.3} parent=11 // pred_fallthru
          _
        // Predicated region
        $region21: #{resblk_forward.3} parent=11 // pred_check
          %p228 = pneg %p103
        $region22: #{resblk_forward.3} parent=11 // pred_check_branch
          %230 = sbr.rel (%p228) target = $region24
        $region23: #{resblk_forward.3} parent=11 // pred_region
          _
        $region24: #{resblk_forward.3} parent=11 // pred_fallthru
          _
      $region12: #{resblk_forward.3} parent=5 // pred_fallthru
        _
      %p231 = scmp.lt.s32.totalorder %s14, 2
      // Predicated region
      $region25: #{resblk_forward.3} parent=5 // pred_check
        %p232 = pneg %p231
      $region26: #{resblk_forward.3} parent=5 // pred_check_branch
        %234 = sbr.rel (%p232) target = $region28
      $region27: #{resblk_forward.3} parent=5 // pred_region
        // Predicated region
        $region29: #{resblk_forward.3} parent=27 // pred_check
          %p235 = pneg %p34
        $region30: #{resblk_forward.3} parent=27 // pred_check_branch
          %237 = sbr.rel (%p235) target = $region32
        $region31: #{resblk_forward.3} parent=27 // pred_region
          %s238 = sand.u32 %s24, 1
          %s239 = sand.u32 %s24, 1
          %s240 = smul.addr %s239, 176
          %s241 = scalar_lea.vmem [#allocation2], %s240
          %s242 = smul.addr %s14, 11
          %s243 = smul.addr %s242, 4
          %s244 = scalar_lea.vmem %s0, %s243
          // Predicated region
          $region33: #{resblk_forward.3} parent=31 // pred_check
            _
          $region34: #{resblk_forward.3} parent=31 // pred_check_branch
            %246 = sbr.rel (0) target = $region36
          $region35: #{resblk_forward.3} parent=31 // pred_region
            // Predicated region
            $region37: #{resblk_forward.3} parent=35 // pred_check
              _
            $region38: #{resblk_forward.3} parent=35 // pred_check_branch
              %248 = sbr.rel target = $region40
            $region39: #{resblk_forward.3} parent=35 // pred_region
              // Predicated region
              $region52: #{resblk_forward.3} parent=39 // pred_check
                _
              $region53: #{resblk_forward.3} parent=39 // pred_check_branch
                %350 = sbr.rel (0) target = $region55
              $region54: #{resblk_forward.3} parent=39 // pred_region
                loop: start=0, step=1, limit=1
                $region56: #{resblk_forward.3} parent=54 // loop_pre_header
                  _
                $region57: #{resblk_forward.3} parent=54 // loop_header
                  %s352 = sphi 0, %s356
                  %p353 = scmp.ge.s32.totalorder %s352, 1
                  %s357 = sphi %s244, %s244
                  %s358 = sphi %s241, %s241
                $region58: #{resblk_forward.3} parent=54 // loop_header_branch
                  %355 = sbr.rel (%p353) target = $region62
                $region59: #{resblk_forward.3} parent=54 // loop_body
                  _
                $region60: #{resblk_forward.3} parent=54 // loop_footer
                  %s356 = sadd.s32 1, %s352
                $region61: #{resblk_forward.3} parent=54 // loop_footer_branch
                  %351 = sbr.rel target = $region57
                $region62: #{resblk_forward.3} parent=54 // loop_exit
                  _
                %s360 = ssub.s32 16, 1
                loop: start=0, step=1, limit=1
                $region63: #{resblk_forward.3} parent=54 // loop_pre_header
                  _
                $region64: #{resblk_forward.3} parent=54 // loop_header
                  %s362 = sphi 0, %s366
                  %p363 = scmp.ge.s32.totalorder %s362, 1
                  %s367 = sphi %s244, %s244
                  %s368 = sphi %s241, %s241
                $region65: #{resblk_forward.3} parent=54 // loop_header_branch
                  %365 = sbr.rel (%p363) target = $region69
                $region66: #{resblk_forward.3} parent=54 // loop_body
                  %v369 = vld [vmem:[%s367] sm:%s360]
                  %370 = vst [vmem:[%s368] sm:%s360] %v369
                  %v371 = vld [vmem:[%s367 + $0x4] sm:%s360]
                  %372 = vst [vmem:[%s368 + $0x4] sm:%s360] %v371
                  %v373 = vld [vmem:[%s367 + $0x8] sm:%s360]
                  %374 = vst [vmem:[%s368 + $0x8] sm:%s360] %v373
                  %v375 = vld [vmem:[%s367 + $0xc] sm:%s360]
                  %376 = vst [vmem:[%s368 + $0xc] sm:%s360] %v375
                  %v377 = vld [vmem:[%s367 + $0x10] sm:%s360]
                  %378 = vst [vmem:[%s368 + $0x10] sm:%s360] %v377
                  %v379 = vld [vmem:[%s367 + $0x14] sm:%s360]
                  %380 = vst [vmem:[%s368 + $0x14] sm:%s360] %v379
                  %v381 = vld [vmem:[%s367 + $0x18] sm:%s360]
                  %382 = vst [vmem:[%s368 + $0x18] sm:%s360] %v381
                  %v383 = vld [vmem:[%s367 + $0x1c] sm:%s360]
                  %384 = vst [vmem:[%s368 + $0x1c] sm:%s360] %v383
                  %v385 = vld [vmem:[%s367 + $0x20] sm:%s360]
                  %386 = vst [vmem:[%s368 + $0x20] sm:%s360] %v385
                  %v387 = vld [vmem:[%s367 + $0x24] sm:%s360]
                  %388 = vst [vmem:[%s368 + $0x24] sm:%s360] %v387
                  %v389 = vld [vmem:[%s367 + $0x28] sm:%s360]
                  %390 = vst [vmem:[%s368 + $0x28] sm:%s360] %v389
                  %v391 = vld [vmem:[%s367 + $0x58] sm:%s360]
                  %392 = vst [vmem:[%s368 + $0x2c] sm:%s360] %v391
                  %v393 = vld [vmem:[%s367 + $0x5c] sm:%s360]
                  %394 = vst [vmem:[%s368 + $0x30] sm:%s360] %v393
                  %v395 = vld [vmem:[%s367 + $0x60] sm:%s360]
                  %396 = vst [vmem:[%s368 + $0x34] sm:%s360] %v395
                  %v397 = vld [vmem:[%s367 + $0x64] sm:%s360]
                  %398 = vst [vmem:[%s368 + $0x38] sm:%s360] %v397
                  %v399 = vld [vmem:[%s367 + $0x68] sm:%s360]
                  %400 = vst [vmem:[%s368 + $0x3c] sm:%s360] %v399
                  %v401 = vld [vmem:[%s367 + $0x6c] sm:%s360]
                  %402 = vst [vmem:[%s368 + $0x40] sm:%s360] %v401
                  %v403 = vld [vmem:[%s367 + $0x70] sm:%s360]
                  %404 = vst [vmem:[%s368 + $0x44] sm:%s360] %v403
                  %v405 = vld [vmem:[%s367 + $0x74] sm:%s360]
                  %406 = vst [vmem:[%s368 + $0x48] sm:%s360] %v405
                  %v407 = vld [vmem:[%s367 + $0x78] sm:%s360]
                  %408 = vst [vmem:[%s368 + $0x4c] sm:%s360] %v407
                  %v409 = vld [vmem:[%s367 + $0x7c] sm:%s360]
                  %410 = vst [vmem:[%s368 + $0x50] sm:%s360] %v409
                  %v411 = vld [vmem:[%s367 + $0x80] sm:%s360]
                  %412 = vst [vmem:[%s368 + $0x54] sm:%s360] %v411
                  %v413 = vld [vmem:[%s367 + $0xb0] sm:%s360]
                  %414 = vst [vmem:[%s368 + $0x58] sm:%s360] %v413
                  %v415 = vld [vmem:[%s367 + $0xb4] sm:%s360]
                  %416 = vst [vmem:[%s368 + $0x5c] sm:%s360] %v415
                  %v417 = vld [vmem:[%s367 + $0xb8] sm:%s360]
                  %418 = vst [vmem:[%s368 + $0x60] sm:%s360] %v417
                  %v419 = vld [vmem:[%s367 + $0xbc] sm:%s360]
                  %420 = vst [vmem:[%s368 + $0x64] sm:%s360] %v419
                  %v421 = vld [vmem:[%s367 + $0xc0] sm:%s360]
                  %422 = vst [vmem:[%s368 + $0x68] sm:%s360] %v421
                  %v423 = vld [vmem:[%s367 + $0xc4] sm:%s360]
                  %424 = vst [vmem:[%s368 + $0x6c] sm:%s360] %v423
                  %v425 = vld [vmem:[%s367 + $0xc8] sm:%s360]
                  %426 = vst [vmem:[%s368 + $0x70] sm:%s360] %v425
                  %v427 = vld [vmem:[%s367 + $0xcc] sm:%s360]
                  %428 = vst [vmem:[%s368 + $0x74] sm:%s360] %v427
                  %v429 = vld [vmem:[%s367 + $0xd0] sm:%s360]
                  %430 = vst [vmem:[%s368 + $0x78] sm:%s360] %v429
                  %v431 = vld [vmem:[%s367 + $0xd4] sm:%s360]
                  %432 = vst [vmem:[%s368 + $0x7c] sm:%s360] %v431
                  %v433 = vld [vmem:[%s367 + $0xd8] sm:%s360]
                  %434 = vst [vmem:[%s368 + $0x80] sm:%s360] %v433
                  %v435 = vld [vmem:[%s367 + $0x108] sm:%s360]
                  %436 = vst [vmem:[%s368 + $0x84] sm:%s360] %v435
                  %v437 = vld [vmem:[%s367 + $0x10c] sm:%s360]
                  %438 = vst [vmem:[%s368 + $0x88] sm:%s360] %v437
                  %v439 = vld [vmem:[%s367 + $0x110] sm:%s360]
                  %440 = vst [vmem:[%s368 + $0x8c] sm:%s360] %v439
                  %v441 = vld [vmem:[%s367 + $0x114] sm:%s360]
                  %442 = vst [vmem:[%s368 + $0x90] sm:%s360] %v441
                  %v443 = vld [vmem:[%s367 + $0x118] sm:%s360]
                  %444 = vst [vmem:[%s368 + $0x94] sm:%s360] %v443
                  %v445 = vld [vmem:[%s367 + $0x11c] sm:%s360]
                  %446 = vst [vmem:[%s368 + $0x98] sm:%s360] %v445
                  %v447 = vld [vmem:[%s367 + $0x120] sm:%s360]
                  %448 = vst [vmem:[%s368 + $0x9c] sm:%s360] %v447
                  %v449 = vld [vmem:[%s367 + $0x124] sm:%s360]
                  %450 = vst [vmem:[%s368 + $0xa0] sm:%s360] %v449
                  %v451 = vld [vmem:[%s367 + $0x128] sm:%s360]
                  %452 = vst [vmem:[%s368 + $0xa4] sm:%s360] %v451
                  %v453 = vld [vmem:[%s367 + $0x12c] sm:%s360]
                  %454 = vst [vmem:[%s368 + $0xa8] sm:%s360] %v453
                  %v455 = vld [vmem:[%s367 + $0x130] sm:%s360]
                  %456 = vst [vmem:[%s368 + $0xac] sm:%s360] %v455
                $region67: #{resblk_forward.3} parent=54 // loop_footer
                  %s366 = sadd.s32 1, %s362
                $region68: #{resblk_forward.3} parent=54 // loop_footer_branch
                  %361 = sbr.rel target = $region64
                $region69: #{resblk_forward.3} parent=54 // loop_exit
                  _
              $region55: #{resblk_forward.3} parent=39 // pred_fallthru
                _
            $region40: #{resblk_forward.3} parent=35 // pred_fallthru
              _
            // Predicated region
            $region41: #{resblk_forward.3} parent=35 // pred_check
              _
            $region42: #{resblk_forward.3} parent=35 // pred_check_branch
              %250 = sbr.rel (0) target = $region44
            $region43: #{resblk_forward.3} parent=35 // pred_region
              %s252 = ssub.s32 16, 1
              loop: start=0, step=1, limit=1
              $region45: #{resblk_forward.3} parent=43 // loop_pre_header
                _
              $region46: #{resblk_forward.3} parent=43 // loop_header
                %s254 = sphi 0, %s258
                %p255 = scmp.ge.s32.totalorder %s254, 1
                %s259 = sphi %s244, %s244
                %s260 = sphi %s241, %s241
              $region47: #{resblk_forward.3} parent=43 // loop_header_branch
                %257 = sbr.rel (%p255) target = $region51
              $region48: #{resblk_forward.3} parent=43 // loop_body
                %v261 = vld [vmem:[%s259] sm:%s252]
                %262 = vst [vmem:[%s260] sm:%s252] %v261
                %v263 = vld [vmem:[%s259 + $0x4] sm:%s252]
                %264 = vst [vmem:[%s260 + $0x4] sm:%s252] %v263
                %v265 = vld [vmem:[%s259 + $0x8] sm:%s252]
                %266 = vst [vmem:[%s260 + $0x8] sm:%s252] %v265
                %v267 = vld [vmem:[%s259 + $0xc] sm:%s252]
                %268 = vst [vmem:[%s260 + $0xc] sm:%s252] %v267
                %v269 = vld [vmem:[%s259 + $0x10] sm:%s252]
                %270 = vst [vmem:[%s260 + $0x10] sm:%s252] %v269
                %v271 = vld [vmem:[%s259 + $0x14] sm:%s252]
                %272 = vst [vmem:[%s260 + $0x14] sm:%s252] %v271
                %v273 = vld [vmem:[%s259 + $0x18] sm:%s252]
                %274 = vst [vmem:[%s260 + $0x18] sm:%s252] %v273
                %v275 = vld [vmem:[%s259 + $0x1c] sm:%s252]
                %276 = vst [vmem:[%s260 + $0x1c] sm:%s252] %v275
                %v277 = vld [vmem:[%s259 + $0x20] sm:%s252]
                %278 = vst [vmem:[%s260 + $0x20] sm:%s252] %v277
                %v279 = vld [vmem:[%s259 + $0x24] sm:%s252]
                %280 = vst [vmem:[%s260 + $0x24] sm:%s252] %v279
                %v281 = vld [vmem:[%s259 + $0x28] sm:%s252]
                %282 = vst [vmem:[%s260 + $0x28] sm:%s252] %v281
                %v283 = vld [vmem:[%s259 + $0x58] sm:%s252]
                %284 = vst [vmem:[%s260 + $0x2c] sm:%s252] %v283
                %v285 = vld [vmem:[%s259 + $0x5c] sm:%s252]
                %286 = vst [vmem:[%s260 + $0x30] sm:%s252] %v285
                %v287 = vld [vmem:[%s259 + $0x60] sm:%s252]
                %288 = vst [vmem:[%s260 + $0x34] sm:%s252] %v287
                %v289 = vld [vmem:[%s259 + $0x64] sm:%s252]
                %290 = vst [vmem:[%s260 + $0x38] sm:%s252] %v289
                %v291 = vld [vmem:[%s259 + $0x68] sm:%s252]
                %292 = vst [vmem:[%s260 + $0x3c] sm:%s252] %v291
                %v293 = vld [vmem:[%s259 + $0x6c] sm:%s252]
                %294 = vst [vmem:[%s260 + $0x40] sm:%s252] %v293
                %v295 = vld [vmem:[%s259 + $0x70] sm:%s252]
                %296 = vst [vmem:[%s260 + $0x44] sm:%s252] %v295
                %v297 = vld [vmem:[%s259 + $0x74] sm:%s252]
                %298 = vst [vmem:[%s260 + $0x48] sm:%s252] %v297
                %v299 = vld [vmem:[%s259 + $0x78] sm:%s252]
                %300 = vst [vmem:[%s260 + $0x4c] sm:%s252] %v299
                %v301 = vld [vmem:[%s259 + $0x7c] sm:%s252]
                %302 = vst [vmem:[%s260 + $0x50] sm:%s252] %v301
                %v303 = vld [vmem:[%s259 + $0x80] sm:%s252]
                %304 = vst [vmem:[%s260 + $0x54] sm:%s252] %v303
                %v305 = vld [vmem:[%s259 + $0xb0] sm:%s252]
                %306 = vst [vmem:[%s260 + $0x58] sm:%s252] %v305
                %v307 = vld [vmem:[%s259 + $0xb4] sm:%s252]
                %308 = vst [vmem:[%s260 + $0x5c] sm:%s252] %v307
                %v309 = vld [vmem:[%s259 + $0xb8] sm:%s252]
                %310 = vst [vmem:[%s260 + $0x60] sm:%s252] %v309
                %v311 = vld [vmem:[%s259 + $0xbc] sm:%s252]
                %312 = vst [vmem:[%s260 + $0x64] sm:%s252] %v311
                %v313 = vld [vmem:[%s259 + $0xc0] sm:%s252]
                %314 = vst [vmem:[%s260 + $0x68] sm:%s252] %v313
                %v315 = vld [vmem:[%s259 + $0xc4] sm:%s252]
                %316 = vst [vmem:[%s260 + $0x6c] sm:%s252] %v315
                %v317 = vld [vmem:[%s259 + $0xc8] sm:%s252]
                %318 = vst [vmem:[%s260 + $0x70] sm:%s252] %v317
                %v319 = vld [vmem:[%s259 + $0xcc] sm:%s252]
                %320 = vst [vmem:[%s260 + $0x74] sm:%s252] %v319
                %v321 = vld [vmem:[%s259 + $0xd0] sm:%s252]
                %322 = vst [vmem:[%s260 + $0x78] sm:%s252] %v321
                %v323 = vld [vmem:[%s259 + $0xd4] sm:%s252]
                %324 = vst [vmem:[%s260 + $0x7c] sm:%s252] %v323
                %v325 = vld [vmem:[%s259 + $0xd8] sm:%s252]
                %326 = vst [vmem:[%s260 + $0x80] sm:%s252] %v325
                %v327 = vld [vmem:[%s259 + $0x108] sm:%s252]
                %328 = vst [vmem:[%s260 + $0x84] sm:%s252] %v327
                %v329 = vld [vmem:[%s259 + $0x10c] sm:%s252]
                %330 = vst [vmem:[%s260 + $0x88] sm:%s252] %v329
                %v331 = vld [vmem:[%s259 + $0x110] sm:%s252]
                %332 = vst [vmem:[%s260 + $0x8c] sm:%s252] %v331
                %v333 = vld [vmem:[%s259 + $0x114] sm:%s252]
                %334 = vst [vmem:[%s260 + $0x90] sm:%s252] %v333
                %v335 = vld [vmem:[%s259 + $0x118] sm:%s252]
                %336 = vst [vmem:[%s260 + $0x94] sm:%s252] %v335
                %v337 = vld [vmem:[%s259 + $0x11c] sm:%s252]
                %338 = vst [vmem:[%s260 + $0x98] sm:%s252] %v337
                %v339 = vld [vmem:[%s259 + $0x120] sm:%s252]
                %340 = vst [vmem:[%s260 + $0x9c] sm:%s252] %v339
                %v341 = vld [vmem:[%s259 + $0x124] sm:%s252]
                %342 = vst [vmem:[%s260 + $0xa0] sm:%s252] %v341
                %v343 = vld [vmem:[%s259 + $0x128] sm:%s252]
                %344 = vst [vmem:[%s260 + $0xa4] sm:%s252] %v343
                %v345 = vld [vmem:[%s259 + $0x12c] sm:%s252]
                %346 = vst [vmem:[%s260 + $0xa8] sm:%s252] %v345
                %v347 = vld [vmem:[%s259 + $0x130] sm:%s252]
                %348 = vst [vmem:[%s260 + $0xac] sm:%s252] %v347
              $region49: #{resblk_forward.3} parent=43 // loop_footer
                %s258 = sadd.s32 1, %s254
              $region50: #{resblk_forward.3} parent=43 // loop_footer_branch
                %253 = sbr.rel target = $region46
              $region51: #{resblk_forward.3} parent=43 // loop_exit
                _
            $region44: #{resblk_forward.3} parent=35 // pred_fallthru
              _
          $region36: #{resblk_forward.3} parent=31 // pred_fallthru
            _
          %457 = vnop
        $region32: #{resblk_forward.3} parent=27 // pred_fallthru
          _
      $region28: #{resblk_forward.3} parent=5 // pred_fallthru
        _
      %p458 = scmp.le.s32.totalorder 1, %s14
      %p459 = scmp.lt.s32.totalorder %s14, 3
      %p460 = pnand %p458, %p459
      %p461 = pneg %p460
      // Predicated region
      $region70: #{resblk_forward.3} parent=5 // pred_check
        _
      $region71: #{resblk_forward.3} parent=5 // pred_check_branch
        %463 = sbr.rel (%p460) target = $region73
      $region72: #{resblk_forward.3} parent=5 // pred_region
        %s464 = ssub.s32 %s14, 1
        %s465 = sand.u32 %s27, 1
        %s466 = sand.u32 %s27, 1
        %s467 = smul.addr %s466, 176
        %s468 = scalar_lea.vmem [#allocation2], %s467
        // Predicated region
        $region74: #{resblk_forward.3} parent=72 // pred_check
          %p469 = pneg %p40
        $region75: #{resblk_forward.3} parent=72 // pred_check_branch
          %471 = sbr.rel (%p469) target = $region77
        $region76: #{resblk_forward.3} parent=72 // pred_region
          _
        $region77: #{resblk_forward.3} parent=72 // pred_fallthru
          _
        %s472 = sand.u32 %s27, 1
        %s473 = sand.u32 %s27, 1
        %s474 = smul.addr %s473, 176
        %s475 = scalar_lea.vmem [#allocation2], %s474
        %p476 = pneg %p40
        %p477 = pneg %p37
        %p478 = pneg %p61
        %p479 = pneg %p58
        %p480 = pneg %p82
        %p481 = pneg %p79
        %p482 = pneg %p103
        %p483 = pneg %p100
        %p484 = pneg %p129
        %p485 = pneg %p126
        %p486 = scmp.lt.s32.totalorder %s19, 1
        %s487 = scalar_select %p486, %s19, 1
        %s488 = smul.addr %s487, 14
        %s489 = smul.addr %s488, 4
        %s490 = scalar_lea.vmem %s4, %s489
        %p491 = pneg %p155
        %p492 = pneg %p152
        %p493 = scmp.lt.s32.totalorder %s19, 1
        %s494 = scalar_select %p493, %s19, 1
        %s495 = smul.addr %s494, 2
        %s496 = scalar_lea.vmem %s5, %s495
        %p497 = pneg %p181
        %p498 = pneg %p178
        %p499 = scmp.lt.s32.totalorder %s19, 1
        %s500 = scalar_select %p499, %s19, 1
        %s501 = smul.addr %s500, 9
        %s502 = smul.addr %s501, 4
        %s503 = scalar_lea.vmem %s6, %s502
        %p504 = pneg %p207
        %p505 = pneg %p204
        %p506 = scmp.lt.s32.totalorder %s19, 1
        %s507 = scalar_select %p506, %s19, 1
        %s508 = smul.addr %s507, 2
        %s509 = scalar_lea.vmem %s7, %s508
        %p510 = scmp.lt.s32.totalorder %s19, 1
        %s511 = scalar_select %p510, %s19, 1
        %s512 = smul.addr %s511, 14
        %s513 = smul.addr %s512, 4
        %s514 = scalar_lea.vmem %s4, %s513
        %p515 = scmp.lt.s32.totalorder %s19, 1
        %s516 = scalar_select %p515, %s19, 1
        %s517 = smul.addr %s516, 2
        %s518 = scalar_lea.vmem %s5, %s517
        %p519 = scmp.lt.s32.totalorder %s19, 1
        %s520 = scalar_select %p519, %s19, 1
        %s521 = smul.addr %s520, 9
        %s522 = smul.addr %s521, 4
        %s523 = scalar_lea.vmem %s6, %s522
        %p524 = scmp.lt.s32.totalorder %s19, 1
        %s525 = scalar_select %p524, %s19, 1
        %s526 = smul.addr %s525, 2
        %s527 = scalar_lea.vmem %s7, %s526
        %v529 = vld [vmem:[%s2] sm:$0xff]
        %v530 = vld [vmem:[%s2 + $0x8] sm:$0xff]
        %v531 = vld [vmem:[%s2 + $0x10] sm:$0xff]
        %v532 = vld [vmem:[%s2 + $0x18] sm:$0xff]
        %v533 = vld [vmem:[%s2 + $0x20] sm:$0xff]
        %v534 = vld [vmem:[%s2 + $0x28] sm:$0xff]
        %v535 = vld [vmem:[%s2 + $0x30] sm:$0xff]
        %v536 = vld [vmem:[%s2 + $0x38] sm:$0xff]
        %v537 = vld [vmem:[%s2 + $0x40] sm:$0xff]
        %v538 = vld [vmem:[%s468] sm:$0xf]
        %v539 = vld [vmem:[%s468 + $0x4] sm:$0xf]
        %v540 = vld [vmem:[%s468 + $0x8] sm:$0xf]
        %v541 = vld [vmem:[%s468 + $0xc] sm:$0xf]
        %v542 = vld [vmem:[%s468 + $0x10] sm:$0xf]
        %v543 = vld [vmem:[%s468 + $0x14] sm:$0xf]
        %v544 = vld [vmem:[%s468 + $0x18] sm:$0xf]
        %v545 = vld [vmem:[%s468 + $0x1c] sm:$0xf]
        %v546 = vld [vmem:[%s468 + $0x20] sm:$0xf]
        %v547 = vld [vmem:[%s1] sm:$0xf]
        %v548 = vld [vmem:[%s1 + $0x4] sm:$0xf]
        %v549 = vld [vmem:[%s1 + $0x8] sm:$0xf]
        %v550 = vld [vmem:[%s1 + $0xc] sm:$0xf]
        %v551 = vld [vmem:[%s1 + $0x10] sm:$0xf]
        %v552 = vld [vmem:[%s1 + $0x14] sm:$0xf]
        %v553 = vld [vmem:[%s1 + $0x18] sm:$0xf]
        %v554 = vld [vmem:[%s1 + $0x1c] sm:$0xf]
        %v555 = vld [vmem:[%s1 + $0x20] sm:$0xf]
        %v556 = vld [vmem:[%s1 + $0x24] sm:$0xf]
        %v557 = vld [vmem:[%s1 + $0x28] sm:$0xf]
        %v558 = vld [vmem:[%s1 + $0x2c] sm:$0xf]
        %v559 = vld [vmem:[%s1 + $0x30] sm:$0xf]
        %v560 = vld [vmem:[%s1 + $0x34] sm:$0xf]
        %v561 = vld [vmem:[%s1 + $0x38] sm:$0xf]
        %v562 = vld [vmem:[%s1 + $0x3c] sm:$0xf]
        %s563 = scalar_lea.vmem %s468, 44 [#allocation2]
        %v564 = vld [vmem:[%s563] sm:$0xf]
        %v565 = vld [vmem:[%s563 + $0x4] sm:$0xf]
        %v566 = vld [vmem:[%s563 + $0x8] sm:$0xf]
        %v567 = vld [vmem:[%s563 + $0xc] sm:$0xf]
        %v568 = vld [vmem:[%s563 + $0x10] sm:$0xf]
        %v569 = vld [vmem:[%s563 + $0x14] sm:$0xf]
        %v570 = vld [vmem:[%s563 + $0x18] sm:$0xf]
        %v571 = vld [vmem:[%s563 + $0x1c] sm:$0xf]
        %v572 = vld [vmem:[%s563 + $0x20] sm:$0xf]
        %s573 = scalar_lea.vmem %s1, 64
        %v574 = vld [vmem:[%s573] sm:$0xf]
        %v575 = vld [vmem:[%s573 + $0x4] sm:$0xf]
        %v576 = vld [vmem:[%s573 + $0x8] sm:$0xf]
        %v577 = vld [vmem:[%s573 + $0xc] sm:$0xf]
        %v578 = vld [vmem:[%s573 + $0x10] sm:$0xf]
        %v579 = vld [vmem:[%s573 + $0x14] sm:$0xf]
        %v580 = vld [vmem:[%s573 + $0x18] sm:$0xf]
        %v581 = vld [vmem:[%s573 + $0x1c] sm:$0xf]
        %v582 = vld [vmem:[%s573 + $0x20] sm:$0xf]
        %v583 = vld [vmem:[%s573 + $0x24] sm:$0xf]
        %v584 = vld [vmem:[%s573 + $0x28] sm:$0xf]
        %v585 = vld [vmem:[%s573 + $0x2c] sm:$0xf]
        %v586 = vld [vmem:[%s573 + $0x30] sm:$0xf]
        %v587 = vld [vmem:[%s573 + $0x34] sm:$0xf]
        %v588 = vld [vmem:[%s573 + $0x38] sm:$0xf]
        %v589 = vld [vmem:[%s573 + $0x3c] sm:$0xf]
        %v599 = vunpack.c.l.b16 %v564
        %v600 = vunpack.c.l.b16 %v565
        %v601 = vunpack.c.l.b16 %v566
        %v602 = vunpack.c.l.b16 %v567
        %v603 = vunpack.c.l.b16 %v568
        %v604 = vunpack.c.l.b16 %v569
        %v605 = vunpack.c.l.b16 %v570
        %v606 = vunpack.c.l.b16 %v571
        %v607 = vunpack.c.l.b16 %v572
        %v608 = vpack.c.b16 %v600, %v599
        %v609 = vpack.c.b16 %v602, %v601
        %v610 = vpack.c.b16 %v604, %v603
        %v611 = vpack.c.b16 %v606, %v605
        %v612 = vpack.c.b16 %v607, %v607
        %v634 = vunpack.c.l.b16 %v574
        %v635 = vunpack.c.l.b16 %v575
        %v636 = vunpack.c.l.b16 %v576
        %v637 = vunpack.c.l.b16 %v577
        %v638 = vunpack.c.l.b16 %v578
        %v639 = vunpack.c.l.b16 %v579
        %v640 = vunpack.c.l.b16 %v580
        %v641 = vunpack.c.l.b16 %v581
        %v642 = vunpack.c.l.b16 %v582
        %v643 = vunpack.c.l.b16 %v583
        %v644 = vunpack.c.l.b16 %v584
        %v645 = vunpack.c.l.b16 %v585
        %v646 = vunpack.c.l.b16 %v586
        %v647 = vunpack.c.l.b16 %v587
        %v648 = vunpack.c.l.b16 %v588
        %v649 = vunpack.c.l.b16 %v589
        %v650 = vpack.c.b16 %v635, %v634
        %v651 = vpack.c.b16 %v637, %v636
        %v652 = vpack.c.b16 %v639, %v638
        %v653 = vpack.c.b16 %v641, %v640
        %v654 = vpack.c.b16 %v643, %v642
        %v655 = vpack.c.b16 %v645, %v644
        %v656 = vpack.c.b16 %v647, %v646
        %v657 = vpack.c.b16 %v649, %v648
        %666 = vmatpush.bf16.msra.mxu0 %v657
        %667 = vmatpush.bf16.msra.mxu0 %v656
        %668 = vmatpush.bf16.msra.mxu0 %v655
        %669 = vmatpush.bf16.msra.mxu0 %v654
        %670 = vmatpush.bf16.msra.mxu0 %v653
        %671 = vmatpush.bf16.msra.mxu0 %v652
        %672 = vmatpush.bf16.msra.mxu0 %v651
        %673 = vmatpush.bf16.msra.mxu0 %v650
        %674 = vmatmul.bf16.gmra.mxu0 %v608
        %v675 = vpop.f32.mrf.mxu0
        %v676 = vadd.f32 0.0, %v675
        %v677 = vpop.f32.mrf.mxu0
        %v678 = vadd.f32 0.0, %v677
        %679 = vmatmul.bf16.gmra.mxu0 %v609
        %v680 = vpop.f32.mrf.mxu0
        %v681 = vadd.f32 0.0, %v680
        %v682 = vpop.f32.mrf.mxu0
        %v683 = vadd.f32 0.0, %v682
        %684 = vmatmul.bf16.gmra.mxu0 %v610
        %v685 = vpop.f32.mrf.mxu0
        %v686 = vadd.f32 0.0, %v685
        %v687 = vpop.f32.mrf.mxu0
        %v688 = vadd.f32 0.0, %v687
        %689 = vmatmul.bf16.gmra.mxu0 %v611
        %v690 = vpop.f32.mrf.mxu0
        %v691 = vadd.f32 0.0, %v690
        %v692 = vpop.f32.mrf.mxu0
        %v693 = vadd.f32 0.0, %v692
        %694 = vmatmul.bf16.gmra.mxu0 %v612
        %v695 = vpop.f32.mrf.mxu0
        %v696 = vadd.f32 0.0, %v695
        %v697 = vpop.f32.mrf.mxu0
        %698 = vdwg.mxu0
        %v708 = vunpack.c.l.b16 %v538
        %v709 = vunpack.c.l.b16 %v539
        %v710 = vunpack.c.l.b16 %v540
        %v711 = vunpack.c.l.b16 %v541
        %v712 = vunpack.c.l.b16 %v542
        %v713 = vunpack.c.l.b16 %v543
        %v714 = vunpack.c.l.b16 %v544
        %v715 = vunpack.c.l.b16 %v545
        %v716 = vunpack.c.l.b16 %v546
        %v717 = vpack.c.b16 %v709, %v708
        %v718 = vpack.c.b16 %v711, %v710
        %v719 = vpack.c.b16 %v713, %v712
        %v720 = vpack.c.b16 %v715, %v714
        %v721 = vpack.c.b16 %v716, %v716
        %v743 = vunpack.c.l.b16 %v547
        %v744 = vunpack.c.l.b16 %v548
        %v745 = vunpack.c.l.b16 %v549
        %v746 = vunpack.c.l.b16 %v550
        %v747 = vunpack.c.l.b16 %v551
        %v748 = vunpack.c.l.b16 %v552
        %v749 = vunpack.c.l.b16 %v553
        %v750 = vunpack.c.l.b16 %v554
        %v751 = vunpack.c.l.b16 %v555
        %v752 = vunpack.c.l.b16 %v556
        %v753 = vunpack.c.l.b16 %v557
        %v754 = vunpack.c.l.b16 %v558
        %v755 = vunpack.c.l.b16 %v559
        %v756 = vunpack.c.l.b16 %v560
        %v757 = vunpack.c.l.b16 %v561
        %v758 = vunpack.c.l.b16 %v562
        %v759 = vpack.c.b16 %v744, %v743
        %v760 = vpack.c.b16 %v746, %v745
        %v761 = vpack.c.b16 %v748, %v747
        %v762 = vpack.c.b16 %v750, %v749
        %v763 = vpack.c.b16 %v752, %v751
        %v764 = vpack.c.b16 %v754, %v753
        %v765 = vpack.c.b16 %v756, %v755
        %v766 = vpack.c.b16 %v758, %v757
        %775 = vmatpush.bf16.msra.mxu0 %v766
        %776 = vmatpush.bf16.msra.mxu0 %v765
        %777 = vmatpush.bf16.msra.mxu0 %v764
        %778 = vmatpush.bf16.msra.mxu0 %v763
        %779 = vmatpush.bf16.msra.mxu0 %v762
        %780 = vmatpush.bf16.msra.mxu0 %v761
        %781 = vmatpush.bf16.msra.mxu0 %v760
        %782 = vmatpush.bf16.msra.mxu0 %v759
        %783 = vmatmul.bf16.gmra.mxu0 %v717
        %v784 = vpop.f32.mrf.mxu0
        %v785 = vadd.f32 %v676, %v784
        %v786 = vpop.f32.mrf.mxu0
        %v787 = vadd.f32 %v678, %v786
        %788 = vmatmul.bf16.gmra.mxu0 %v718
        %v789 = vpop.f32.mrf.mxu0
        %v790 = vadd.f32 %v681, %v789
        %v791 = vpop.f32.mrf.mxu0
        %v792 = vadd.f32 %v683, %v791
        %793 = vmatmul.bf16.gmra.mxu0 %v719
        %v794 = vpop.f32.mrf.mxu0
        %v795 = vadd.f32 %v686, %v794
        %v796 = vpop.f32.mrf.mxu0
        %v797 = vadd.f32 %v688, %v796
        %798 = vmatmul.bf16.gmra.mxu0 %v720
        %v799 = vpop.f32.mrf.mxu0
        %v800 = vadd.f32 %v691, %v799
        %v801 = vpop.f32.mrf.mxu0
        %v802 = vadd.f32 %v693, %v801
        %803 = vmatmul.bf16.gmra.mxu0 %v721
        %v804 = vpop.f32.mrf.mxu0
        %v805 = vadd.f32 %v696, %v804
        %v806 = vpop.f32.mrf.mxu0
        %807 = vdwg.mxu0
        %v808 = vld [vmem:[%s468] sm:$0xf]
        %v809 = vld [vmem:[%s468 + $0x4] sm:$0xf]
        %v810 = vld [vmem:[%s468 + $0x8] sm:$0xf]
        %v811 = vld [vmem:[%s468 + $0xc] sm:$0xf]
        %v812 = vld [vmem:[%s468 + $0x10] sm:$0xf]
        %v813 = vld [vmem:[%s468 + $0x14] sm:$0xf]
        %v814 = vld [vmem:[%s468 + $0x18] sm:$0xf]
        %v815 = vld [vmem:[%s468 + $0x1c] sm:$0xf]
        %v816 = vld [vmem:[%s468 + $0x20] sm:$0xf]
        %v817 = vld [vmem:[%s468 + $0x24] sm:$0x1]
        %s818 = scalar_lea.vmem %s1, 128
        %v819 = vld [vmem:[%s818] sm:$0xf]
        %v820 = vld [vmem:[%s818 + $0x4] sm:$0xf]
        %v821 = vld [vmem:[%s818 + $0x8] sm:$0xf]
        %v822 = vld [vmem:[%s818 + $0xc] sm:$0xf]
        %v823 = vld [vmem:[%s818 + $0x10] sm:$0xf]
        %v824 = vld [vmem:[%s818 + $0x14] sm:$0xf]
        %v825 = vld [vmem:[%s818 + $0x18] sm:$0xf]
        %v826 = vld [vmem:[%s818 + $0x1c] sm:$0xf]
        %v827 = vld [vmem:[%s818 + $0x20] sm:$0xf]
        %v828 = vld [vmem:[%s818 + $0x24] sm:$0xf]
        %v829 = vld [vmem:[%s818 + $0x28] sm:$0xf]
        %v830 = vld [vmem:[%s818 + $0x2c] sm:$0xf]
        %v831 = vld [vmem:[%s818 + $0x30] sm:$0xf]
        %v832 = vld [vmem:[%s818 + $0x34] sm:$0xf]
        %v833 = vld [vmem:[%s818 + $0x38] sm:$0xf]
        %v834 = vld [vmem:[%s818 + $0x3c] sm:$0xf]
        %v845 = vunpack.c.l.b16 %v808
        %v846 = vunpack.c.l.b16 %v809
        %v847 = vunpack.c.l.b16 %v810
        %v848 = vunpack.c.l.b16 %v811
        %v849 = vunpack.c.l.b16 %v812
        %v850 = vunpack.c.l.b16 %v813
        %v851 = vunpack.c.l.b16 %v814
        %v852 = vunpack.c.l.b16 %v815
        %v853 = vunpack.c.l.b16 %v816
        %v854 = vunpack.c.l.b16 %v817
        %v855 = vpack.c.b16 %v846, %v845
        %v856 = vpack.c.b16 %v848, %v847
        %v857 = vpack.c.b16 %v850, %v849
        %v858 = vpack.c.b16 %v852, %v851
        %v859 = vpack.c.b16 %v854, %v853
        %vm860 = vsmask.f32 7424
        %v862 = vshrl.u32 %v855, 16
        %v864 = vshll.u32 %v855, 16
        %v866 = vrot.slane %v864, 1
        %v867 = vor.u32 %v862, %v866
        %v869 = vshll.u32 %v856, 16
        %v871 = vrot.slane %v869, 1
        %v872 = vsel %vm860, %v867, %v871
        %v873 = vshrl.u32 %v856, 16
        %v875 = vor.u32 %v873, %v871
        %v877 = vshll.u32 %v857, 16
        %v879 = vrot.slane %v877, 1
        %v880 = vsel %vm860, %v875, %v879
        %v881 = vshrl.u32 %v857, 16
        %v883 = vor.u32 %v881, %v879
        %v885 = vshll.u32 %v858, 16
        %v887 = vrot.slane %v885, 1
        %v888 = vsel %vm860, %v883, %v887
        %v889 = vshrl.u32 %v858, 16
        %v891 = vor.u32 %v889, %v887
        %v893 = vshll.u32 %v859, 16
        %v895 = vrot.slane %v893, 1
        %v896 = vsel %vm860, %v891, %v895
        %v897 = vshrl.u32 %v859, 16
        %v899 = vor.u32 %v897, %v895
        %v921 = vunpack.c.l.b16 %v819
        %v922 = vunpack.c.l.b16 %v820
        %v923 = vunpack.c.l.b16 %v821
        %v924 = vunpack.c.l.b16 %v822
        %v925 = vunpack.c.l.b16 %v823
        %v926 = vunpack.c.l.b16 %v824
        %v927 = vunpack.c.l.b16 %v825
        %v928 = vunpack.c.l.b16 %v826
        %v929 = vunpack.c.l.b16 %v827
        %v930 = vunpack.c.l.b16 %v828
        %v931 = vunpack.c.l.b16 %v829
        %v932 = vunpack.c.l.b16 %v830
        %v933 = vunpack.c.l.b16 %v831
        %v934 = vunpack.c.l.b16 %v832
        %v935 = vunpack.c.l.b16 %v833
        %v936 = vunpack.c.l.b16 %v834
        %v937 = vpack.c.b16 %v922, %v921
        %v938 = vpack.c.b16 %v924, %v923
        %v939 = vpack.c.b16 %v926, %v925
        %v940 = vpack.c.b16 %v928, %v927
        %v941 = vpack.c.b16 %v930, %v929
        %v942 = vpack.c.b16 %v932, %v931
        %v943 = vpack.c.b16 %v934, %v933
        %v944 = vpack.c.b16 %v936, %v935
        %953 = vmatpush.bf16.msra.mxu0 %v944
        %954 = vmatpush.bf16.msra.mxu0 %v943
        %955 = vmatpush.bf16.msra.mxu0 %v942
        %956 = vmatpush.bf16.msra.mxu0 %v941
        %957 = vmatpush.bf16.msra.mxu0 %v940
        %958 = vmatpush.bf16.msra.mxu0 %v939
        %959 = vmatpush.bf16.msra.mxu0 %v938
        %960 = vmatpush.bf16.msra.mxu0 %v937
        %961 = vmatmul.bf16.gmra.mxu0 %v872
        %v962 = vpop.f32.mrf.mxu0
        %v963 = vadd.f32 0.0, %v962
        %v964 = vpop.f32.mrf.mxu0
        %v965 = vadd.f32 0.0, %v964
        %966 = vmatmul.bf16.gmra.mxu0 %v880
        %v967 = vpop.f32.mrf.mxu0
        %v968 = vadd.f32 0.0, %v967
        %v969 = vpop.f32.mrf.mxu0
        %v970 = vadd.f32 0.0, %v969
        %971 = vmatmul.bf16.gmra.mxu0 %v888
        %v972 = vpop.f32.mrf.mxu0
        %v973 = vadd.f32 0.0, %v972
        %v974 = vpop.f32.mrf.mxu0
        %v975 = vadd.f32 0.0, %v974
        %976 = vmatmul.bf16.gmra.mxu0 %v896
        %v977 = vpop.f32.mrf.mxu0
        %v978 = vadd.f32 0.0, %v977
        %v979 = vpop.f32.mrf.mxu0
        %v980 = vadd.f32 0.0, %v979
        %981 = vmatmul.bf16.gmra.mxu0 %v899
        %v982 = vpop.f32.mrf.mxu0
        %v983 = vadd.f32 0.0, %v982
        %v984 = vpop.f32.mrf.mxu0
        %985 = vdwg.mxu0
        %v986 = vadd.f32 %v785, %v963
        %v987 = vadd.f32 %v787, %v965
        %v988 = vadd.f32 %v790, %v968
        %v989 = vadd.f32 %v792, %v970
        %v990 = vadd.f32 %v795, %v973
        %v991 = vadd.f32 %v797, %v975
        %v992 = vadd.f32 %v800, %v978
        %v993 = vadd.f32 %v802, %v980
        %v994 = vadd.f32 %v805, %v983
        %s995 = scalar_lea.vmem %s468, 88 [#allocation2]
        %v996 = vld [vmem:[%s995] sm:$0xf]
        %v997 = vld [vmem:[%s995 + $0x4] sm:$0xf]
        %v998 = vld [vmem:[%s995 + $0x8] sm:$0xf]
        %v999 = vld [vmem:[%s995 + $0xc] sm:$0xf]
        %v1000 = vld [vmem:[%s995 + $0x10] sm:$0xf]
        %v1001 = vld [vmem:[%s995 + $0x14] sm:$0xf]
        %v1002 = vld [vmem:[%s995 + $0x18] sm:$0xf]
        %v1003 = vld [vmem:[%s995 + $0x1c] sm:$0xf]
        %v1004 = vld [vmem:[%s995 + $0x20] sm:$0xf]
        %s1005 = scalar_lea.vmem %s1, 192
        %v1006 = vld [vmem:[%s1005] sm:$0xf]
        %v1007 = vld [vmem:[%s1005 + $0x4] sm:$0xf]
        %v1008 = vld [vmem:[%s1005 + $0x8] sm:$0xf]
        %v1009 = vld [vmem:[%s1005 + $0xc] sm:$0xf]
        %v1010 = vld [vmem:[%s1005 + $0x10] sm:$0xf]
        %v1011 = vld [vmem:[%s1005 + $0x14] sm:$0xf]
        %v1012 = vld [vmem:[%s1005 + $0x18] sm:$0xf]
        %v1013 = vld [vmem:[%s1005 + $0x1c] sm:$0xf]
        %v1014 = vld [vmem:[%s1005 + $0x20] sm:$0xf]
        %v1015 = vld [vmem:[%s1005 + $0x24] sm:$0xf]
        %v1016 = vld [vmem:[%s1005 + $0x28] sm:$0xf]
        %v1017 = vld [vmem:[%s1005 + $0x2c] sm:$0xf]
        %v1018 = vld [vmem:[%s1005 + $0x30] sm:$0xf]
        %v1019 = vld [vmem:[%s1005 + $0x34] sm:$0xf]
        %v1020 = vld [vmem:[%s1005 + $0x38] sm:$0xf]
        %v1021 = vld [vmem:[%s1005 + $0x3c] sm:$0xf]
        %v1031 = vunpack.c.l.b16 %v996
        %v1032 = vunpack.c.l.b16 %v997
        %v1033 = vunpack.c.l.b16 %v998
        %v1034 = vunpack.c.l.b16 %v999
        %v1035 = vunpack.c.l.b16 %v1000
        %v1036 = vunpack.c.l.b16 %v1001
        %v1037 = vunpack.c.l.b16 %v1002
        %v1038 = vunpack.c.l.b16 %v1003
        %v1039 = vunpack.c.l.b16 %v1004
        %v1040 = vpack.c.b16 %v1032, %v1031
        %v1041 = vpack.c.b16 %v1034, %v1033
        %v1042 = vpack.c.b16 %v1036, %v1035
        %v1043 = vpack.c.b16 %v1038, %v1037
        %v1044 = vpack.c.b16 %v1039, %v1039
        %v1066 = vunpack.c.l.b16 %v1006
        %v1067 = vunpack.c.l.b16 %v1007
        %v1068 = vunpack.c.l.b16 %v1008
        %v1069 = vunpack.c.l.b16 %v1009
        %v1070 = vunpack.c.l.b16 %v1010
        %v1071 = vunpack.c.l.b16 %v1011
        %v1072 = vunpack.c.l.b16 %v1012
        %v1073 = vunpack.c.l.b16 %v1013
        %v1074 = vunpack.c.l.b16 %v1014
        %v1075 = vunpack.c.l.b16 %v1015
        %v1076 = vunpack.c.l.b16 %v1016
        %v1077 = vunpack.c.l.b16 %v1017
        %v1078 = vunpack.c.l.b16 %v1018
        %v1079 = vunpack.c.l.b16 %v1019
        %v1080 = vunpack.c.l.b16 %v1020
        %v1081 = vunpack.c.l.b16 %v1021
        %v1082 = vpack.c.b16 %v1067, %v1066
        %v1083 = vpack.c.b16 %v1069, %v1068
        %v1084 = vpack.c.b16 %v1071, %v1070
        %v1085 = vpack.c.b16 %v1073, %v1072
        %v1086 = vpack.c.b16 %v1075, %v1074
        %v1087 = vpack.c.b16 %v1077, %v1076
        %v1088 = vpack.c.b16 %v1079, %v1078
        %v1089 = vpack.c.b16 %v1081, %v1080
        %1098 = vmatpush.bf16.msra.mxu0 %v1089
        %1099 = vmatpush.bf16.msra.mxu0 %v1088
        %1100 = vmatpush.bf16.msra.mxu0 %v1087
        %1101 = vmatpush.bf16.msra.mxu0 %v1086
        %1102 = vmatpush.bf16.msra.mxu0 %v1085
        %1103 = vmatpush.bf16.msra.mxu0 %v1084
        %1104 = vmatpush.bf16.msra.mxu0 %v1083
        %1105 = vmatpush.bf16.msra.mxu0 %v1082
        %1106 = vmatmul.bf16.gmra.mxu0 %v1040
        %v1107 = vpop.f32.mrf.mxu0
        %v1108 = vadd.f32 0.0, %v1107
        %v1109 = vpop.f32.mrf.mxu0
        %v1110 = vadd.f32 0.0, %v1109
        %1111 = vmatmul.bf16.gmra.mxu0 %v1041
        %v1112 = vpop.f32.mrf.mxu0
        %v1113 = vadd.f32 0.0, %v1112
        %v1114 = vpop.f32.mrf.mxu0
        %v1115 = vadd.f32 0.0, %v1114
        %1116 = vmatmul.bf16.gmra.mxu0 %v1042
        %v1117 = vpop.f32.mrf.mxu0
        %v1118 = vadd.f32 0.0, %v1117
        %v1119 = vpop.f32.mrf.mxu0
        %v1120 = vadd.f32 0.0, %v1119
        %1121 = vmatmul.bf16.gmra.mxu0 %v1043
        %v1122 = vpop.f32.mrf.mxu0
        %v1123 = vadd.f32 0.0, %v1122
        %v1124 = vpop.f32.mrf.mxu0
        %v1125 = vadd.f32 0.0, %v1124
        %1126 = vmatmul.bf16.gmra.mxu0 %v1044
        %v1127 = vpop.f32.mrf.mxu0
        %v1128 = vadd.f32 0.0, %v1127
        %v1129 = vpop.f32.mrf.mxu0
        %1130 = vdwg.mxu0
        %v1131 = vadd.f32 %v986, %v1108
        %v1132 = vadd.f32 %v987, %v1110
        %v1133 = vadd.f32 %v988, %v1113
        %v1134 = vadd.f32 %v989, %v1115
        %v1135 = vadd.f32 %v990, %v1118
        %v1136 = vadd.f32 %v991, %v1120
        %v1137 = vadd.f32 %v992, %v1123
        %v1138 = vadd.f32 %v993, %v1125
        %v1139 = vadd.f32 %v994, %v1128
        %s1140 = scalar_lea.vmem %s468, 132 [#allocation2]
        %v1141 = vld [vmem:[%s1140] sm:$0xf]
        %v1142 = vld [vmem:[%s1140 + $0x4] sm:$0xf]
        %v1143 = vld [vmem:[%s1140 + $0x8] sm:$0xf]
        %v1144 = vld [vmem:[%s1140 + $0xc] sm:$0xf]
        %v1145 = vld [vmem:[%s1140 + $0x10] sm:$0xf]
        %v1146 = vld [vmem:[%s1140 + $0x14] sm:$0xf]
        %v1147 = vld [vmem:[%s1140 + $0x18] sm:$0xf]
        %v1148 = vld [vmem:[%s1140 + $0x1c] sm:$0xf]
        %v1149 = vld [vmem:[%s1140 + $0x20] sm:$0xf]
        %s1150 = scalar_lea.vmem %s1, 256
        %v1151 = vld [vmem:[%s1150] sm:$0xf]
        %v1152 = vld [vmem:[%s1150 + $0x4] sm:$0xf]
        %v1153 = vld [vmem:[%s1150 + $0x8] sm:$0xf]
        %v1154 = vld [vmem:[%s1150 + $0xc] sm:$0xf]
        %v1155 = vld [vmem:[%s1150 + $0x10] sm:$0xf]
        %v1156 = vld [vmem:[%s1150 + $0x14] sm:$0xf]
        %v1157 = vld [vmem:[%s1150 + $0x18] sm:$0xf]
        %v1158 = vld [vmem:[%s1150 + $0x1c] sm:$0xf]
        %v1159 = vld [vmem:[%s1150 + $0x20] sm:$0xf]
        %v1160 = vld [vmem:[%s1150 + $0x24] sm:$0xf]
        %v1161 = vld [vmem:[%s1150 + $0x28] sm:$0xf]
        %v1162 = vld [vmem:[%s1150 + $0x2c] sm:$0xf]
        %v1163 = vld [vmem:[%s1150 + $0x30] sm:$0xf]
        %v1164 = vld [vmem:[%s1150 + $0x34] sm:$0xf]
        %v1165 = vld [vmem:[%s1150 + $0x38] sm:$0xf]
        %v1166 = vld [vmem:[%s1150 + $0x3c] sm:$0xf]
        %v1176 = vunpack.c.l.b16 %v1141
        %v1177 = vunpack.c.l.b16 %v1142
        %v1178 = vunpack.c.l.b16 %v1143
        %v1179 = vunpack.c.l.b16 %v1144
        %v1180 = vunpack.c.l.b16 %v1145
        %v1181 = vunpack.c.l.b16 %v1146
        %v1182 = vunpack.c.l.b16 %v1147
        %v1183 = vunpack.c.l.b16 %v1148
        %v1184 = vunpack.c.l.b16 %v1149
        %v1185 = vpack.c.b16 %v1177, %v1176
        %v1186 = vpack.c.b16 %v1179, %v1178
        %v1187 = vpack.c.b16 %v1181, %v1180
        %v1188 = vpack.c.b16 %v1183, %v1182
        %v1189 = vpack.c.b16 %v1184, %v1184
        %v1211 = vunpack.c.l.b16 %v1151
        %v1212 = vunpack.c.l.b16 %v1152
        %v1213 = vunpack.c.l.b16 %v1153
        %v1214 = vunpack.c.l.b16 %v1154
        %v1215 = vunpack.c.l.b16 %v1155
        %v1216 = vunpack.c.l.b16 %v1156
        %v1217 = vunpack.c.l.b16 %v1157
        %v1218 = vunpack.c.l.b16 %v1158
        %v1219 = vunpack.c.l.b16 %v1159
        %v1220 = vunpack.c.l.b16 %v1160
        %v1221 = vunpack.c.l.b16 %v1161
        %v1222 = vunpack.c.l.b16 %v1162
        %v1223 = vunpack.c.l.b16 %v1163
        %v1224 = vunpack.c.l.b16 %v1164
        %v1225 = vunpack.c.l.b16 %v1165
        %v1226 = vunpack.c.l.b16 %v1166
        %v1227 = vpack.c.b16 %v1212, %v1211
        %v1228 = vpack.c.b16 %v1214, %v1213
        %v1229 = vpack.c.b16 %v1216, %v1215
        %v1230 = vpack.c.b16 %v1218, %v1217
        %v1231 = vpack.c.b16 %v1220, %v1219
        %v1232 = vpack.c.b16 %v1222, %v1221
        %v1233 = vpack.c.b16 %v1224, %v1223
        %v1234 = vpack.c.b16 %v1226, %v1225
        %1243 = vmatpush.bf16.msra.mxu0 %v1234
        %1244 = vmatpush.bf16.msra.mxu0 %v1233
        %1245 = vmatpush.bf16.msra.mxu0 %v1232
        %1246 = vmatpush.bf16.msra.mxu0 %v1231
        %1247 = vmatpush.bf16.msra.mxu0 %v1230
        %1248 = vmatpush.bf16.msra.mxu0 %v1229
        %1249 = vmatpush.bf16.msra.mxu0 %v1228
        %1250 = vmatpush.bf16.msra.mxu0 %v1227
        %1251 = vmatmul.bf16.gmra.mxu0 %v1185
        %v1252 = vpop.f32.mrf.mxu0
        %v1253 = vadd.f32 0.0, %v1252
        %v1254 = vpop.f32.mrf.mxu0
        %v1255 = vadd.f32 0.0, %v1254
        %1256 = vmatmul.bf16.gmra.mxu0 %v1186
        %v1257 = vpop.f32.mrf.mxu0
        %v1258 = vadd.f32 0.0, %v1257
        %v1259 = vpop.f32.mrf.mxu0
        %v1260 = vadd.f32 0.0, %v1259
        %1261 = vmatmul.bf16.gmra.mxu0 %v1187
        %v1262 = vpop.f32.mrf.mxu0
        %v1263 = vadd.f32 0.0, %v1262
        %v1264 = vpop.f32.mrf.mxu0
        %v1265 = vadd.f32 0.0, %v1264
        %1266 = vmatmul.bf16.gmra.mxu0 %v1188
        %v1267 = vpop.f32.mrf.mxu0
        %v1268 = vadd.f32 0.0, %v1267
        %v1269 = vpop.f32.mrf.mxu0
        %v1270 = vadd.f32 0.0, %v1269
        %1271 = vmatmul.bf16.gmra.mxu0 %v1189
        %v1272 = vpop.f32.mrf.mxu0
        %v1273 = vadd.f32 0.0, %v1272
        %v1274 = vpop.f32.mrf.mxu0
        %1275 = vdwg.mxu0
        %v1276 = vadd.f32 %v1131, %v1253
        %v1277 = vadd.f32 %v1132, %v1255
        %v1278 = vadd.f32 %v1133, %v1258
        %v1279 = vadd.f32 %v1134, %v1260
        %v1280 = vadd.f32 %v1135, %v1263
        %v1281 = vadd.f32 %v1136, %v1265
        %v1282 = vadd.f32 %v1137, %v1268
        %v1283 = vadd.f32 %v1138, %v1270
        %v1284 = vadd.f32 %v1139, %v1273
        %v1285 = vld [vmem:[%s995] sm:$0xf]
        %v1286 = vld [vmem:[%s995 + $0x4] sm:$0xf]
        %v1287 = vld [vmem:[%s995 + $0x8] sm:$0xf]
        %v1288 = vld [vmem:[%s995 + $0xc] sm:$0xf]
        %v1289 = vld [vmem:[%s995 + $0x10] sm:$0xf]
        %v1290 = vld [vmem:[%s995 + $0x14] sm:$0xf]
        %v1291 = vld [vmem:[%s995 + $0x18] sm:$0xf]
        %v1292 = vld [vmem:[%s995 + $0x1c] sm:$0xf]
        %v1293 = vld [vmem:[%s995 + $0x20] sm:$0xf]
        %v1294 = vld [vmem:[%s995 + $0x24] sm:$0x1]
        %s1295 = scalar_lea.vmem %s1, 320
        %v1296 = vld [vmem:[%s1295] sm:$0xf]
        %v1297 = vld [vmem:[%s1295 + $0x4] sm:$0xf]
        %v1298 = vld [vmem:[%s1295 + $0x8] sm:$0xf]
        %v1299 = vld [vmem:[%s1295 + $0xc] sm:$0xf]
        %v1300 = vld [vmem:[%s1295 + $0x10] sm:$0xf]
        %v1301 = vld [vmem:[%s1295 + $0x14] sm:$0xf]
        %v1302 = vld [vmem:[%s1295 + $0x18] sm:$0xf]
        %v1303 = vld [vmem:[%s1295 + $0x1c] sm:$0xf]
        %v1304 = vld [vmem:[%s1295 + $0x20] sm:$0xf]
        %v1305 = vld [vmem:[%s1295 + $0x24] sm:$0xf]
        %v1306 = vld [vmem:[%s1295 + $0x28] sm:$0xf]
        %v1307 = vld [vmem:[%s1295 + $0x2c] sm:$0xf]
        %v1308 = vld [vmem:[%s1295 + $0x30] sm:$0xf]
        %v1309 = vld [vmem:[%s1295 + $0x34] sm:$0xf]
        %v1310 = vld [vmem:[%s1295 + $0x38] sm:$0xf]
        %v1311 = vld [vmem:[%s1295 + $0x3c] sm:$0xf]
        %v1322 = vunpack.c.l.b16 %v1285
        %v1323 = vunpack.c.l.b16 %v1286
        %v1324 = vunpack.c.l.b16 %v1287
        %v1325 = vunpack.c.l.b16 %v1288
        %v1326 = vunpack.c.l.b16 %v1289
        %v1327 = vunpack.c.l.b16 %v1290
        %v1328 = vunpack.c.l.b16 %v1291
        %v1329 = vunpack.c.l.b16 %v1292
        %v1330 = vunpack.c.l.b16 %v1293
        %v1331 = vunpack.c.l.b16 %v1294
        %v1332 = vpack.c.b16 %v1323, %v1322
        %v1333 = vpack.c.b16 %v1325, %v1324
        %v1334 = vpack.c.b16 %v1327, %v1326
        %v1335 = vpack.c.b16 %v1329, %v1328
        %v1336 = vpack.c.b16 %v1331, %v1330
        %v1338 = vshrl.u32 %v1332, 16
        %v1340 = vshll.u32 %v1332, 16
        %v1342 = vrot.slane %v1340, 1
        %v1343 = vor.u32 %v1338, %v1342
        %v1345 = vshll.u32 %v1333, 16
        %v1347 = vrot.slane %v1345, 1
        %v1348 = vsel %vm860, %v1343, %v1347
        %v1349 = vshrl.u32 %v1333, 16
        %v1351 = vor.u32 %v1349, %v1347
        %v1353 = vshll.u32 %v1334, 16
        %v1355 = vrot.slane %v1353, 1
        %v1356 = vsel %vm860, %v1351, %v1355
        %v1357 = vshrl.u32 %v1334, 16
        %v1359 = vor.u32 %v1357, %v1355
        %v1361 = vshll.u32 %v1335, 16
        %v1363 = vrot.slane %v1361, 1
        %v1364 = vsel %vm860, %v1359, %v1363
        %v1365 = vshrl.u32 %v1335, 16
        %v1367 = vor.u32 %v1365, %v1363
        %v1369 = vshll.u32 %v1336, 16
        %v1371 = vrot.slane %v1369, 1
        %v1372 = vsel %vm860, %v1367, %v1371
        %v1373 = vshrl.u32 %v1336, 16
        %v1375 = vor.u32 %v1373, %v1371
        %v1397 = vunpack.c.l.b16 %v1296
        %v1398 = vunpack.c.l.b16 %v1297
        %v1399 = vunpack.c.l.b16 %v1298
        %v1400 = vunpack.c.l.b16 %v1299
        %v1401 = vunpack.c.l.b16 %v1300
        %v1402 = vunpack.c.l.b16 %v1301
        %v1403 = vunpack.c.l.b16 %v1302
        %v1404 = vunpack.c.l.b16 %v1303
        %v1405 = vunpack.c.l.b16 %v1304
        %v1406 = vunpack.c.l.b16 %v1305
        %v1407 = vunpack.c.l.b16 %v1306
        %v1408 = vunpack.c.l.b16 %v1307
        %v1409 = vunpack.c.l.b16 %v1308
        %v1410 = vunpack.c.l.b16 %v1309
        %v1411 = vunpack.c.l.b16 %v1310
        %v1412 = vunpack.c.l.b16 %v1311
        %v1413 = vpack.c.b16 %v1398, %v1397
        %v1414 = vpack.c.b16 %v1400, %v1399
        %v1415 = vpack.c.b16 %v1402, %v1401
        %v1416 = vpack.c.b16 %v1404, %v1403
        %v1417 = vpack.c.b16 %v1406, %v1405
        %v1418 = vpack.c.b16 %v1408, %v1407
        %v1419 = vpack.c.b16 %v1410, %v1409
        %v1420 = vpack.c.b16 %v1412, %v1411
        %1429 = vmatpush.bf16.msra.mxu0 %v1420
        %1430 = vmatpush.bf16.msra.mxu0 %v1419
        %1431 = vmatpush.bf16.msra.mxu0 %v1418
        %1432 = vmatpush.bf16.msra.mxu0 %v1417
        %1433 = vmatpush.bf16.msra.mxu0 %v1416
        %1434 = vmatpush.bf16.msra.mxu0 %v1415
        %1435 = vmatpush.bf16.msra.mxu0 %v1414
        %1436 = vmatpush.bf16.msra.mxu0 %v1413
        %1437 = vmatmul.bf16.gmra.mxu0 %v1348
        %v1438 = vpop.f32.mrf.mxu0
        %v1439 = vadd.f32 0.0, %v1438
        %v1440 = vpop.f32.mrf.mxu0
        %v1441 = vadd.f32 0.0, %v1440
        %1442 = vmatmul.bf16.gmra.mxu0 %v1356
        %v1443 = vpop.f32.mrf.mxu0
        %v1444 = vadd.f32 0.0, %v1443
        %v1445 = vpop.f32.mrf.mxu0
        %v1446 = vadd.f32 0.0, %v1445
        %1447 = vmatmul.bf16.gmra.mxu0 %v1364
        %v1448 = vpop.f32.mrf.mxu0
        %v1449 = vadd.f32 0.0, %v1448
        %v1450 = vpop.f32.mrf.mxu0
        %v1451 = vadd.f32 0.0, %v1450
        %1452 = vmatmul.bf16.gmra.mxu0 %v1372
        %v1453 = vpop.f32.mrf.mxu0
        %v1454 = vadd.f32 0.0, %v1453
        %v1455 = vpop.f32.mrf.mxu0
        %v1456 = vadd.f32 0.0, %v1455
        %1457 = vmatmul.bf16.gmra.mxu0 %v1375
        %v1458 = vpop.f32.mrf.mxu0
        %v1459 = vadd.f32 0.0, %v1458
        %v1460 = vpop.f32.mrf.mxu0
        %1461 = vdwg.mxu0
        %v1462 = vadd.f32 %v1276, %v1439
        %v1463 = vadd.f32 %v1277, %v1441
        %v1464 = vadd.f32 %v1278, %v1444
        %v1465 = vadd.f32 %v1279, %v1446
        %v1466 = vadd.f32 %v1280, %v1449
        %v1467 = vadd.f32 %v1281, %v1451
        %v1468 = vadd.f32 %v1282, %v1454
        %v1469 = vadd.f32 %v1283, %v1456
        %v1470 = vadd.f32 %v1284, %v1459
        %v1471 = vld [vmem:[%s468 + $0x4] sm:$0xf]
        %v1472 = vld [vmem:[%s468 + $0x8] sm:$0xf]
        %v1473 = vld [vmem:[%s468 + $0xc] sm:$0xf]
        %v1474 = vld [vmem:[%s468 + $0x10] sm:$0xf]
        %v1475 = vld [vmem:[%s468 + $0x14] sm:$0xf]
        %v1476 = vld [vmem:[%s468 + $0x18] sm:$0xf]
        %v1477 = vld [vmem:[%s468 + $0x1c] sm:$0xf]
        %v1478 = vld [vmem:[%s468 + $0x20] sm:$0xf]
        %v1479 = vld [vmem:[%s468 + $0x24] sm:$0xf]
        %v1480 = vld [vmem:[%s468 + $0x28] sm:$0x1]
        %s1481 = scalar_lea.vmem %s1, 384
        %v1482 = vld [vmem:[%s1481] sm:$0xf]
        %v1483 = vld [vmem:[%s1481 + $0x4] sm:$0xf]
        %v1484 = vld [vmem:[%s1481 + $0x8] sm:$0xf]
        %v1485 = vld [vmem:[%s1481 + $0xc] sm:$0xf]
        %v1486 = vld [vmem:[%s1481 + $0x10] sm:$0xf]
        %v1487 = vld [vmem:[%s1481 + $0x14] sm:$0xf]
        %v1488 = vld [vmem:[%s1481 + $0x18] sm:$0xf]
        %v1489 = vld [vmem:[%s1481 + $0x1c] sm:$0xf]
        %v1490 = vld [vmem:[%s1481 + $0x20] sm:$0xf]
        %v1491 = vld [vmem:[%s1481 + $0x24] sm:$0xf]
        %v1492 = vld [vmem:[%s1481 + $0x28] sm:$0xf]
        %v1493 = vld [vmem:[%s1481 + $0x2c] sm:$0xf]
        %v1494 = vld [vmem:[%s1481 + $0x30] sm:$0xf]
        %v1495 = vld [vmem:[%s1481 + $0x34] sm:$0xf]
        %v1496 = vld [vmem:[%s1481 + $0x38] sm:$0xf]
        %v1497 = vld [vmem:[%s1481 + $0x3c] sm:$0xf]
        %v1508 = vunpack.c.l.b16 %v1471
        %v1509 = vunpack.c.l.b16 %v1472
        %v1510 = vunpack.c.l.b16 %v1473
        %v1511 = vunpack.c.l.b16 %v1474
        %v1512 = vunpack.c.l.b16 %v1475
        %v1513 = vunpack.c.l.b16 %v1476
        %v1514 = vunpack.c.l.b16 %v1477
        %v1515 = vunpack.c.l.b16 %v1478
        %v1516 = vunpack.c.l.b16 %v1479
        %v1517 = vunpack.c.l.b16 %v1480
        %v1518 = vpack.c.b16 %v1509, %v1508
        %v1519 = vpack.c.b16 %v1511, %v1510
        %v1520 = vpack.c.b16 %v1513, %v1512
        %v1521 = vpack.c.b16 %v1515, %v1514
        %v1522 = vpack.c.b16 %v1517, %v1516
        %v1524 = vshrl.u32 %v1518, 16
        %v1526 = vshll.u32 %v1518, 16
        %v1528 = vrot.slane %v1526, 1
        %v1529 = vor.u32 %v1524, %v1528
        %v1531 = vshll.u32 %v1519, 16
        %v1533 = vrot.slane %v1531, 1
        %v1534 = vsel %vm860, %v1529, %v1533
        %v1535 = vshrl.u32 %v1519, 16
        %v1537 = vor.u32 %v1535, %v1533
        %v1539 = vshll.u32 %v1520, 16
        %v1541 = vrot.slane %v1539, 1
        %v1542 = vsel %vm860, %v1537, %v1541
        %v1543 = vshrl.u32 %v1520, 16
        %v1545 = vor.u32 %v1543, %v1541
        %v1547 = vshll.u32 %v1521, 16
        %v1549 = vrot.slane %v1547, 1
        %v1550 = vsel %vm860, %v1545, %v1549
        %v1551 = vshrl.u32 %v1521, 16
        %v1553 = vor.u32 %v1551, %v1549
        %v1555 = vshll.u32 %v1522, 16
        %v1557 = vrot.slane %v1555, 1
        %v1558 = vsel %vm860, %v1553, %v1557
        %v1559 = vshrl.u32 %v1522, 16
        %v1561 = vor.u32 %v1559, %v1557
        %v1583 = vunpack.c.l.b16 %v1482
        %v1584 = vunpack.c.l.b16 %v1483
        %v1585 = vunpack.c.l.b16 %v1484
        %v1586 = vunpack.c.l.b16 %v1485
        %v1587 = vunpack.c.l.b16 %v1486
        %v1588 = vunpack.c.l.b16 %v1487
        %v1589 = vunpack.c.l.b16 %v1488
        %v1590 = vunpack.c.l.b16 %v1489
        %v1591 = vunpack.c.l.b16 %v1490
        %v1592 = vunpack.c.l.b16 %v1491
        %v1593 = vunpack.c.l.b16 %v1492
        %v1594 = vunpack.c.l.b16 %v1493
        %v1595 = vunpack.c.l.b16 %v1494
        %v1596 = vunpack.c.l.b16 %v1495
        %v1597 = vunpack.c.l.b16 %v1496
        %v1598 = vunpack.c.l.b16 %v1497
        %v1599 = vpack.c.b16 %v1584, %v1583
        %v1600 = vpack.c.b16 %v1586, %v1585
        %v1601 = vpack.c.b16 %v1588, %v1587
        %v1602 = vpack.c.b16 %v1590, %v1589
        %v1603 = vpack.c.b16 %v1592, %v1591
        %v1604 = vpack.c.b16 %v1594, %v1593
        %v1605 = vpack.c.b16 %v1596, %v1595
        %v1606 = vpack.c.b16 %v1598, %v1597
        %1615 = vmatpush.bf16.msra.mxu0 %v1606
        %1616 = vmatpush.bf16.msra.mxu0 %v1605
        %1617 = vmatpush.bf16.msra.mxu0 %v1604
        %1618 = vmatpush.bf16.msra.mxu0 %v1603
        %1619 = vmatpush.bf16.msra.mxu0 %v1602
        %1620 = vmatpush.bf16.msra.mxu0 %v1601
        %1621 = vmatpush.bf16.msra.mxu0 %v1600
        %1622 = vmatpush.bf16.msra.mxu0 %v1599
        %1623 = vmatmul.bf16.gmra.mxu0 %v1534
        %v1624 = vpop.f32.mrf.mxu0
        %v1625 = vadd.f32 0.0, %v1624
        %v1626 = vpop.f32.mrf.mxu0
        %v1627 = vadd.f32 0.0, %v1626
        %1628 = vmatmul.bf16.gmra.mxu0 %v1542
        %v1629 = vpop.f32.mrf.mxu0
        %v1630 = vadd.f32 0.0, %v1629
        %v1631 = vpop.f32.mrf.mxu0
        %v1632 = vadd.f32 0.0, %v1631
        %1633 = vmatmul.bf16.gmra.mxu0 %v1550
        %v1634 = vpop.f32.mrf.mxu0
        %v1635 = vadd.f32 0.0, %v1634
        %v1636 = vpop.f32.mrf.mxu0
        %v1637 = vadd.f32 0.0, %v1636
        %1638 = vmatmul.bf16.gmra.mxu0 %v1558
        %v1639 = vpop.f32.mrf.mxu0
        %v1640 = vadd.f32 0.0, %v1639
        %v1641 = vpop.f32.mrf.mxu0
        %v1642 = vadd.f32 0.0, %v1641
        %1643 = vmatmul.bf16.gmra.mxu0 %v1561
        %v1644 = vpop.f32.mrf.mxu0
        %v1645 = vadd.f32 0.0, %v1644
        %v1646 = vpop.f32.mrf.mxu0
        %1647 = vdwg.mxu0
        %v1648 = vadd.f32 %v1462, %v1625
        %v1649 = vadd.f32 %v1463, %v1627
        %v1650 = vadd.f32 %v1464, %v1630
        %v1651 = vadd.f32 %v1465, %v1632
        %v1652 = vadd.f32 %v1466, %v1635
        %v1653 = vadd.f32 %v1467, %v1637
        %v1654 = vadd.f32 %v1468, %v1640
        %v1655 = vadd.f32 %v1469, %v1642
        %v1656 = vadd.f32 %v1470, %v1645
        %v1657 = vld [vmem:[%s563 + $0x4] sm:$0xf]
        %v1658 = vld [vmem:[%s563 + $0x8] sm:$0xf]
        %v1659 = vld [vmem:[%s563 + $0xc] sm:$0xf]
        %v1660 = vld [vmem:[%s563 + $0x10] sm:$0xf]
        %v1661 = vld [vmem:[%s563 + $0x14] sm:$0xf]
        %v1662 = vld [vmem:[%s563 + $0x18] sm:$0xf]
        %v1663 = vld [vmem:[%s563 + $0x1c] sm:$0xf]
        %v1664 = vld [vmem:[%s563 + $0x20] sm:$0xf]
        %v1665 = vld [vmem:[%s563 + $0x24] sm:$0xf]
        %v1666 = vld [vmem:[%s563 + $0x28] sm:$0x1]
        %s1667 = scalar_lea.vmem %s1, 448
        %v1668 = vld [vmem:[%s1667] sm:$0xf]
        %v1669 = vld [vmem:[%s1667 + $0x4] sm:$0xf]
        %v1670 = vld [vmem:[%s1667 + $0x8] sm:$0xf]
        %v1671 = vld [vmem:[%s1667 + $0xc] sm:$0xf]
        %v1672 = vld [vmem:[%s1667 + $0x10] sm:$0xf]
        %v1673 = vld [vmem:[%s1667 + $0x14] sm:$0xf]
        %v1674 = vld [vmem:[%s1667 + $0x18] sm:$0xf]
        %v1675 = vld [vmem:[%s1667 + $0x1c] sm:$0xf]
        %v1676 = vld [vmem:[%s1667 + $0x20] sm:$0xf]
        %v1677 = vld [vmem:[%s1667 + $0x24] sm:$0xf]
        %v1678 = vld [vmem:[%s1667 + $0x28] sm:$0xf]
        %v1679 = vld [vmem:[%s1667 + $0x2c] sm:$0xf]
        %v1680 = vld [vmem:[%s1667 + $0x30] sm:$0xf]
        %v1681 = vld [vmem:[%s1667 + $0x34] sm:$0xf]
        %v1682 = vld [vmem:[%s1667 + $0x38] sm:$0xf]
        %v1683 = vld [vmem:[%s1667 + $0x3c] sm:$0xf]
        %v1694 = vunpack.c.l.b16 %v1657
        %v1695 = vunpack.c.l.b16 %v1658
        %v1696 = vunpack.c.l.b16 %v1659
        %v1697 = vunpack.c.l.b16 %v1660
        %v1698 = vunpack.c.l.b16 %v1661
        %v1699 = vunpack.c.l.b16 %v1662
        %v1700 = vunpack.c.l.b16 %v1663
        %v1701 = vunpack.c.l.b16 %v1664
        %v1702 = vunpack.c.l.b16 %v1665
        %v1703 = vunpack.c.l.b16 %v1666
        %v1704 = vpack.c.b16 %v1695, %v1694
        %v1705 = vpack.c.b16 %v1697, %v1696
        %v1706 = vpack.c.b16 %v1699, %v1698
        %v1707 = vpack.c.b16 %v1701, %v1700
        %v1708 = vpack.c.b16 %v1703, %v1702
        %v1710 = vshrl.u32 %v1704, 16
        %v1712 = vshll.u32 %v1704, 16
        %v1714 = vrot.slane %v1712, 1
        %v1715 = vor.u32 %v1710, %v1714
        %v1717 = vshll.u32 %v1705, 16
        %v1719 = vrot.slane %v1717, 1
        %v1720 = vsel %vm860, %v1715, %v1719
        %v1721 = vshrl.u32 %v1705, 16
        %v1723 = vor.u32 %v1721, %v1719
        %v1725 = vshll.u32 %v1706, 16
        %v1727 = vrot.slane %v1725, 1
        %v1728 = vsel %vm860, %v1723, %v1727
        %v1729 = vshrl.u32 %v1706, 16
        %v1731 = vor.u32 %v1729, %v1727
        %v1733 = vshll.u32 %v1707, 16
        %v1735 = vrot.slane %v1733, 1
        %v1736 = vsel %vm860, %v1731, %v1735
        %v1737 = vshrl.u32 %v1707, 16
        %v1739 = vor.u32 %v1737, %v1735
        %v1741 = vshll.u32 %v1708, 16
        %v1743 = vrot.slane %v1741, 1
        %v1744 = vsel %vm860, %v1739, %v1743
        %v1745 = vshrl.u32 %v1708, 16
        %v1747 = vor.u32 %v1745, %v1743
        %v1769 = vunpack.c.l.b16 %v1668
        %v1770 = vunpack.c.l.b16 %v1669
        %v1771 = vunpack.c.l.b16 %v1670
        %v1772 = vunpack.c.l.b16 %v1671
        %v1773 = vunpack.c.l.b16 %v1672
        %v1774 = vunpack.c.l.b16 %v1673
        %v1775 = vunpack.c.l.b16 %v1674
        %v1776 = vunpack.c.l.b16 %v1675
        %v1777 = vunpack.c.l.b16 %v1676
        %v1778 = vunpack.c.l.b16 %v1677
        %v1779 = vunpack.c.l.b16 %v1678
        %v1780 = vunpack.c.l.b16 %v1679
        %v1781 = vunpack.c.l.b16 %v1680
        %v1782 = vunpack.c.l.b16 %v1681
        %v1783 = vunpack.c.l.b16 %v1682
        %v1784 = vunpack.c.l.b16 %v1683
        %v1785 = vpack.c.b16 %v1770, %v1769
        %v1786 = vpack.c.b16 %v1772, %v1771
        %v1787 = vpack.c.b16 %v1774, %v1773
        %v1788 = vpack.c.b16 %v1776, %v1775
        %v1789 = vpack.c.b16 %v1778, %v1777
        %v1790 = vpack.c.b16 %v1780, %v1779
        %v1791 = vpack.c.b16 %v1782, %v1781
        %v1792 = vpack.c.b16 %v1784, %v1783
        %1801 = vmatpush.bf16.msra.mxu0 %v1792
        %1802 = vmatpush.bf16.msra.mxu0 %v1791
        %1803 = vmatpush.bf16.msra.mxu0 %v1790
        %1804 = vmatpush.bf16.msra.mxu0 %v1789
        %1805 = vmatpush.bf16.msra.mxu0 %v1788
        %1806 = vmatpush.bf16.msra.mxu0 %v1787
        %1807 = vmatpush.bf16.msra.mxu0 %v1786
        %1808 = vmatpush.bf16.msra.mxu0 %v1785
        %1809 = vmatmul.bf16.gmra.mxu0 %v1720
        %v1810 = vpop.f32.mrf.mxu0
        %v1811 = vadd.f32 0.0, %v1810
        %v1812 = vpop.f32.mrf.mxu0
        %v1813 = vadd.f32 0.0, %v1812
        %1814 = vmatmul.bf16.gmra.mxu0 %v1728
        %v1815 = vpop.f32.mrf.mxu0
        %v1816 = vadd.f32 0.0, %v1815
        %v1817 = vpop.f32.mrf.mxu0
        %v1818 = vadd.f32 0.0, %v1817
        %1819 = vmatmul.bf16.gmra.mxu0 %v1736
        %v1820 = vpop.f32.mrf.mxu0
        %v1821 = vadd.f32 0.0, %v1820
        %v1822 = vpop.f32.mrf.mxu0
        %v1823 = vadd.f32 0.0, %v1822
        %1824 = vmatmul.bf16.gmra.mxu0 %v1744
        %v1825 = vpop.f32.mrf.mxu0
        %v1826 = vadd.f32 0.0, %v1825
        %v1827 = vpop.f32.mrf.mxu0
        %v1828 = vadd.f32 0.0, %v1827
        %1829 = vmatmul.bf16.gmra.mxu0 %v1747
        %v1830 = vpop.f32.mrf.mxu0
        %v1831 = vadd.f32 0.0, %v1830
        %v1832 = vpop.f32.mrf.mxu0
        %1833 = vdwg.mxu0
        %v1834 = vadd.f32 %v1648, %v1811
        %v1835 = vadd.f32 %v1649, %v1813
        %v1836 = vadd.f32 %v1650, %v1816
        %v1837 = vadd.f32 %v1651, %v1818
        %v1838 = vadd.f32 %v1652, %v1821
        %v1839 = vadd.f32 %v1653, %v1823
        %v1840 = vadd.f32 %v1654, %v1826
        %v1841 = vadd.f32 %v1655, %v1828
        %v1842 = vadd.f32 %v1656, %v1831
        %v1843 = vld [vmem:[%s468 + $0x4] sm:$0xe]
        %s1844 = scalar_lea.vmem %s1, 512
        %v1845 = vld [vmem:[%s1844] sm:$0xf]
        %v1846 = vld [vmem:[%s1844 + $0x4] sm:$0xf]
        %v1847 = vld [vmem:[%s1844 + $0x8] sm:$0xf]
        %v1848 = vld [vmem:[%s1844 + $0xc] sm:$0xf]
        %v1849 = vld [vmem:[%s1844 + $0x10] sm:$0xf]
        %v1850 = vld [vmem:[%s1844 + $0x14] sm:$0xf]
        %v1851 = vld [vmem:[%s1844 + $0x18] sm:$0xf]
        %v1852 = vld [vmem:[%s1844 + $0x1c] sm:$0xf]
        %v1853 = vld [vmem:[%s1844 + $0x20] sm:$0xf]
        %v1854 = vld [vmem:[%s1844 + $0x24] sm:$0xf]
        %v1855 = vld [vmem:[%s1844 + $0x28] sm:$0xf]
        %v1856 = vld [vmem:[%s1844 + $0x2c] sm:$0xf]
        %v1857 = vld [vmem:[%s1844 + $0x30] sm:$0xf]
        %v1858 = vld [vmem:[%s1844 + $0x34] sm:$0xf]
        %v1859 = vld [vmem:[%s1844 + $0x38] sm:$0xf]
        %v1860 = vld [vmem:[%s1844 + $0x3c] sm:$0xf]
        %v1862 = vunpack.c.l.b16 %v1843
        %v1863 = vpack.c.b16 %v1509, %v1862
        %vm1864 = vcmask 1046528
        %v1865 = vrot.slane %v1863, 1
        %v1866 = vrot.slane %v1519, 1
        %v1867 = vsel %vm1864, %v1865, %v1866
        %v1868 = vrot.slane %v1520, 1
        %v1869 = vsel %vm1864, %v1866, %v1868
        %v1870 = vrot.slane %v1521, 1
        %v1871 = vsel %vm1864, %v1868, %v1870
        %v1872 = vrot.slane %v1522, 1
        %v1873 = vsel %vm1864, %v1870, %v1872
        %v1895 = vunpack.c.l.b16 %v1845
        %v1896 = vunpack.c.l.b16 %v1846
        %v1897 = vunpack.c.l.b16 %v1847
        %v1898 = vunpack.c.l.b16 %v1848
        %v1899 = vunpack.c.l.b16 %v1849
        %v1900 = vunpack.c.l.b16 %v1850
        %v1901 = vunpack.c.l.b16 %v1851
        %v1902 = vunpack.c.l.b16 %v1852
        %v1903 = vunpack.c.l.b16 %v1853
        %v1904 = vunpack.c.l.b16 %v1854
        %v1905 = vunpack.c.l.b16 %v1855
        %v1906 = vunpack.c.l.b16 %v1856
        %v1907 = vunpack.c.l.b16 %v1857
        %v1908 = vunpack.c.l.b16 %v1858
        %v1909 = vunpack.c.l.b16 %v1859
        %v1910 = vunpack.c.l.b16 %v1860
        %v1911 = vpack.c.b16 %v1896, %v1895
        %v1912 = vpack.c.b16 %v1898, %v1897
        %v1913 = vpack.c.b16 %v1900, %v1899
        %v1914 = vpack.c.b16 %v1902, %v1901
        %v1915 = vpack.c.b16 %v1904, %v1903
        %v1916 = vpack.c.b16 %v1906, %v1905
        %v1917 = vpack.c.b16 %v1908, %v1907
        %v1918 = vpack.c.b16 %v1910, %v1909
        %1927 = vmatpush.bf16.msra.mxu0 %v1918
        %1928 = vmatpush.bf16.msra.mxu0 %v1917
        %1929 = vmatpush.bf16.msra.mxu0 %v1916
        %1930 = vmatpush.bf16.msra.mxu0 %v1915
        %1931 = vmatpush.bf16.msra.mxu0 %v1914
        %1932 = vmatpush.bf16.msra.mxu0 %v1913
        %1933 = vmatpush.bf16.msra.mxu0 %v1912
        %1934 = vmatpush.bf16.msra.mxu0 %v1911
        %1935 = vmatmul.bf16.gmra.mxu0 %v1867
        %v1936 = vpop.f32.mrf.mxu0
        %v1937 = vadd.f32 0.0, %v1936
        %v1938 = vpop.f32.mrf.mxu0
        %v1939 = vadd.f32 0.0, %v1938
        %1940 = vmatmul.bf16.gmra.mxu0 %v1869
        %v1941 = vpop.f32.mrf.mxu0
        %v1942 = vadd.f32 0.0, %v1941
        %v1943 = vpop.f32.mrf.mxu0
        %v1944 = vadd.f32 0.0, %v1943
        %1945 = vmatmul.bf16.gmra.mxu0 %v1871
        %v1946 = vpop.f32.mrf.mxu0
        %v1947 = vadd.f32 0.0, %v1946
        %v1948 = vpop.f32.mrf.mxu0
        %v1949 = vadd.f32 0.0, %v1948
        %1950 = vmatmul.bf16.gmra.mxu0 %v1873
        %v1951 = vpop.f32.mrf.mxu0
        %v1952 = vadd.f32 0.0, %v1951
        %v1953 = vpop.f32.mrf.mxu0
        %v1954 = vadd.f32 0.0, %v1953
        %1955 = vmatmul.bf16.gmra.mxu0 %v1872
        %v1956 = vpop.f32.mrf.mxu0
        %v1957 = vadd.f32 0.0, %v1956
        %v1958 = vpop.f32.mrf.mxu0
        %1959 = vdwg.mxu0
        %v1960 = vadd.f32 %v1834, %v1937
        %v1961 = vadd.f32 %v1835, %v1939
        %v1962 = vadd.f32 %v1836, %v1942
        %v1963 = vadd.f32 %v1837, %v1944
        %v1964 = vadd.f32 %v1838, %v1947
        %v1965 = vadd.f32 %v1839, %v1949
        %v1966 = vadd.f32 %v1840, %v1952
        %v1967 = vadd.f32 %v1841, %v1954
        %v1968 = vadd.f32 %v1842, %v1957
        %1969 = vst [vmem:[%s514] sm:$0xf] 0
        %1970 = vst [vmem:[%s514 + $0x4] sm:$0xf] 0
        %1971 = vst [vmem:[%s514 + $0x2c] sm:$0xf] 0
        %1972 = vst [vmem:[%s514 + $0x30] sm:$0xf] 0
        %1973 = vst [vmem:[%s514 + $0x34] sm:$0xf] 0
        %v1974 = vpack.c.bf16 %v1960, %v1960
        %v1975 = vpack.c.bf16 %v1961, %v1961
        %v1976 = vpack.c.bf16 %v1962, %v1962
        %v1977 = vpack.c.bf16 %v1963, %v1963
        %v1978 = vpack.c.bf16 %v1964, %v1964
        %v1979 = vpack.c.bf16 %v1965, %v1965
        %v1980 = vpack.c.bf16 %v1966, %v1966
        %v1981 = vpack.c.bf16 %v1967, %v1967
        %v1982 = vpack.c.bf16 %v1968, %v1968
        %1983 = vst [vmem:[%s514 + $0x8] sm:$0xf] %v1974
        %1984 = vst [vmem:[%s514 + $0xc] sm:$0xf] %v1975
        %1985 = vst [vmem:[%s514 + $0x10] sm:$0xf] %v1976
        %1986 = vst [vmem:[%s514 + $0x14] sm:$0xf] %v1977
        %1987 = vst [vmem:[%s514 + $0x18] sm:$0xf] %v1978
        %1988 = vst [vmem:[%s514 + $0x1c] sm:$0xf] %v1979
        %1989 = vst [vmem:[%s514 + $0x20] sm:$0xf] %v1980
        %1990 = vst [vmem:[%s514 + $0x24] sm:$0xf] %v1981
        %1991 = vst [vmem:[%s514 + $0x28] sm:$0xf] %v1982
        %1993 = vset.pattern.permute.xlu0 0
        %1994 = vperm.xlu0 %1993, %v529
        %v1995 = vpop.permute.xlu0 %1994
        %1998 = vset.pattern.permute.xlu0 0
        %1999 = vperm.xlu0 %1998, %v530
        %v2000 = vpop.permute.xlu0 %1999
        %2003 = vset.pattern.permute.xlu0 0
        %2004 = vperm.xlu0 %2003, %v531
        %v2005 = vpop.permute.xlu0 %2004
        %2008 = vset.pattern.permute.xlu0 0
        %2009 = vperm.xlu0 %2008, %v532
        %v2010 = vpop.permute.xlu0 %2009
        %2013 = vset.pattern.permute.xlu0 0
        %2014 = vperm.xlu0 %2013, %v533
        %v2015 = vpop.permute.xlu0 %2014
        %2018 = vset.pattern.permute.xlu0 0
        %2019 = vperm.xlu0 %2018, %v534
        %v2020 = vpop.permute.xlu0 %2019
        %2023 = vset.pattern.permute.xlu0 0
        %2024 = vperm.xlu0 %2023, %v535
        %v2025 = vpop.permute.xlu0 %2024
        %2028 = vset.pattern.permute.xlu0 0
        %2029 = vperm.xlu0 %2028, %v536
        %v2030 = vpop.permute.xlu0 %2029
        %2033 = vset.pattern.permute.xlu0 0
        %2034 = vperm.xlu0 %2033, %v537
        %v2035 = vpop.permute.xlu0 %2034
        %v2037 = vmul.f32 %v1960, %v1995
        %v2038 = vmul.f32 %v1961, %v2000
        %v2039 = vmul.f32 %v1962, %v2005
        %v2040 = vmul.f32 %v1963, %v2010
        %v2041 = vmul.f32 %v1964, %v2015
        %v2042 = vmul.f32 %v1965, %v2020
        %v2043 = vmul.f32 %v1966, %v2025
        %v2044 = vmul.f32 %v1967, %v2030
        %v2045 = vmul.f32 %v1968, %v2035
        %v2046 = vadd.f32 %v2037, %v2038
        %v2047 = vadd.f32 %v2046, %v2039
        %v2048 = vadd.f32 %v2047, %v2040
        %v2049 = vadd.f32 %v2048, %v2041
        %v2050 = vadd.f32 %v2049, %v2042
        %v2051 = vadd.f32 %v2050, %v2043
        %v2052 = vadd.f32 %v2051, %v2044
        %v2053 = vadd.f32 %v2052, %v2045
        %v2054 = vrot.slane %v2053, 4
        %v2055 = vadd.f32 %v2053, %v2054
        %v2056 = vrot.slane %v2055, 2
        %v2057 = vadd.f32 %v2055, %v2056
        %v2058 = vrot.slane %v2057, 1
        %v2059 = vadd.f32 %v2057, %v2058
        %2060 = vst [vmem:[%s518] sm:$0x1] %v2059
        %v2061 = vmul.f32 %v2037, %v1960
        %v2062 = vmul.f32 %v2038, %v1961
        %v2063 = vmul.f32 %v2039, %v1962
        %v2064 = vmul.f32 %v2040, %v1963
        %v2065 = vmul.f32 %v2041, %v1964
        %v2066 = vmul.f32 %v2042, %v1965
        %v2067 = vmul.f32 %v2043, %v1966
        %v2068 = vmul.f32 %v2044, %v1967
        %v2069 = vmul.f32 %v2045, %v1968
        %v2070 = vadd.f32 %v2061, %v2062
        %v2071 = vadd.f32 %v2070, %v2063
        %v2072 = vadd.f32 %v2071, %v2064
        %v2073 = vadd.f32 %v2072, %v2065
        %v2074 = vadd.f32 %v2073, %v2066
        %v2075 = vadd.f32 %v2074, %v2067
        %v2076 = vadd.f32 %v2075, %v2068
        %v2077 = vadd.f32 %v2076, %v2069
        %v2078 = vrot.slane %v2077, 4
        %v2079 = vadd.f32 %v2077, %v2078
        %v2080 = vrot.slane %v2079, 2
        %v2081 = vadd.f32 %v2079, %v2080
        %v2082 = vrot.slane %v2081, 1
        %v2083 = vadd.f32 %v2081, %v2082
        %2084 = vst [vmem:[%s518 + $0x1] sm:$0x1] %v2083
        %v2085 = vld [vmem:[%s1140] sm:$0xf]
        %v2086 = vld [vmem:[%s1140 + $0x4] sm:$0xf]
        %v2087 = vld [vmem:[%s1140 + $0x8] sm:$0xf]
        %v2088 = vld [vmem:[%s1140 + $0xc] sm:$0xf]
        %v2089 = vld [vmem:[%s1140 + $0x10] sm:$0xf]
        %v2090 = vld [vmem:[%s1140 + $0x14] sm:$0xf]
        %v2091 = vld [vmem:[%s1140 + $0x18] sm:$0xf]
        %v2092 = vld [vmem:[%s1140 + $0x1c] sm:$0xf]
        %v2093 = vld [vmem:[%s1140 + $0x20] sm:$0xf]
        %v2094 = vld [vmem:[%s3] sm:$0xf]
        %v2095 = vld [vmem:[%s3 + $0x4] sm:$0xf]
        %v2096 = vld [vmem:[%s3 + $0x8] sm:$0xf]
        %v2097 = vld [vmem:[%s3 + $0xc] sm:$0xf]
        %v2098 = vld [vmem:[%s3 + $0x10] sm:$0xf]
        %v2099 = vld [vmem:[%s3 + $0x14] sm:$0xf]
        %v2100 = vld [vmem:[%s3 + $0x18] sm:$0xf]
        %v2101 = vld [vmem:[%s3 + $0x1c] sm:$0xf]
        %v2102 = vld [vmem:[%s3 + $0x20] sm:$0xf]
        %v2103 = vld [vmem:[%s3 + $0x24] sm:$0xf]
        %v2104 = vld [vmem:[%s3 + $0x28] sm:$0xf]
        %v2105 = vld [vmem:[%s3 + $0x2c] sm:$0xf]
        %v2106 = vld [vmem:[%s3 + $0x30] sm:$0xf]
        %v2107 = vld [vmem:[%s3 + $0x34] sm:$0xf]
        %v2108 = vld [vmem:[%s3 + $0x38] sm:$0xf]
        %v2109 = vld [vmem:[%s3 + $0x3c] sm:$0xf]
        %v2119 = vunpack.c.l.b16 %v2085
        %v2120 = vunpack.c.l.b16 %v2086
        %v2121 = vunpack.c.l.b16 %v2087
        %v2122 = vunpack.c.l.b16 %v2088
        %v2123 = vunpack.c.l.b16 %v2089
        %v2124 = vunpack.c.l.b16 %v2090
        %v2125 = vunpack.c.l.b16 %v2091
        %v2126 = vunpack.c.l.b16 %v2092
        %v2127 = vunpack.c.l.b16 %v2093
        %v2128 = vpack.c.b16 %v2120, %v2119
        %v2129 = vpack.c.b16 %v2122, %v2121
        %v2130 = vpack.c.b16 %v2124, %v2123
        %v2131 = vpack.c.b16 %v2126, %v2125
        %v2132 = vpack.c.b16 %v2127, %v2127
        %v2154 = vunpack.c.l.b16 %v2094
        %v2155 = vunpack.c.l.b16 %v2095
        %v2156 = vunpack.c.l.b16 %v2096
        %v2157 = vunpack.c.l.b16 %v2097
        %v2158 = vunpack.c.l.b16 %v2098
        %v2159 = vunpack.c.l.b16 %v2099
        %v2160 = vunpack.c.l.b16 %v2100
        %v2161 = vunpack.c.l.b16 %v2101
        %v2162 = vunpack.c.l.b16 %v2102
        %v2163 = vunpack.c.l.b16 %v2103
        %v2164 = vunpack.c.l.b16 %v2104
        %v2165 = vunpack.c.l.b16 %v2105
        %v2166 = vunpack.c.l.b16 %v2106
        %v2167 = vunpack.c.l.b16 %v2107
        %v2168 = vunpack.c.l.b16 %v2108
        %v2169 = vunpack.c.l.b16 %v2109
        %v2170 = vpack.c.b16 %v2155, %v2154
        %v2171 = vpack.c.b16 %v2157, %v2156
        %v2172 = vpack.c.b16 %v2159, %v2158
        %v2173 = vpack.c.b16 %v2161, %v2160
        %v2174 = vpack.c.b16 %v2163, %v2162
        %v2175 = vpack.c.b16 %v2165, %v2164
        %v2176 = vpack.c.b16 %v2167, %v2166
        %v2177 = vpack.c.b16 %v2169, %v2168
        %2186 = vmatpush.bf16.msra.mxu0 %v2177
        %2187 = vmatpush.bf16.msra.mxu0 %v2176
        %2188 = vmatpush.bf16.msra.mxu0 %v2175
        %2189 = vmatpush.bf16.msra.mxu0 %v2174
        %2190 = vmatpush.bf16.msra.mxu0 %v2173
        %2191 = vmatpush.bf16.msra.mxu0 %v2172
        %2192 = vmatpush.bf16.msra.mxu0 %v2171
        %2193 = vmatpush.bf16.msra.mxu0 %v2170
        %2194 = vmatmul.bf16.gmra.mxu0 %v2128
        %v2195 = vpop.f32.mrf.mxu0
        %v2196 = vadd.f32 0.0, %v2195
        %v2197 = vpop.f32.mrf.mxu0
        %v2198 = vadd.f32 0.0, %v2197
        %2199 = vmatmul.bf16.gmra.mxu0 %v2129
        %v2200 = vpop.f32.mrf.mxu0
        %v2201 = vadd.f32 0.0, %v2200
        %v2202 = vpop.f32.mrf.mxu0
        %v2203 = vadd.f32 0.0, %v2202
        %2204 = vmatmul.bf16.gmra.mxu0 %v2130
        %v2205 = vpop.f32.mrf.mxu0
        %v2206 = vadd.f32 0.0, %v2205
        %v2207 = vpop.f32.mrf.mxu0
        %v2208 = vadd.f32 0.0, %v2207
        %2209 = vmatmul.bf16.gmra.mxu0 %v2131
        %v2210 = vpop.f32.mrf.mxu0
        %v2211 = vadd.f32 0.0, %v2210
        %v2212 = vpop.f32.mrf.mxu0
        %v2213 = vadd.f32 0.0, %v2212
        %2214 = vmatmul.bf16.gmra.mxu0 %v2132
        %v2215 = vpop.f32.mrf.mxu0
        %v2216 = vadd.f32 0.0, %v2215
        %v2217 = vpop.f32.mrf.mxu0
        %2218 = vdwg.mxu0
        %v2219 = vpack.c.bf16 %v2196, %v2196
        %v2220 = vpack.c.bf16 %v2198, %v2198
        %v2221 = vpack.c.bf16 %v2201, %v2201
        %v2222 = vpack.c.bf16 %v2203, %v2203
        %v2223 = vpack.c.bf16 %v2206, %v2206
        %v2224 = vpack.c.bf16 %v2208, %v2208
        %v2225 = vpack.c.bf16 %v2211, %v2211
        %v2226 = vpack.c.bf16 %v2213, %v2213
        %v2227 = vpack.c.bf16 %v2216, %v2216
        %2228 = vst [vmem:[%s523] sm:$0xf] %v2219
        %2229 = vst [vmem:[%s523 + $0x4] sm:$0xf] %v2220
        %2230 = vst [vmem:[%s523 + $0x8] sm:$0xf] %v2221
        %2231 = vst [vmem:[%s523 + $0xc] sm:$0xf] %v2222
        %2232 = vst [vmem:[%s523 + $0x10] sm:$0xf] %v2223
        %2233 = vst [vmem:[%s523 + $0x14] sm:$0xf] %v2224
        %2234 = vst [vmem:[%s523 + $0x18] sm:$0xf] %v2225
        %2235 = vst [vmem:[%s523 + $0x1c] sm:$0xf] %v2226
        %2236 = vst [vmem:[%s523 + $0x20] sm:$0xf] %v2227
        %v2237 = vmul.f32 %v2196, %v1995
        %v2238 = vmul.f32 %v2198, %v2000
        %v2239 = vmul.f32 %v2201, %v2005
        %v2240 = vmul.f32 %v2203, %v2010
        %v2241 = vmul.f32 %v2206, %v2015
        %v2242 = vmul.f32 %v2208, %v2020
        %v2243 = vmul.f32 %v2211, %v2025
        %v2244 = vmul.f32 %v2213, %v2030
        %v2245 = vmul.f32 %v2216, %v2035
        %v2246 = vadd.f32 %v2237, %v2238
        %v2247 = vadd.f32 %v2246, %v2239
        %v2248 = vadd.f32 %v2247, %v2240
        %v2249 = vadd.f32 %v2248, %v2241
        %v2250 = vadd.f32 %v2249, %v2242
        %v2251 = vadd.f32 %v2250, %v2243
        %v2252 = vadd.f32 %v2251, %v2244
        %v2253 = vadd.f32 %v2252, %v2245
        %v2254 = vrot.slane %v2253, 4
        %v2255 = vadd.f32 %v2253, %v2254
        %v2256 = vrot.slane %v2255, 2
        %v2257 = vadd.f32 %v2255, %v2256
        %v2258 = vrot.slane %v2257, 1
        %v2259 = vadd.f32 %v2257, %v2258
        %2260 = vst [vmem:[%s527] sm:$0x1] %v2259
        %v2261 = vmul.f32 %v2237, %v2196
        %v2262 = vmul.f32 %v2238, %v2198
        %v2263 = vmul.f32 %v2239, %v2201
        %v2264 = vmul.f32 %v2240, %v2203
        %v2265 = vmul.f32 %v2241, %v2206
        %v2266 = vmul.f32 %v2242, %v2208
        %v2267 = vmul.f32 %v2243, %v2211
        %v2268 = vmul.f32 %v2244, %v2213
        %v2269 = vmul.f32 %v2245, %v2216
        %v2270 = vadd.f32 %v2261, %v2262
        %v2271 = vadd.f32 %v2270, %v2263
        %v2272 = vadd.f32 %v2271, %v2264
        %v2273 = vadd.f32 %v2272, %v2265
        %v2274 = vadd.f32 %v2273, %v2266
        %v2275 = vadd.f32 %v2274, %v2267
        %v2276 = vadd.f32 %v2275, %v2268
        %v2277 = vadd.f32 %v2276, %v2269
        %v2278 = vrot.slane %v2277, 4
        %v2279 = vadd.f32 %v2277, %v2278
        %v2280 = vrot.slane %v2279, 2
        %v2281 = vadd.f32 %v2279, %v2280
        %v2282 = vrot.slane %v2281, 1
        %v2283 = vadd.f32 %v2281, %v2282
        %2284 = vst [vmem:[%s527 + $0x1] sm:$0x1] %v2283
        %p2285 = scmp.lt.s32.totalorder %s19, 1
        %s2286 = scalar_select %p2285, %s19, 1
        %s2287 = smul.addr %s2286, 14
        %s2288 = smul.addr %s2287, 4
        %s2289 = scalar_lea.vmem %s4, %s2288
        %p2290 = scmp.lt.s32.totalorder %s19, 1
        %s2291 = scalar_select %p2290, %s19, 1
        %s2292 = smul.addr %s2291, 2
        %s2293 = scalar_lea.vmem %s5, %s2292
        %p2294 = scmp.lt.s32.totalorder %s19, 1
        %s2295 = scalar_select %p2294, %s19, 1
        %s2296 = smul.addr %s2295, 9
        %s2297 = smul.addr %s2296, 4
        %s2298 = scalar_lea.vmem %s6, %s2297
        %p2299 = scmp.lt.s32.totalorder %s19, 1
        %s2300 = scalar_select %p2299, %s19, 1
        %s2301 = smul.addr %s2300, 2
        %s2302 = scalar_lea.vmem %s7, %s2301
        // Predicated region
        $region78: #{resblk_forward.3} parent=72 // pred_check
          %p2303 = pneg %p126
        $region79: #{resblk_forward.3} parent=72 // pred_check_branch
          %2305 = sbr.rel (%p2303) target = $region81
        $region80: #{resblk_forward.3} parent=72 // pred_region
          _
        $region81: #{resblk_forward.3} parent=72 // pred_fallthru
          _
        // Predicated region
        $region82: #{resblk_forward.3} parent=72 // pred_check
          %p2306 = pneg %p152
        $region83: #{resblk_forward.3} parent=72 // pred_check_branch
          %2308 = sbr.rel (%p2306) target = $region85
        $region84: #{resblk_forward.3} parent=72 // pred_region
          _
        $region85: #{resblk_forward.3} parent=72 // pred_fallthru
          _
        // Predicated region
        $region86: #{resblk_forward.3} parent=72 // pred_check
          %p2309 = pneg %p178
        $region87: #{resblk_forward.3} parent=72 // pred_check_branch
          %2311 = sbr.rel (%p2309) target = $region89
        $region88: #{resblk_forward.3} parent=72 // pred_region
          _
        $region89: #{resblk_forward.3} parent=72 // pred_fallthru
          _
        // Predicated region
        $region90: #{resblk_forward.3} parent=72 // pred_check
          %p2312 = pneg %p204
        $region91: #{resblk_forward.3} parent=72 // pred_check_branch
          %2314 = sbr.rel (%p2312) target = $region93
        $region92: #{resblk_forward.3} parent=72 // pred_region
          _
        $region93: #{resblk_forward.3} parent=72 // pred_fallthru
          _
      $region73: #{resblk_forward.3} parent=5 // pred_fallthru
        _
      %p2315 = scmp.le.s32.totalorder 2, %s14
      // Predicated region
      $region94: #{resblk_forward.3} parent=5 // pred_check
        %p2316 = pneg %p2315
      $region95: #{resblk_forward.3} parent=5 // pred_check_branch
        %2318 = sbr.rel (%p2316) target = $region97
      $region96: #{resblk_forward.3} parent=5 // pred_region
        %s2319 = ssub.s32 %s14, 2
        // Predicated region
        $region98: #{resblk_forward.3} parent=96 // pred_check
          %p2320 = pneg %p132
        $region99: #{resblk_forward.3} parent=96 // pred_check_branch
          %2322 = sbr.rel (%p2320) target = $region101
        $region100: #{resblk_forward.3} parent=96 // pred_region
          %p2323 = scmp.lt.s32.totalorder %s20, 1
          %s2324 = scalar_select %p2323, %s20, 1
          %s2325 = smul.addr %s2324, 14
          %s2326 = smul.addr %s2325, 4
          %s2327 = scalar_lea.vmem %s4, %s2326
        $region101: #{resblk_forward.3} parent=96 // pred_fallthru
          _
        // Predicated region
        $region102: #{resblk_forward.3} parent=96 // pred_check
          %p2328 = pneg %p158
        $region103: #{resblk_forward.3} parent=96 // pred_check_branch
          %2330 = sbr.rel (%p2328) target = $region105
        $region104: #{resblk_forward.3} parent=96 // pred_region
          %p2331 = scmp.lt.s32.totalorder %s20, 1
          %s2332 = scalar_select %p2331, %s20, 1
          %s2333 = smul.addr %s2332, 2
          %s2334 = scalar_lea.vmem %s5, %s2333
        $region105: #{resblk_forward.3} parent=96 // pred_fallthru
          _
        // Predicated region
        $region106: #{resblk_forward.3} parent=96 // pred_check
          %p2335 = pneg %p184
        $region107: #{resblk_forward.3} parent=96 // pred_check_branch
          %2337 = sbr.rel (%p2335) target = $region109
        $region108: #{resblk_forward.3} parent=96 // pred_region
          %p2338 = scmp.lt.s32.totalorder %s20, 1
          %s2339 = scalar_select %p2338, %s20, 1
          %s2340 = smul.addr %s2339, 9
          %s2341 = smul.addr %s2340, 4
          %s2342 = scalar_lea.vmem %s6, %s2341
        $region109: #{resblk_forward.3} parent=96 // pred_fallthru
          _
        // Predicated region
        $region110: #{resblk_forward.3} parent=96 // pred_check
          %p2343 = pneg %p210
        $region111: #{resblk_forward.3} parent=96 // pred_check_branch
          %2345 = sbr.rel (%p2343) target = $region113
        $region112: #{resblk_forward.3} parent=96 // pred_region
          %p2346 = scmp.lt.s32.totalorder %s20, 1
          %s2347 = scalar_select %p2346, %s20, 1
          %s2348 = smul.addr %s2347, 2
          %s2349 = scalar_lea.vmem %s7, %s2348
        $region113: #{resblk_forward.3} parent=96 // pred_fallthru
          _
      $region97: #{resblk_forward.3} parent=5 // pred_fallthru
        _
    $region6: #{resblk_forward.3} parent=1 // loop_footer
      %s18 = sadd.s32 1, %s14
    $region7: #{resblk_forward.3} parent=1 // loop_footer_branch
      %13 = sbr.rel target = $region3
    $region8: #{resblk_forward.3} parent=1 // loop_exit
      _

</llo_original>
